<compile_context>
chip_gen: v7x
topology: tpu7x:2x2x1
jax: 0.10.0
libtpu: 0.0.40
codegen_flags: <defaults>
</compile_context>

<pallas_src>
import functools

import jax
import jax.numpy as jnp
from jax.experimental import pallas as pl
from jax.experimental.pallas import tpu as pltpu


def _round_up(x, m):
    return ((x + m - 1) // m) * m


# ----------------------------------------------------------------------------
# GroupNorm + ReLU kernel (lane-dense: channels folded with W into the lane dim)
# ----------------------------------------------------------------------------
def gn_relu_kernel(x_ref, gamma_ref, beta_ref, m_ref, mt_ref, o_ref, *, cnt, eps):
    """x_ref: (1, H, W*C); gamma/beta: (1, W*C); m: (W*C, G); mt: (G, W*C)."""
    x = x_ref[...].astype(jnp.float32)                     # (1, H, W*C)
    m = m_ref[...]
    mt = mt_ref[...]

    # pass 1: per-(w,c)-position sums -> group mean (tiny one-hot matmuls)
    s = jnp.sum(x, axis=1)                                 # (1, W*C)
    mean_g = jnp.dot(s, m, preferred_element_type=jnp.float32) / cnt    # (1, G)
    mean_c = jnp.dot(mean_g, mt, preferred_element_type=jnp.float32)    # (1, W*C)

    # pass 2: centered second moment (no E[x^2]-mean^2 cancellation)
    xc = x - mean_c[:, None, :]
    sq = jnp.sum(xc * xc, axis=1)                          # (1, W*C)
    var_g = jnp.dot(sq, m, preferred_element_type=jnp.float32) / cnt    # (1, G)
    inv_c = jnp.dot(jax.lax.rsqrt(var_g + eps), mt,
                    preferred_element_type=jnp.float32)                 # (1, W*C)

    # pass 3: fused per-channel scale/shift + ReLU, lane-dense bf16 store
    scale = (inv_c * gamma_ref[...])[:, None, :]
    shift = beta_ref[...][:, None, :]
    o_ref[...] = jnp.maximum(xc * scale + shift, 0.0).astype(o_ref.dtype)


def group_norm_relu(x, gamma, beta, groups, eps=1e-5):
    """x: (N, H, W, C) (fp32 or bf16) -> (N, H, W, C) bf16, GroupNorm + ReLU."""
    n, h, w, c = x.shape
    cg = c // groups
    wc = w * c
    onehot = ((jnp.arange(c) // cg)[:, None]
              == jnp.arange(groups)[None, :]).astype(jnp.float32)   # (C, G)
    m = jnp.tile(onehot, (w, 1))                                    # (W*C, G)
    mt = m.T                                                        # (G, W*C)
    gamma_t = jnp.tile(gamma.astype(jnp.float32), w).reshape(1, wc)
    beta_t = jnp.tile(beta.astype(jnp.float32), w).reshape(1, wc)

    kern = functools.partial(gn_relu_kernel, cnt=float(cg * h * w), eps=eps)
    y = pl.pallas_call(
        kern,
        grid=(n,),
        in_specs=[
            pl.BlockSpec((1, h, wc), lambda i: (i, 0, 0)),
            pl.BlockSpec((1, wc), lambda i: (0, 0)),
            pl.BlockSpec((1, wc), lambda i: (0, 0)),
            pl.BlockSpec((wc, groups), lambda i: (0, 0)),
            pl.BlockSpec((groups, wc), lambda i: (0, 0)),
        ],
        out_specs=pl.BlockSpec((1, h, wc), lambda i: (i, 0, 0)),
        out_shape=jax.ShapeDtypeStruct((n, h, wc), jnp.bfloat16),
        compiler_params=pltpu.CompilerParams(
            dimension_semantics=("parallel",),
            vmem_limit_bytes=48 * 1024 * 1024),
    )(x.reshape(n, h, wc), gamma_t, beta_t, m, mt)
    return y.reshape(n, h, w, c)


# ----------------------------------------------------------------------------
# Fused im2col conv kernel (3x3 or 1x1 tap set, optional fused residual add)
# ----------------------------------------------------------------------------
def conv_kernel(*refs, taps, stride, ho, wo, wo_p, with_residual):
    """refs = (x_ref, w_ref, [r_ref], o_ref)

    x_ref: (s*s, Hq, Wq, Cin) bf16 -- parity-split, spatially padded image
    w_ref: (ntaps, Cin, tcout)  bf16
    r_ref: (1, ho, wo, tcout)   fp32 residual (optional)
    o_ref: (1, ho, wo, tcout)
    """
    if with_residual:
        x_ref, w_ref, r_ref, o_ref = refs
    else:
        x_ref, w_ref, o_ref = refs
        r_ref = None
    cin = x_ref.shape[-1]
    tc = o_ref.shape[-1]

    acc = jnp.zeros((ho * wo_p, tc), jnp.float32)
    for t, (kh, kw) in enumerate(taps):
        plane = (kh % stride) * stride + (kw % stride)
        i0, j0 = kh // stride, kw // stride
        win = x_ref[plane, i0:i0 + ho, j0:j0 + wo_p, :]          # (ho, wo_p, cin)
        acc = acc + jnp.dot(win.reshape(ho * wo_p, cin), w_ref[t],
                            preferred_element_type=jnp.float32)

    y = acc.reshape(ho, wo_p, tc)[:, :wo, :]
    if r_ref is not None:
        y = y + r_ref[0].astype(jnp.float32)
    o_ref[0] = y.astype(o_ref.dtype)


def _pad_split(x, stride, ksize=3, pad=1, wo_align=16):
    """Pad spatially and split into stride parity planes.

    x: (N, H, W, C) -> (N*s*s, Hq, Wq, C) where
      out[n*s*s + ph*s + pw, i, j, c] = pad(x)[n, i*s + ph, j*s + pw, c]
    so tap (kh, kw) of a stride-s conv is the contiguous window
      [kh//s : kh//s + Ho, kw//s : kw//s + Wo] of plane (kh%s, kw%s).
    Width is over-padded to a multiple of `wo_align` so in-kernel reshapes stay
    layout-preserving; the garbage columns are dropped at the store.
    For stride=1 this is just a spatial pad (the transpose is a no-op).
    """
    n, h, w, c = x.shape
    s = stride
    ho = (h + 2 * pad - ksize) // s + 1
    wo = (w + 2 * pad - ksize) // s + 1
    wo_p = _round_up(wo, wo_align)
    hq = ho + (ksize - 1) // s
    wq = wo_p + (ksize - 1) // s
    xp = jnp.pad(x, ((0, 0),
                     (pad, hq * s - h - pad),
                     (pad, wq * s - w - pad),
                     (0, 0)))
    xs = xp.reshape(n, hq, s, wq, s, c).transpose(0, 2, 4, 1, 3, 5)
    return xs.reshape(n * s * s, hq, wq, c), ho, wo, wo_p


def fused_conv(xs, w_taps, taps, stride, ho, wo, wo_p, out_dtype,
               residual=None, tn_max=512):
    """xs: (N*s*s, Hq, Wq, Cin) bf16; w_taps: (ntaps, Cin, Cout)."""
    ss = stride * stride
    nss, hq, wq, cin = xs.shape
    n = nss // ss
    ntaps, _, cout = w_taps.shape
    tc = tn_max if (cout > tn_max and cout % tn_max == 0) else cout

    kern = functools.partial(conv_kernel, taps=tuple(taps), stride=stride,
                             ho=ho, wo=wo, wo_p=wo_p,
                             with_residual=residual is not None)
    in_specs = [
        pl.BlockSpec((ss, hq, wq, cin), lambda i, j: (i, 0, 0, 0)),
        pl.BlockSpec((ntaps, cin, tc), lambda i, j: (0, 0, j)),
    ]
    operands = [xs, w_taps.astype(jnp.bfloat16)]
    if residual is not None:
        in_specs.append(pl.BlockSpec((1, ho, wo, tc), lambda i, j: (i, 0, 0, j)))
        operands.append(residual.astype(jnp.float32))

    return pl.pallas_call(
        kern,
        grid=(n, cout // tc),
        in_specs=in_specs,
        out_specs=pl.BlockSpec((1, ho, wo, tc), lambda i, j: (i, 0, 0, j)),
        out_shape=jax.ShapeDtypeStruct((n, ho, wo, cout), out_dtype),
        compiler_params=pltpu.CompilerParams(
            dimension_semantics=("parallel", "parallel"),
            vmem_limit_bytes=48 * 1024 * 1024),
    )(*operands)


_TAPS3 = tuple((kh, kw) for kh in range(3) for kw in range(3))


def conv3x3(xs, w_hwio, stride, ho, wo, wo_p, out_dtype, residual=None):
    kh, kw, cin, cout = w_hwio.shape
    return fused_conv(xs, w_hwio.reshape(kh * kw, cin, cout), _TAPS3, stride,
                      ho, wo, wo_p, out_dtype, residual=residual)


def conv1x1_from_split(xs, w_io, stride, ho, wo, wo_p, out_dtype):
    # 1x1 stride-s conv == the single (1,1) tap of the same padded/parity-split
    # activation used by the 3x3 conv (no extra XLA strided slice).
    cin, cout = w_io.shape
    return fused_conv(xs, w_io.reshape(1, cin, cout), ((1, 1),), stride,
                      ho, wo, wo_p, out_dtype)


# ----------------------------------------------------------------------------
# Pre-activation block forward
# ----------------------------------------------------------------------------
def block_forward(x_nchw, params, stride, groups=32):
    """relu(GN1) -> conv1 (+1x1 shortcut) -> relu(GN2) -> conv2 (+ shortcut)."""
    x = jnp.transpose(x_nchw, (0, 2, 3, 1)).astype(jnp.float32)        # NHWC

    act1 = group_norm_relu(x, params["g1"], params["b1"], groups)      # bf16
    xs1, ho, wo, wo_p = _pad_split(act1, stride)

    if "w_sc" in params:
        shortcut = conv1x1_from_split(xs1, params["w_sc"], stride,
                                      ho, wo, wo_p, jnp.float32)
    else:
        shortcut = x                                                   # identity

    out1 = conv3x3(xs1, params["w1"], stride, ho, wo, wo_p, jnp.bfloat16)
    act2 = group_norm_relu(out1, params["g2"], params["b2"], groups)   # bf16
    xs2, ho2, wo2, wo2_p = _pad_split(act2, 1)
    out = conv3x3(xs2, params["w2"], 1, ho2, wo2, wo2_p, jnp.float32,
                  residual=shortcut)                                   # fused add

    return jnp.transpose(out, (0, 3, 1, 2))                            # NCHW


def init_params(key, in_planes, planes, stride, expansion=1):
    k1, k2, k3 = jax.random.split(key, 3)
    params = {
        "g1": jnp.ones((in_planes,), jnp.float32),
        "b1": jnp.zeros((in_planes,), jnp.float32),
        "g2": jnp.ones((planes,), jnp.float32),
        "b2": jnp.zeros((planes,), jnp.float32),
        # HWIO conv weights
        "w1": 0.05 * jax.random.normal(k1, (3, 3, in_planes, planes), jnp.float32),
        "w2": 0.05 * jax.random.normal(k2, (3, 3, planes, planes), jnp.float32),
    }
    if stride != 1 or in_planes != expansion * planes:
        params["w_sc"] = 0.05 * jax.random.normal(
            k3, (in_planes, expansion * planes), jnp.float32)
    return params


# ----------------------------------------------------------------------------
# Pure-JAX reference (fp32) for a loose numerical sanity check
# ----------------------------------------------------------------------------
def _ref_gn_relu(x, g, b, groups=32, eps=1e-5):
    n, c, h, w = x.shape
    xg = x.reshape(n, groups, (c // groups) * h * w)
    mean = xg.mean(axis=2, keepdims=True)
    var = jnp.mean((xg - mean) ** 2, axis=2, keepdims=True)
    xn = ((xg - mean) * jax.lax.rsqrt(var + eps)).reshape(n, c, h, w)
    return jax.nn.relu(xn * g[None, :, None, None] + b[None, :, None, None])


def block_reference(x_nchw, params, stride, groups=32):
    def conv(x, w_hwio, s, pad):
        return jax.lax.conv_general_dilated(
            x, w_hwio, (s, s), [(pad, pad), (pad, pad)],
            dimension_numbers=("NCHW", "HWIO", "NCHW"),
            precision=jax.lax.Precision.HIGHEST)

    act1 = _ref_gn_relu(x_nchw, params["g1"], params["b1"], groups)
    if "w_sc" in params:
        shortcut = conv(act1, params["w_sc"][None, None], stride, 0)
    else:
        shortcut = x_nchw
    out = conv(act1, params["w1"], stride, 1)
    act2 = _ref_gn_relu(out, params["g2"], params["b2"], groups)
    out = conv(act2, params["w2"], 1, 1)
    return out + shortcut


if __name__ == "__main__":
    key = jax.random.PRNGKey(0)
    N = 2
    configs = [
        # (in_planes, planes, stride, H, W)
        (32, 64, 2, 8, 8),   # downsampling block with 1x1 conv shortcut
        (32, 32, 1, 8, 8),   # identity-shortcut block
    ]
    for idx, (in_planes, planes, stride, h, w) in enumerate(configs):
        kx, kp, key = jax.random.split(key, 3)
        x = jax.random.normal(kx, (N, in_planes, h, w), jnp.float32)   # NCHW
        params = init_params(kp, in_planes, planes, stride)

        fwd = jax.jit(functools.partial(block_forward, stride=stride))
        out = jax.block_until_ready(fwd(x, params))

        ho = (h + 2 - 3) // stride + 1
        assert out.shape == (N, planes, ho, ho), out.shape
        assert bool(jnp.all(jnp.isfinite(out)))

        ref = block_reference(x, params, stride)
        rel = float(jnp.max(jnp.abs(out - ref)) / (jnp.max(jnp.abs(ref)) + 1e-6))
        assert rel < 5e-2, f"config {idx}: relative error {rel}"

    print("KERNEL_OK")
</pallas_src>

<mosaic_0001>
module attributes {stable_mosaic.version = 11 : i64} {
  func.func @gn_relu_kernel(%arg0: i32, %arg1: memref<1x8x256xf32, #tpu.memory_space<vmem>>, %arg2: memref<1x256xf32, #tpu.memory_space<vmem>>, %arg3: memref<1x256xf32, #tpu.memory_space<vmem>>, %arg4: memref<256x32xf32, #tpu.memory_space<vmem>>, %arg5: memref<32x256xf32, #tpu.memory_space<vmem>>, %arg6: memref<1x8x256xbf16, #tpu.memory_space<vmem>>) attributes {dimension_semantics = [#tpu.dimension_semantics<parallel>], iteration_bounds = array<i64: 2>, scalar_prefetch = 0 : i64, scratch_operands = 0 : i64, tpu.core_type = #tpu.core_type<tc>, window_params = [{transform_indices = @transform_0, window_bounds = array<i64: 1, 8, 256>}, {pipeline_mode = #tpu.pipeline_mode<synchronous>, transform_indices = @transform_1, window_bounds = array<i64: 1, 256>}, {pipeline_mode = #tpu.pipeline_mode<synchronous>, transform_indices = @transform_2, window_bounds = array<i64: 1, 256>}, {pipeline_mode = #tpu.pipeline_mode<synchronous>, transform_indices = @transform_3, window_bounds = array<i64: 256, 32>}, {pipeline_mode = #tpu.pipeline_mode<synchronous>, transform_indices = @transform_4, window_bounds = array<i64: 32, 256>}, {transform_indices = @transform_5, window_bounds = array<i64: 1, 8, 256>}]} {
    %c0 = arith.constant 0 : index
    %c0_0 = arith.constant 0 : index
    %c0_1 = arith.constant 0 : index
    %0 = vector.load %arg1[%c0, %c0_0, %c0_1] : memref<1x8x256xf32, #tpu.memory_space<vmem>>, vector<1x8x256xf32>
    %c0_2 = arith.constant 0 : index
    %c0_3 = arith.constant 0 : index
    %1 = vector.load %arg4[%c0_2, %c0_3] : memref<256x32xf32, #tpu.memory_space<vmem>>, vector<256x32xf32>
    %c0_4 = arith.constant 0 : index
    %c0_5 = arith.constant 0 : index
    %2 = vector.load %arg5[%c0_4, %c0_5] : memref<32x256xf32, #tpu.memory_space<vmem>>, vector<32x256xf32>
    %cst = arith.constant dense<0.000000e+00> : vector<1x256xf32>
    %3 = vector.multi_reduction <add>, %0, %cst [1] : vector<1x8x256xf32> to vector<1x256xf32>
    %cst_6 = arith.constant dense<0.000000e+00> : vector<1x32xf32>
    %4 = tpu.matmul %3, %1, %cst_6 {dimension_numbers = #tpu.dot_dimension_numbers<[1], [0], [0], [1], [0, 0, 1, 1], [], []>} : vector<1x256xf32>, vector<256x32xf32>, vector<1x32xf32> -> vector<1x32xf32>
    %cst_7 = arith.constant 6.400000e+01 : f32
    %5 = vector.broadcast %cst_7 : f32 to vector<1x32xf32>
    %6 = arith.divf %4, %5 : vector<1x32xf32>
    %cst_8 = arith.constant dense<0.000000e+00> : vector<1x256xf32>
    %7 = tpu.matmul %6, %2, %cst_8 {dimension_numbers = #tpu.dot_dimension_numbers<[1], [0], [0], [1], [0, 0, 1, 1], [], []>} : vector<1x32xf32>, vector<32x256xf32>, vector<1x256xf32> -> vector<1x256xf32>
    %8 = vector.shape_cast %7 : vector<1x256xf32> to vector<1x1x256xf32>
    %9 = vector.broadcast %8 : vector<1x1x256xf32> to vector<1x8x256xf32>
    %10 = arith.subf %0, %9 : vector<1x8x256xf32>
    %11 = arith.mulf %10, %10 : vector<1x8x256xf32>
    %cst_9 = arith.constant dense<0.000000e+00> : vector<1x256xf32>
    %12 = vector.multi_reduction <add>, %11, %cst_9 [1] : vector<1x8x256xf32> to vector<1x256xf32>
    %cst_10 = arith.constant dense<0.000000e+00> : vector<1x32xf32>
    %13 = tpu.matmul %12, %1, %cst_10 {dimension_numbers = #tpu.dot_dimension_numbers<[1], [0], [0], [1], [0, 0, 1, 1], [], []>} : vector<1x256xf32>, vector<256x32xf32>, vector<1x32xf32> -> vector<1x32xf32>
    %cst_11 = arith.constant 6.400000e+01 : f32
    %14 = vector.broadcast %cst_11 : f32 to vector<1x32xf32>
    %15 = arith.divf %13, %14 : vector<1x32xf32>
    %cst_12 = arith.constant 9.99999974E-6 : f32
    %16 = vector.broadcast %cst_12 : f32 to vector<1x32xf32>
    %17 = arith.addf %15, %16 : vector<1x32xf32>
    %18 = math.rsqrt %17 : vector<1x32xf32>
    %cst_13 = arith.constant dense<0.000000e+00> : vector<1x256xf32>
    %19 = tpu.matmul %18, %2, %cst_13 {dimension_numbers = #tpu.dot_dimension_numbers<[1], [0], [0], [1], [0, 0, 1, 1], [], []>} : vector<1x32xf32>, vector<32x256xf32>, vector<1x256xf32> -> vector<1x256xf32>
    %c0_14 = arith.constant 0 : index
    %c0_15 = arith.constant 0 : index
    %20 = vector.load %arg2[%c0_14, %c0_15] : memref<1x256xf32, #tpu.memory_space<vmem>>, vector<1x256xf32>
    %21 = arith.mulf %19, %20 : vector<1x256xf32>
    %22 = vector.shape_cast %21 : vector<1x256xf32> to vector<1x1x256xf32>
    %c0_16 = arith.constant 0 : index
    %c0_17 = arith.constant 0 : index
    %23 = vector.load %arg3[%c0_16, %c0_17] : memref<1x256xf32, #tpu.memory_space<vmem>>, vector<1x256xf32>
    %24 = vector.shape_cast %23 : vector<1x256xf32> to vector<1x1x256xf32>
    %25 = vector.broadcast %22 : vector<1x1x256xf32> to vector<1x8x256xf32>
    %26 = arith.mulf %10, %25 : vector<1x8x256xf32>
    %27 = vector.broadcast %24 : vector<1x1x256xf32> to vector<1x8x256xf32>
    %28 = arith.addf %26, %27 : vector<1x8x256xf32>
    %cst_18 = arith.constant 0.000000e+00 : f32
    %29 = vector.broadcast %cst_18 : f32 to vector<1x8x256xf32>
    %30 = arith.maximumf %28, %29 : vector<1x8x256xf32>
    %31 = arith.truncf %30 : vector<1x8x256xf32> to vector<1x8x256xbf16>
    %c0_19 = arith.constant 0 : index
    %c0_20 = arith.constant 0 : index
    %c0_21 = arith.constant 0 : index
    %32 = vector.load %arg6[%c0_19, %c0_20, %c0_21] : memref<1x8x256xbf16, #tpu.memory_space<vmem>>, vector<1x8x256xbf16>
    tpu.vector_store %arg6[%c0_19, %c0_20, %c0_21], %31 {strides = array<i32>} : memref<1x8x256xbf16, #tpu.memory_space<vmem>>, vector<1x8x256xbf16>,
    return
  }
  func.func @transform_0(%arg0: i32) -> (i32, i32, i32) {
    %c0_i32 = arith.constant 0 : i32
    %c0_i32_0 = arith.constant 0 : i32
    %c0_i32_1 = arith.constant 0 : i32
    return %arg0, %c0_i32, %c0_i32_0 : i32, i32, i32
  }
  func.func @transform_1(%arg0: i32) -> (i32, i32) {
    %c0_i32 = arith.constant 0 : i32
    %c0_i32_0 = arith.constant 0 : i32
    %c0_i32_1 = arith.constant 0 : i32
    return %c0_i32, %c0_i32_0 : i32, i32
  }
  func.func @transform_2(%arg0: i32) -> (i32, i32) {
    %c0_i32 = arith.constant 0 : i32
    %c0_i32_0 = arith.constant 0 : i32
    %c0_i32_1 = arith.constant 0 : i32
    return %c0_i32, %c0_i32_0 : i32, i32
  }
  func.func @transform_3(%arg0: i32) -> (i32, i32) {
    %c0_i32 = arith.constant 0 : i32
    %c0_i32_0 = arith.constant 0 : i32
    %c0_i32_1 = arith.constant 0 : i32
    return %c0_i32, %c0_i32_0 : i32, i32
  }
  func.func @transform_4(%arg0: i32) -> (i32, i32) {
    %c0_i32 = arith.constant 0 : i32
    %c0_i32_0 = arith.constant 0 : i32
    %c0_i32_1 = arith.constant 0 : i32
    return %c0_i32, %c0_i32_0 : i32, i32
  }
  func.func @transform_5(%arg0: i32) -> (i32, i32, i32) {
    %c0_i32 = arith.constant 0 : i32
    %c0_i32_0 = arith.constant 0 : i32
    %c0_i32_1 = arith.constant 0 : i32
    return %arg0, %c0_i32, %c0_i32_0 : i32, i32, i32
  }
}

module attributes {stable_mosaic.version = 11 : i64} {
  func.func @conv_kernel(%arg0: i32, %arg1: i32, %arg2: memref<4x5x17x32xbf16, #tpu.memory_space<vmem>>, %arg3: memref<9x32x64xbf16, #tpu.memory_space<vmem>>, %arg4: memref<1x4x4x64xbf16, #tpu.memory_space<vmem>>) attributes {dimension_semantics = [#tpu.dimension_semantics<parallel>, #tpu.dimension_semantics<parallel>], iteration_bounds = array<i64: 2, 1>, scalar_prefetch = 0 : i64, scratch_operands = 0 : i64, tpu.core_type = #tpu.core_type<tc>, window_params = [{transform_indices = @transform_0, window_bounds = array<i64: 4, 5, 17, 32>}, {transform_indices = @transform_1, window_bounds = array<i64: 9, 32, 64>}, {transform_indices = @transform_2, window_bounds = array<i64: 1, 4, 4, 64>}]} {
    %cst = arith.constant 0.000000e+00 : f32
    %0 = vector.broadcast %cst : f32 to vector<64x64xf32>
    %c0 = arith.constant 0 : index
    %c0_0 = arith.constant 0 : index
    %c0_1 = arith.constant 0 : index
    %c0_2 = arith.constant 0 : index
    %1 = vector.load %arg2[%c0, %c0_0, %c0_1, %c0_2] : memref<4x5x17x32xbf16, #tpu.memory_space<vmem>>, vector<1x4x16x32xbf16>
    %2 = vector.shape_cast %1 : vector<1x4x16x32xbf16> to vector<4x16x32xbf16>
    %3 = vector.shape_cast %2 : vector<4x16x32xbf16> to vector<64x32xbf16>
    %c0_3 = arith.constant 0 : index
    %c0_4 = arith.constant 0 : index
    %c0_5 = arith.constant 0 : index
    %4 = vector.load %arg3[%c0_3, %c0_4, %c0_5] : memref<9x32x64xbf16, #tpu.memory_space<vmem>>, vector<1x32x64xbf16>
    %5 = vector.shape_cast %4 : vector<1x32x64xbf16> to vector<32x64xbf16>
    %cst_6 = arith.constant dense<0.000000e+00> : vector<64x64xf32>
    %6 = tpu.matmul %3, %5, %cst_6 {dimension_numbers = #tpu.dot_dimension_numbers<[1], [0], [0], [1], [0, 0, 1, 1], [], []>} : vector<64x32xbf16>, vector<32x64xbf16>, vector<64x64xf32> -> vector<64x64xf32>
    %7 = arith.addf %0, %6 : vector<64x64xf32>
    %c1 = arith.constant 1 : index
    %c0_7 = arith.constant 0 : index
    %c0_8 = arith.constant 0 : index
    %c0_9 = arith.constant 0 : index
    %8 = vector.load %arg2[%c1, %c0_7, %c0_8, %c0_9] : memref<4x5x17x32xbf16, #tpu.memory_space<vmem>>, vector<1x4x16x32xbf16>
    %9 = vector.shape_cast %8 : vector<1x4x16x32xbf16> to vector<4x16x32xbf16>
    %10 = vector.shape_cast %9 : vector<4x16x32xbf16> to vector<64x32xbf16>
    %c1_10 = arith.constant 1 : index
    %c0_11 = arith.constant 0 : index
    %c0_12 = arith.constant 0 : index
    %11 = vector.load %arg3[%c1_10, %c0_11, %c0_12] : memref<9x32x64xbf16, #tpu.memory_space<vmem>>, vector<1x32x64xbf16>
    %12 = vector.shape_cast %11 : vector<1x32x64xbf16> to vector<32x64xbf16>
    %cst_13 = arith.constant dense<0.000000e+00> : vector<64x64xf32>
    %13 = tpu.matmul %10, %12, %cst_13 {dimension_numbers = #tpu.dot_dimension_numbers<[1], [0], [0], [1], [0, 0, 1, 1], [], []>} : vector<64x32xbf16>, vector<32x64xbf16>, vector<64x64xf32> -> vector<64x64xf32>
    %14 = arith.addf %7, %13 : vector<64x64xf32>
    %c0_14 = arith.constant 0 : index
    %c0_15 = arith.constant 0 : index
    %c1_16 = arith.constant 1 : index
    %c0_17 = arith.constant 0 : index
    %15 = vector.load %arg2[%c0_14, %c0_15, %c1_16, %c0_17] : memref<4x5x17x32xbf16, #tpu.memory_space<vmem>>, vector<1x4x16x32xbf16>
    %16 = vector.shape_cast %15 : vector<1x4x16x32xbf16> to vector<4x16x32xbf16>
    %17 = vector.shape_cast %16 : vector<4x16x32xbf16> to vector<64x32xbf16>
    %c2 = arith.constant 2 : index
    %c0_18 = arith.constant 0 : index
    %c0_19 = arith.constant 0 : index
    %18 = vector.load %arg3[%c2, %c0_18, %c0_19] : memref<9x32x64xbf16, #tpu.memory_space<vmem>>, vector<1x32x64xbf16>
    %19 = vector.shape_cast %18 : vector<1x32x64xbf16> to vector<32x64xbf16>
    %cst_20 = arith.constant dense<0.000000e+00> : vector<64x64xf32>
    %20 = tpu.matmul %17, %19, %cst_20 {dimension_numbers = #tpu.dot_dimension_numbers<[1], [0], [0], [1], [0, 0, 1, 1], [], []>} : vector<64x32xbf16>, vector<32x64xbf16>, vector<64x64xf32> -> vector<64x64xf32>
    %21 = arith.addf %14, %20 : vector<64x64xf32>
    %c2_21 = arith.constant 2 : index
    %c0_22 = arith.constant 0 : index
    %c0_23 = arith.constant 0 : index
    %c0_24 = arith.constant 0 : index
    %22 = vector.load %arg2[%c2_21, %c0_22, %c0_23, %c0_24] : memref<4x5x17x32xbf16, #tpu.memory_space<vmem>>, vector<1x4x16x32xbf16>
    %23 = vector.shape_cast %22 : vector<1x4x16x32xbf16> to vector<4x16x32xbf16>
    %24 = vector.shape_cast %23 : vector<4x16x32xbf16> to vector<64x32xbf16>
    %c3 = arith.constant 3 : index
    %c0_25 = arith.constant 0 : index
    %c0_26 = arith.constant 0 : index
    %25 = vector.load %arg3[%c3, %c0_25, %c0_26] : memref<9x32x64xbf16, #tpu.memory_space<vmem>>, vector<1x32x64xbf16>
    %26 = vector.shape_cast %25 : vector<1x32x64xbf16> to vector<32x64xbf16>
    %cst_27 = arith.constant dense<0.000000e+00> : vector<64x64xf32>
    %27 = tpu.matmul %24, %26, %cst_27 {dimension_numbers = #tpu.dot_dimension_numbers<[1], [0], [0], [1], [0, 0, 1, 1], [], []>} : vector<64x32xbf16>, vector<32x64xbf16>, vector<64x64xf32> -> vector<64x64xf32>
    %28 = arith.addf %21, %27 : vector<64x64xf32>
    %c3_28 = arith.constant 3 : index
    %c0_29 = arith.constant 0 : index
    %c0_30 = arith.constant 0 : index
    %c0_31 = arith.constant 0 : index
    %29 = vector.load %arg2[%c3_28, %c0_29, %c0_30, %c0_31] : memref<4x5x17x32xbf16, #tpu.memory_space<vmem>>, vector<1x4x16x32xbf16>
    %30 = vector.shape_cast %29 : vector<1x4x16x32xbf16> to vector<4x16x32xbf16>
    %31 = vector.shape_cast %30 : vector<4x16x32xbf16> to vector<64x32xbf16>
    %c4 = arith.constant 4 : index
    %c0_32 = arith.constant 0 : index
    %c0_33 = arith.constant 0 : index
    %32 = vector.load %arg3[%c4, %c0_32, %c0_33] : memref<9x32x64xbf16, #tpu.memory_space<vmem>>, vector<1x32x64xbf16>
    %33 = vector.shape_cast %32 : vector<1x32x64xbf16> to vector<32x64xbf16>
    %cst_34 = arith.constant dense<0.000000e+00> : vector<64x64xf32>
    %34 = tpu.matmul %31, %33, %cst_34 {dimension_numbers = #tpu.dot_dimension_numbers<[1], [0], [0], [1], [0, 0, 1, 1], [], []>} : vector<64x32xbf16>, vector<32x64xbf16>, vector<64x64xf32> -> vector<64x64xf32>
    %35 = arith.addf %28, %34 : vector<64x64xf32>
    %c2_35 = arith.constant 2 : index
    %c0_36 = arith.constant 0 : index
    %c1_37 = arith.constant 1 : index
    %c0_38 = arith.constant 0 : index
    %36 = vector.load %arg2[%c2_35, %c0_36, %c1_37, %c0_38] : memref<4x5x17x32xbf16, #tpu.memory_space<vmem>>, vector<1x4x16x32xbf16>
    %37 = vector.shape_cast %36 : vector<1x4x16x32xbf16> to vector<4x16x32xbf16>
    %38 = vector.shape_cast %37 : vector<4x16x32xbf16> to vector<64x32xbf16>
    %c5 = arith.constant 5 : index
    %c0_39 = arith.constant 0 : index
    %c0_40 = arith.constant 0 : index
    %39 = vector.load %arg3[%c5, %c0_39, %c0_40] : memref<9x32x64xbf16, #tpu.memory_space<vmem>>, vector<1x32x64xbf16>
    %40 = vector.shape_cast %39 : vector<1x32x64xbf16> to vector<32x64xbf16>
    %cst_41 = arith.constant dense<0.000000e+00> : vector<64x64xf32>
    %41 = tpu.matmul %38, %40, %cst_41 {dimension_numbers = #tpu.dot_dimension_numbers<[1], [0], [0], [1], [0, 0, 1, 1], [], []>} : vector<64x32xbf16>, vector<32x64xbf16>, vector<64x64xf32> -> vector<64x64xf32>
    %42 = arith.addf %35, %41 : vector<64x64xf32>
    %c0_42 = arith.constant 0 : index
    %c1_43 = arith.constant 1 : index
    %c0_44 = arith.constant 0 : index
    %c0_45 = arith.constant 0 : index
    %43 = vector.load %arg2[%c0_42, %c1_43, %c0_44, %c0_45] : memref<4x5x17x32xbf16, #tpu.memory_space<vmem>>, vector<1x4x16x32xbf16>
    %44 = vector.shape_cast %43 : vector<1x4x16x32xbf16> to vector<4x16x32xbf16>
    %45 = vector.shape_cast %44 : vector<4x16x32xbf16> to vector<64x32xbf16>
    %c6 = arith.constant 6 : index
    %c0_46 = arith.constant 0 : index
    %c0_47 = arith.constant 0 : index
    %46 = vector.load %arg3[%c6, %c0_46, %c0_47] : memref<9x32x64xbf16, #tpu.memory_space<vmem>>, vector<1x32x64xbf16>
    %47 = vector.shape_cast %46 : vector<1x32x64xbf16> to vector<32x64xbf16>
    %cst_48 = arith.constant dense<0.000000e+00> : vector<64x64xf32>
    %48 = tpu.matmul %45, %47, %cst_48 {dimension_numbers = #tpu.dot_dimension_numbers<[1], [0], [0], [1], [0, 0, 1, 1], [], []>} : vector<64x32xbf16>, vector<32x64xbf16>, vector<64x64xf32> -> vector<64x64xf32>
    %49 = arith.addf %42, %48 : vector<64x64xf32>
    %c1_49 = arith.constant 1 : index
    %c1_50 = arith.constant 1 : index
    %c0_51 = arith.constant 0 : index
    %c0_52 = arith.constant 0 : index
    %50 = vector.load %arg2[%c1_49, %c1_50, %c0_51, %c0_52] : memref<4x5x17x32xbf16, #tpu.memory_space<vmem>>, vector<1x4x16x32xbf16>
    %51 = vector.shape_cast %50 : vector<1x4x16x32xbf16> to vector<4x16x32xbf16>
    %52 = vector.shape_cast %51 : vector<4x16x32xbf16> to vector<64x32xbf16>
    %c7 = arith.constant 7 : index
    %c0_53 = arith.constant 0 : index
    %c0_54 = arith.constant 0 : index
    %53 = vector.load %arg3[%c7, %c0_53, %c0_54] : memref<9x32x64xbf16, #tpu.memory_space<vmem>>, vector<1x32x64xbf16>
    %54 = vector.shape_cast %53 : vector<1x32x64xbf16> to vector<32x64xbf16>
    %cst_55 = arith.constant dense<0.000000e+00> : vector<64x64xf32>
    %55 = tpu.matmul %52, %54, %cst_55 {dimension_numbers = #tpu.dot_dimension_numbers<[1], [0], [0], [1], [0, 0, 1, 1], [], []>} : vector<64x32xbf16>, vector<32x64xbf16>, vector<64x64xf32> -> vector<64x64xf32>
    %56 = arith.addf %49, %55 : vector<64x64xf32>
    %c0_56 = arith.constant 0 : index
    %c1_57 = arith.constant 1 : index
    %c1_58 = arith.constant 1 : index
    %c0_59 = arith.constant 0 : index
    %57 = vector.load %arg2[%c0_56, %c1_57, %c1_58, %c0_59] : memref<4x5x17x32xbf16, #tpu.memory_space<vmem>>, vector<1x4x16x32xbf16>
    %58 = vector.shape_cast %57 : vector<1x4x16x32xbf16> to vector<4x16x32xbf16>
    %59 = vector.shape_cast %58 : vector<4x16x32xbf16> to vector<64x32xbf16>
    %c8 = arith.constant 8 : index
    %c0_60 = arith.constant 0 : index
    %c0_61 = arith.constant 0 : index
    %60 = vector.load %arg3[%c8, %c0_60, %c0_61] : memref<9x32x64xbf16, #tpu.memory_space<vmem>>, vector<1x32x64xbf16>
    %61 = vector.shape_cast %60 : vector<1x32x64xbf16> to vector<32x64xbf16>
    %cst_62 = arith.constant dense<0.000000e+00> : vector<64x64xf32>
    %62 = tpu.matmul %59, %61, %cst_62 {dimension_numbers = #tpu.dot_dimension_numbers<[1], [0], [0], [1], [0, 0, 1, 1], [], []>} : vector<64x32xbf16>, vector<32x64xbf16>, vector<64x64xf32> -> vector<64x64xf32>
    %63 = arith.addf %56, %62 : vector<64x64xf32>
    %64 = vector.shape_cast %63 : vector<64x64xf32> to vector<4x16x64xf32>
    %65 = vector.extract_strided_slice %64 {offsets = [0, 0, 0], sizes = [4, 4, 64], strides = [1, 1, 1]} : vector<4x16x64xf32> to vector<4x4x64xf32>
    %66 = arith.truncf %65 : vector<4x4x64xf32> to vector<4x4x64xbf16>
    %c0_63 = arith.constant 0 : index
    %c0_64 = arith.constant 0 : index
    %c0_65 = arith.constant 0 : index
    %c0_66 = arith.constant 0 : index
    %67 = vector.load %arg4[%c0_63, %c0_64, %c0_65, %c0_66] : memref<1x4x4x64xbf16, #tpu.memory_space<vmem>>, vector<1x4x4x64xbf16>
    %68 = vector.shape_cast %67 : vector<1x4x4x64xbf16> to vector<4x4x64xbf16>
    %69 = vector.shape_cast %66 : vector<4x4x64xbf16> to vector<1x4x4x64xbf16>
    tpu.vector_store %arg4[%c0_63, %c0_64, %c0_65, %c0_66], %69 {strides = array<i32>} : memref<1x4x4x64xbf16, #tpu.memory_space<vmem>>, vector<1x4x4x64xbf16>,
    return
  }
  func.func @transform_0(%arg0: i32, %arg1: i32) -> (i32, i32, i32, i32) {
    %c0_i32 = arith.constant 0 : i32
    %c0_i32_0 = arith.constant 0 : i32
    %c0_i32_1 = arith.constant 0 : i32
    %c0_i32_2 = arith.constant 0 : i32
    return %arg0, %c0_i32, %c0_i32_0, %c0_i32_1 : i32, i32, i32, i32
  }
  func.func @transform_1(%arg0: i32, %arg1: i32) -> (i32, i32, i32) {
    %c0_i32 = arith.constant 0 : i32
    %c0_i32_0 = arith.constant 0 : i32
    %c0_i32_1 = arith.constant 0 : i32
    return %c0_i32, %c0_i32_0, %arg1 : i32, i32, i32
  }
  func.func @transform_2(%arg0: i32, %arg1: i32) -> (i32, i32, i32, i32) {
    %c0_i32 = arith.constant 0 : i32
    %c0_i32_0 = arith.constant 0 : i32
    %c0_i32_1 = arith.constant 0 : i32
    return %arg0, %c0_i32, %c0_i32_0, %arg1 : i32, i32, i32, i32
  }
}

module attributes {stable_mosaic.version = 11 : i64} {
  func.func @gn_relu_kernel(%arg0: i32, %arg1: memref<1x4x256xbf16, #tpu.memory_space<vmem>>, %arg2: memref<1x256xf32, #tpu.memory_space<vmem>>, %arg3: memref<1x256xf32, #tpu.memory_space<vmem>>, %arg4: memref<256x32xf32, #tpu.memory_space<vmem>>, %arg5: memref<32x256xf32, #tpu.memory_space<vmem>>, %arg6: memref<1x4x256xbf16, #tpu.memory_space<vmem>>) attributes {dimension_semantics = [#tpu.dimension_semantics<parallel>], iteration_bounds = array<i64: 2>, scalar_prefetch = 0 : i64, scratch_operands = 0 : i64, tpu.core_type = #tpu.core_type<tc>, window_params = [{transform_indices = @transform_0, window_bounds = array<i64: 1, 4, 256>}, {pipeline_mode = #tpu.pipeline_mode<synchronous>, transform_indices = @transform_1, window_bounds = array<i64: 1, 256>}, {pipeline_mode = #tpu.pipeline_mode<synchronous>, transform_indices = @transform_2, window_bounds = array<i64: 1, 256>}, {pipeline_mode = #tpu.pipeline_mode<synchronous>, transform_indices = @transform_3, window_bounds = array<i64: 256, 32>}, {pipeline_mode = #tpu.pipeline_mode<synchronous>, transform_indices = @transform_4, window_bounds = array<i64: 32, 256>}, {transform_indices = @transform_5, window_bounds = array<i64: 1, 4, 256>}]} {
    %c0 = arith.constant 0 : index
    %c0_0 = arith.constant 0 : index
    %c0_1 = arith.constant 0 : index
    %0 = vector.load %arg1[%c0, %c0_0, %c0_1] : memref<1x4x256xbf16, #tpu.memory_space<vmem>>, vector<1x4x256xbf16>
    %1 = arith.extf %0 : vector<1x4x256xbf16> to vector<1x4x256xf32>
    %c0_2 = arith.constant 0 : index
    %c0_3 = arith.constant 0 : index
    %2 = vector.load %arg4[%c0_2, %c0_3] : memref<256x32xf32, #tpu.memory_space<vmem>>, vector<256x32xf32>
    %c0_4 = arith.constant 0 : index
    %c0_5 = arith.constant 0 : index
    %3 = vector.load %arg5[%c0_4, %c0_5] : memref<32x256xf32, #tpu.memory_space<vmem>>, vector<32x256xf32>
    %cst = arith.constant dense<0.000000e+00> : vector<1x256xf32>
    %4 = vector.multi_reduction <add>, %1, %cst [1] : vector<1x4x256xf32> to vector<1x256xf32>
    %cst_6 = arith.constant dense<0.000000e+00> : vector<1x32xf32>
    %5 = tpu.matmul %4, %2, %cst_6 {dimension_numbers = #tpu.dot_dimension_numbers<[1], [0], [0], [1], [0, 0, 1, 1], [], []>} : vector<1x256xf32>, vector<256x32xf32>, vector<1x32xf32> -> vector<1x32xf32>
    %cst_7 = arith.constant 3.200000e+01 : f32
    %6 = vector.broadcast %cst_7 : f32 to vector<1x32xf32>
    %7 = arith.divf %5, %6 : vector<1x32xf32>
    %cst_8 = arith.constant dense<0.000000e+00> : vector<1x256xf32>
    %8 = tpu.matmul %7, %3, %cst_8 {dimension_numbers = #tpu.dot_dimension_numbers<[1], [0], [0], [1], [0, 0, 1, 1], [], []>} : vector<1x32xf32>, vector<32x256xf32>, vector<1x256xf32> -> vector<1x256xf32>
    %9 = vector.shape_cast %8 : vector<1x256xf32> to vector<1x1x256xf32>
    %10 = vector.broadcast %9 : vector<1x1x256xf32> to vector<1x4x256xf32>
    %11 = arith.subf %1, %10 : vector<1x4x256xf32>
    %12 = arith.mulf %11, %11 : vector<1x4x256xf32>
    %cst_9 = arith.constant dense<0.000000e+00> : vector<1x256xf32>
    %13 = vector.multi_reduction <add>, %12, %cst_9 [1] : vector<1x4x256xf32> to vector<1x256xf32>
    %cst_10 = arith.constant dense<0.000000e+00> : vector<1x32xf32>
    %14 = tpu.matmul %13, %2, %cst_10 {dimension_numbers = #tpu.dot_dimension_numbers<[1], [0], [0], [1], [0, 0, 1, 1], [], []>} : vector<1x256xf32>, vector<256x32xf32>, vector<1x32xf32> -> vector<1x32xf32>
    %cst_11 = arith.constant 3.200000e+01 : f32
    %15 = vector.broadcast %cst_11 : f32 to vector<1x32xf32>
    %16 = arith.divf %14, %15 : vector<1x32xf32>
    %cst_12 = arith.constant 9.99999974E-6 : f32
    %17 = vector.broadcast %cst_12 : f32 to vector<1x32xf32>
    %18 = arith.addf %16, %17 : vector<1x32xf32>
    %19 = math.rsqrt %18 : vector<1x32xf32>
    %cst_13 = arith.constant dense<0.000000e+00> : vector<1x256xf32>
    %20 = tpu.matmul %19, %3, %cst_13 {dimension_numbers = #tpu.dot_dimension_numbers<[1], [0], [0], [1], [0, 0, 1, 1], [], []>} : vector<1x32xf32>, vector<32x256xf32>, vector<1x256xf32> -> vector<1x256xf32>
    %c0_14 = arith.constant 0 : index
    %c0_15 = arith.constant 0 : index
    %21 = vector.load %arg2[%c0_14, %c0_15] : memref<1x256xf32, #tpu.memory_space<vmem>>, vector<1x256xf32>
    %22 = arith.mulf %20, %21 : vector<1x256xf32>
    %23 = vector.shape_cast %22 : vector<1x256xf32> to vector<1x1x256xf32>
    %c0_16 = arith.constant 0 : index
    %c0_17 = arith.constant 0 : index
    %24 = vector.load %arg3[%c0_16, %c0_17] : memref<1x256xf32, #tpu.memory_space<vmem>>, vector<1x256xf32>
    %25 = vector.shape_cast %24 : vector<1x256xf32> to vector<1x1x256xf32>
    %26 = vector.broadcast %23 : vector<1x1x256xf32> to vector<1x4x256xf32>
    %27 = arith.mulf %11, %26 : vector<1x4x256xf32>
    %28 = vector.broadcast %25 : vector<1x1x256xf32> to vector<1x4x256xf32>
    %29 = arith.addf %27, %28 : vector<1x4x256xf32>
    %cst_18 = arith.constant 0.000000e+00 : f32
    %30 = vector.broadcast %cst_18 : f32 to vector<1x4x256xf32>
    %31 = arith.maximumf %29, %30 : vector<1x4x256xf32>
    %32 = arith.truncf %31 : vector<1x4x256xf32> to vector<1x4x256xbf16>
    %c0_19 = arith.constant 0 : index
    %c0_20 = arith.constant 0 : index
    %c0_21 = arith.constant 0 : index
    %33 = vector.load %arg6[%c0_19, %c0_20, %c0_21] : memref<1x4x256xbf16, #tpu.memory_space<vmem>>, vector<1x4x256xbf16>
    tpu.vector_store %arg6[%c0_19, %c0_20, %c0_21], %32 {strides = array<i32>} : memref<1x4x256xbf16, #tpu.memory_space<vmem>>, vector<1x4x256xbf16>,
    return
  }
  func.func @transform_0(%arg0: i32) -> (i32, i32, i32) {
    %c0_i32 = arith.constant 0 : i32
    %c0_i32_0 = arith.constant 0 : i32
    %c0_i32_1 = arith.constant 0 : i32
    return %arg0, %c0_i32, %c0_i32_0 : i32, i32, i32
  }
  func.func @transform_1(%arg0: i32) -> (i32, i32) {
    %c0_i32 = arith.constant 0 : i32
    %c0_i32_0 = arith.constant 0 : i32
    %c0_i32_1 = arith.constant 0 : i32
    return %c0_i32, %c0_i32_0 : i32, i32
  }
  func.func @transform_2(%arg0: i32) -> (i32, i32) {
    %c0_i32 = arith.constant 0 : i32
    %c0_i32_0 = arith.constant 0 : i32
    %c0_i32_1 = arith.constant 0 : i32
    return %c0_i32, %c0_i32_0 : i32, i32
  }
  func.func @transform_3(%arg0: i32) -> (i32, i32) {
    %c0_i32 = arith.constant 0 : i32
    %c0_i32_0 = arith.constant 0 : i32
    %c0_i32_1 = arith.constant 0 : i32
    return %c0_i32, %c0_i32_0 : i32, i32
  }
  func.func @transform_4(%arg0: i32) -> (i32, i32) {
    %c0_i32 = arith.constant 0 : i32
    %c0_i32_0 = arith.constant 0 : i32
    %c0_i32_1 = arith.constant 0 : i32
    return %c0_i32, %c0_i32_0 : i32, i32
  }
  func.func @transform_5(%arg0: i32) -> (i32, i32, i32) {
    %c0_i32 = arith.constant 0 : i32
    %c0_i32_0 = arith.constant 0 : i32
    %c0_i32_1 = arith.constant 0 : i32
    return %arg0, %c0_i32, %c0_i32_0 : i32, i32, i32
  }
}

module attributes {stable_mosaic.version = 11 : i64} {
  func.func @conv_kernel(%arg0: i32, %arg1: i32, %arg2: memref<1x6x18x64xbf16, #tpu.memory_space<vmem>>, %arg3: memref<9x64x64xbf16, #tpu.memory_space<vmem>>, %arg4: memref<1x4x4x64xf32, #tpu.memory_space<vmem>>, %arg5: memref<1x4x4x64xf32, #tpu.memory_space<vmem>>) attributes {dimension_semantics = [#tpu.dimension_semantics<parallel>, #tpu.dimension_semantics<parallel>], iteration_bounds = array<i64: 2, 1>, scalar_prefetch = 0 : i64, scratch_operands = 0 : i64, tpu.core_type = #tpu.core_type<tc>, window_params = [{transform_indices = @transform_0, window_bounds = array<i64: 1, 6, 18, 64>}, {transform_indices = @transform_1, window_bounds = array<i64: 9, 64, 64>}, {transform_indices = @transform_2, window_bounds = array<i64: 1, 4, 4, 64>}, {transform_indices = @transform_3, window_bounds = array<i64: 1, 4, 4, 64>}]} {
    %cst = arith.constant 0.000000e+00 : f32
    %0 = vector.broadcast %cst : f32 to vector<64x64xf32>
    %c0 = arith.constant 0 : index
    %c0_0 = arith.constant 0 : index
    %c0_1 = arith.constant 0 : index
    %c0_2 = arith.constant 0 : index
    %1 = vector.load %arg2[%c0, %c0_0, %c0_1, %c0_2] : memref<1x6x18x64xbf16, #tpu.memory_space<vmem>>, vector<1x4x16x64xbf16>
    %2 = vector.shape_cast %1 : vector<1x4x16x64xbf16> to vector<4x16x64xbf16>
    %3 = vector.shape_cast %2 : vector<4x16x64xbf16> to vector<64x64xbf16>
    %c0_3 = arith.constant 0 : index
    %c0_4 = arith.constant 0 : index
    %c0_5 = arith.constant 0 : index
    %4 = vector.load %arg3[%c0_3, %c0_4, %c0_5] : memref<9x64x64xbf16, #tpu.memory_space<vmem>>, vector<1x64x64xbf16>
    %5 = vector.shape_cast %4 : vector<1x64x64xbf16> to vector<64x64xbf16>
    %cst_6 = arith.constant dense<0.000000e+00> : vector<64x64xf32>
    %6 = tpu.matmul %3, %5, %cst_6 {dimension_numbers = #tpu.dot_dimension_numbers<[1], [0], [0], [1], [0, 0, 1, 1], [], []>} : vector<64x64xbf16>, vector<64x64xbf16>, vector<64x64xf32> -> vector<64x64xf32>
    %7 = arith.addf %0, %6 : vector<64x64xf32>
    %c0_7 = arith.constant 0 : index
    %c0_8 = arith.constant 0 : index
    %c1 = arith.constant 1 : index
    %c0_9 = arith.constant 0 : index
    %8 = vector.load %arg2[%c0_7, %c0_8, %c1, %c0_9] : memref<1x6x18x64xbf16, #tpu.memory_space<vmem>>, vector<1x4x16x64xbf16>
    %9 = vector.shape_cast %8 : vector<1x4x16x64xbf16> to vector<4x16x64xbf16>
    %10 = vector.shape_cast %9 : vector<4x16x64xbf16> to vector<64x64xbf16>
    %c1_10 = arith.constant 1 : index
    %c0_11 = arith.constant 0 : index
    %c0_12 = arith.constant 0 : index
    %11 = vector.load %arg3[%c1_10, %c0_11, %c0_12] : memref<9x64x64xbf16, #tpu.memory_space<vmem>>, vector<1x64x64xbf16>
    %12 = vector.shape_cast %11 : vector<1x64x64xbf16> to vector<64x64xbf16>
    %cst_13 = arith.constant dense<0.000000e+00> : vector<64x64xf32>
    %13 = tpu.matmul %10, %12, %cst_13 {dimension_numbers = #tpu.dot_dimension_numbers<[1], [0], [0], [1], [0, 0, 1, 1], [], []>} : vector<64x64xbf16>, vector<64x64xbf16>, vector<64x64xf32> -> vector<64x64xf32>
    %14 = arith.addf %7, %13 : vector<64x64xf32>
    %c0_14 = arith.constant 0 : index
    %c0_15 = arith.constant 0 : index
    %c2 = arith.constant 2 : index
    %c0_16 = arith.constant 0 : index
    %15 = vector.load %arg2[%c0_14, %c0_15, %c2, %c0_16] : memref<1x6x18x64xbf16, #tpu.memory_space<vmem>>, vector<1x4x16x64xbf16>
    %16 = vector.shape_cast %15 : vector<1x4x16x64xbf16> to vector<4x16x64xbf16>
    %17 = vector.shape_cast %16 : vector<4x16x64xbf16> to vector<64x64xbf16>
    %c2_17 = arith.constant 2 : index
    %c0_18 = arith.constant 0 : index
    %c0_19 = arith.constant 0 : index
    %18 = vector.load %arg3[%c2_17, %c0_18, %c0_19] : memref<9x64x64xbf16, #tpu.memory_space<vmem>>, vector<1x64x64xbf16>
    %19 = vector.shape_cast %18 : vector<1x64x64xbf16> to vector<64x64xbf16>
    %cst_20 = arith.constant dense<0.000000e+00> : vector<64x64xf32>
    %20 = tpu.matmul %17, %19, %cst_20 {dimension_numbers = #tpu.dot_dimension_numbers<[1], [0], [0], [1], [0, 0, 1, 1], [], []>} : vector<64x64xbf16>, vector<64x64xbf16>, vector<64x64xf32> -> vector<64x64xf32>
    %21 = arith.addf %14, %20 : vector<64x64xf32>
    %c0_21 = arith.constant 0 : index
    %c1_22 = arith.constant 1 : index
    %c0_23 = arith.constant 0 : index
    %c0_24 = arith.constant 0 : index
    %22 = vector.load %arg2[%c0_21, %c1_22, %c0_23, %c0_24] : memref<1x6x18x64xbf16, #tpu.memory_space<vmem>>, vector<1x4x16x64xbf16>
    %23 = vector.shape_cast %22 : vector<1x4x16x64xbf16> to vector<4x16x64xbf16>
    %24 = vector.shape_cast %23 : vector<4x16x64xbf16> to vector<64x64xbf16>
    %c3 = arith.constant 3 : index
    %c0_25 = arith.constant 0 : index
    %c0_26 = arith.constant 0 : index
    %25 = vector.load %arg3[%c3, %c0_25, %c0_26] : memref<9x64x64xbf16, #tpu.memory_space<vmem>>, vector<1x64x64xbf16>
    %26 = vector.shape_cast %25 : vector<1x64x64xbf16> to vector<64x64xbf16>
    %cst_27 = arith.constant dense<0.000000e+00> : vector<64x64xf32>
    %27 = tpu.matmul %24, %26, %cst_27 {dimension_numbers = #tpu.dot_dimension_numbers<[1], [0], [0], [1], [0, 0, 1, 1], [], []>} : vector<64x64xbf16>, vector<64x64xbf16>, vector<64x64xf32> -> vector<64x64xf32>
    %28 = arith.addf %21, %27 : vector<64x64xf32>
    %c0_28 = arith.constant 0 : index
    %c1_29 = arith.constant 1 : index
    %c1_30 = arith.constant 1 : index
    %c0_31 = arith.constant 0 : index
    %29 = vector.load %arg2[%c0_28, %c1_29, %c1_30, %c0_31] : memref<1x6x18x64xbf16, #tpu.memory_space<vmem>>, vector<1x4x16x64xbf16>
    %30 = vector.shape_cast %29 : vector<1x4x16x64xbf16> to vector<4x16x64xbf16>
    %31 = vector.shape_cast %30 : vector<4x16x64xbf16> to vector<64x64xbf16>
    %c4 = arith.constant 4 : index
    %c0_32 = arith.constant 0 : index
    %c0_33 = arith.constant 0 : index
    %32 = vector.load %arg3[%c4, %c0_32, %c0_33] : memref<9x64x64xbf16, #tpu.memory_space<vmem>>, vector<1x64x64xbf16>
    %33 = vector.shape_cast %32 : vector<1x64x64xbf16> to vector<64x64xbf16>
    %cst_34 = arith.constant dense<0.000000e+00> : vector<64x64xf32>
    %34 = tpu.matmul %31, %33, %cst_34 {dimension_numbers = #tpu.dot_dimension_numbers<[1], [0], [0], [1], [0, 0, 1, 1], [], []>} : vector<64x64xbf16>, vector<64x64xbf16>, vector<64x64xf32> -> vector<64x64xf32>
    %35 = arith.addf %28, %34 : vector<64x64xf32>
    %c0_35 = arith.constant 0 : index
    %c1_36 = arith.constant 1 : index
    %c2_37 = arith.constant 2 : index
    %c0_38 = arith.constant 0 : index
    %36 = vector.load %arg2[%c0_35, %c1_36, %c2_37, %c0_38] : memref<1x6x18x64xbf16, #tpu.memory_space<vmem>>, vector<1x4x16x64xbf16>
    %37 = vector.shape_cast %36 : vector<1x4x16x64xbf16> to vector<4x16x64xbf16>
    %38 = vector.shape_cast %37 : vector<4x16x64xbf16> to vector<64x64xbf16>
    %c5 = arith.constant 5 : index
    %c0_39 = arith.constant 0 : index
    %c0_40 = arith.constant 0 : index
    %39 = vector.load %arg3[%c5, %c0_39, %c0_40] : memref<9x64x64xbf16, #tpu.memory_space<vmem>>, vector<1x64x64xbf16>
    %40 = vector.shape_cast %39 : vector<1x64x64xbf16> to vector<64x64xbf16>
    %cst_41 = arith.constant dense<0.000000e+00> : vector<64x64xf32>
    %41 = tpu.matmul %38, %40, %cst_41 {dimension_numbers = #tpu.dot_dimension_numbers<[1], [0], [0], [1], [0, 0, 1, 1], [], []>} : vector<64x64xbf16>, vector<64x64xbf16>, vector<64x64xf32> -> vector<64x64xf32>
    %42 = arith.addf %35, %41 : vector<64x64xf32>
    %c0_42 = arith.constant 0 : index
    %c2_43 = arith.constant 2 : index
    %c0_44 = arith.constant 0 : index
    %c0_45 = arith.constant 0 : index
    %43 = vector.load %arg2[%c0_42, %c2_43, %c0_44, %c0_45] : memref<1x6x18x64xbf16, #tpu.memory_space<vmem>>, vector<1x4x16x64xbf16>
    %44 = vector.shape_cast %43 : vector<1x4x16x64xbf16> to vector<4x16x64xbf16>
    %45 = vector.shape_cast %44 : vector<4x16x64xbf16> to vector<64x64xbf16>
    %c6 = arith.constant 6 : index
    %c0_46 = arith.constant 0 : index
    %c0_47 = arith.constant 0 : index
    %46 = vector.load %arg3[%c6, %c0_46, %c0_47] : memref<9x64x64xbf16, #tpu.memory_space<vmem>>, vector<1x64x64xbf16>
    %47 = vector.shape_cast %46 : vector<1x64x64xbf16> to vector<64x64xbf16>
    %cst_48 = arith.constant dense<0.000000e+00> : vector<64x64xf32>
    %48 = tpu.matmul %45, %47, %cst_48 {dimension_numbers = #tpu.dot_dimension_numbers<[1], [0], [0], [1], [0, 0, 1, 1], [], []>} : vector<64x64xbf16>, vector<64x64xbf16>, vector<64x64xf32> -> vector<64x64xf32>
    %49 = arith.addf %42, %48 : vector<64x64xf32>
    %c0_49 = arith.constant 0 : index
    %c2_50 = arith.constant 2 : index
    %c1_51 = arith.constant 1 : index
    %c0_52 = arith.constant 0 : index
    %50 = vector.load %arg2[%c0_49, %c2_50, %c1_51, %c0_52] : memref<1x6x18x64xbf16, #tpu.memory_space<vmem>>, vector<1x4x16x64xbf16>
    %51 = vector.shape_cast %50 : vector<1x4x16x64xbf16> to vector<4x16x64xbf16>
    %52 = vector.shape_cast %51 : vector<4x16x64xbf16> to vector<64x64xbf16>
    %c7 = arith.constant 7 : index
    %c0_53 = arith.constant 0 : index
    %c0_54 = arith.constant 0 : index
    %53 = vector.load %arg3[%c7, %c0_53, %c0_54] : memref<9x64x64xbf16, #tpu.memory_space<vmem>>, vector<1x64x64xbf16>
    %54 = vector.shape_cast %53 : vector<1x64x64xbf16> to vector<64x64xbf16>
    %cst_55 = arith.constant dense<0.000000e+00> : vector<64x64xf32>
    %55 = tpu.matmul %52, %54, %cst_55 {dimension_numbers = #tpu.dot_dimension_numbers<[1], [0], [0], [1], [0, 0, 1, 1], [], []>} : vector<64x64xbf16>, vector<64x64xbf16>, vector<64x64xf32> -> vector<64x64xf32>
    %56 = arith.addf %49, %55 : vector<64x64xf32>
    %c0_56 = arith.constant 0 : index
    %c2_57 = arith.constant 2 : index
    %c2_58 = arith.constant 2 : index
    %c0_59 = arith.constant 0 : index
    %57 = vector.load %arg2[%c0_56, %c2_57, %c2_58, %c0_59] : memref<1x6x18x64xbf16, #tpu.memory_space<vmem>>, vector<1x4x16x64xbf16>
    %58 = vector.shape_cast %57 : vector<1x4x16x64xbf16> to vector<4x16x64xbf16>
    %59 = vector.shape_cast %58 : vector<4x16x64xbf16> to vector<64x64xbf16>
    %c8 = arith.constant 8 : index
    %c0_60 = arith.constant 0 : index
    %c0_61 = arith.constant 0 : index
    %60 = vector.load %arg3[%c8, %c0_60, %c0_61] : memref<9x64x64xbf16, #tpu.memory_space<vmem>>, vector<1x64x64xbf16>
    %61 = vector.shape_cast %60 : vector<1x64x64xbf16> to vector<64x64xbf16>
    %cst_62 = arith.constant dense<0.000000e+00> : vector<64x64xf32>
    %62 = tpu.matmul %59, %61, %cst_62 {dimension_numbers = #tpu.dot_dimension_numbers<[1], [0], [0], [1], [0, 0, 1, 1], [], []>} : vector<64x64xbf16>, vector<64x64xbf16>, vector<64x64xf32> -> vector<64x64xf32>
    %63 = arith.addf %56, %62 : vector<64x64xf32>
    %64 = vector.shape_cast %63 : vector<64x64xf32> to vector<4x16x64xf32>
    %65 = vector.extract_strided_slice %64 {offsets = [0, 0, 0], sizes = [4, 4, 64], strides = [1, 1, 1]} : vector<4x16x64xf32> to vector<4x4x64xf32>
    %c0_63 = arith.constant 0 : index
    %c0_64 = arith.constant 0 : index
    %c0_65 = arith.constant 0 : index
    %c0_66 = arith.constant 0 : index
    %66 = vector.load %arg4[%c0_63, %c0_64, %c0_65, %c0_66] : memref<1x4x4x64xf32, #tpu.memory_space<vmem>>, vector<1x4x4x64xf32>
    %67 = vector.shape_cast %66 : vector<1x4x4x64xf32> to vector<4x4x64xf32>
    %68 = arith.addf %65, %67 : vector<4x4x64xf32>
    %c0_67 = arith.constant 0 : index
    %c0_68 = arith.constant 0 : index
    %c0_69 = arith.constant 0 : index
    %c0_70 = arith.constant 0 : index
    %69 = vector.load %arg5[%c0_67, %c0_68, %c0_69, %c0_70] : memref<1x4x4x64xf32, #tpu.memory_space<vmem>>, vector<1x4x4x64xf32>
    %70 = vector.shape_cast %69 : vector<1x4x4x64xf32> to vector<4x4x64xf32>
    %71 = vector.shape_cast %68 : vector<4x4x64xf32> to vector<1x4x4x64xf32>
    tpu.vector_store %arg5[%c0_67, %c0_68, %c0_69, %c0_70], %71 {strides = array<i32>} : memref<1x4x4x64xf32, #tpu.memory_space<vmem>>, vector<1x4x4x64xf32>,
    return
  }
  func.func @transform_0(%arg0: i32, %arg1: i32) -> (i32, i32, i32, i32) {
    %c0_i32 = arith.constant 0 : i32
    %c0_i32_0 = arith.constant 0 : i32
    %c0_i32_1 = arith.constant 0 : i32
    %c0_i32_2 = arith.constant 0 : i32
    return %arg0, %c0_i32, %c0_i32_0, %c0_i32_1 : i32, i32, i32, i32
  }
  func.func @transform_1(%arg0: i32, %arg1: i32) -> (i32, i32, i32) {
    %c0_i32 = arith.constant 0 : i32
    %c0_i32_0 = arith.constant 0 : i32
    %c0_i32_1 = arith.constant 0 : i32
    return %c0_i32, %c0_i32_0, %arg1 : i32, i32, i32
  }
  func.func @transform_2(%arg0: i32, %arg1: i32) -> (i32, i32, i32, i32) {
    %c0_i32 = arith.constant 0 : i32
    %c0_i32_0 = arith.constant 0 : i32
    %c0_i32_1 = arith.constant 0 : i32
    return %arg0, %c0_i32, %c0_i32_0, %arg1 : i32, i32, i32, i32
  }
  func.func @transform_3(%arg0: i32, %arg1: i32) -> (i32, i32, i32, i32) {
    %c0_i32 = arith.constant 0 : i32
    %c0_i32_0 = arith.constant 0 : i32
    %c0_i32_1 = arith.constant 0 : i32
    return %arg0, %c0_i32, %c0_i32_0, %arg1 : i32, i32, i32, i32
  }
}

module attributes {stable_mosaic.version = 11 : i64} {
  func.func @conv_kernel(%arg0: i32, %arg1: i32, %arg2: memref<4x5x17x32xbf16, #tpu.memory_space<vmem>>, %arg3: memref<1x32x64xbf16, #tpu.memory_space<vmem>>, %arg4: memref<1x4x4x64xf32, #tpu.memory_space<vmem>>) attributes {dimension_semantics = [#tpu.dimension_semantics<parallel>, #tpu.dimension_semantics<parallel>], iteration_bounds = array<i64: 2, 1>, scalar_prefetch = 0 : i64, scratch_operands = 0 : i64, tpu.core_type = #tpu.core_type<tc>, window_params = [{transform_indices = @transform_0, window_bounds = array<i64: 4, 5, 17, 32>}, {transform_indices = @transform_1, window_bounds = array<i64: 1, 32, 64>}, {transform_indices = @transform_2, window_bounds = array<i64: 1, 4, 4, 64>}]} {
    %cst = arith.constant 0.000000e+00 : f32
    %0 = vector.broadcast %cst : f32 to vector<64x64xf32>
    %c3 = arith.constant 3 : index
    %c0 = arith.constant 0 : index
    %c0_0 = arith.constant 0 : index
    %c0_1 = arith.constant 0 : index
    %1 = vector.load %arg2[%c3, %c0, %c0_0, %c0_1] : memref<4x5x17x32xbf16, #tpu.memory_space<vmem>>, vector<1x4x16x32xbf16>
    %2 = vector.shape_cast %1 : vector<1x4x16x32xbf16> to vector<4x16x32xbf16>
    %3 = vector.shape_cast %2 : vector<4x16x32xbf16> to vector<64x32xbf16>
    %c0_2 = arith.constant 0 : index
    %c0_3 = arith.constant 0 : index
    %c0_4 = arith.constant 0 : index
    %4 = vector.load %arg3[%c0_2, %c0_3, %c0_4] : memref<1x32x64xbf16, #tpu.memory_space<vmem>>, vector<1x32x64xbf16>
    %5 = vector.shape_cast %4 : vector<1x32x64xbf16> to vector<32x64xbf16>
    %cst_5 = arith.constant dense<0.000000e+00> : vector<64x64xf32>
    %6 = tpu.matmul %3, %5, %cst_5 {dimension_numbers = #tpu.dot_dimension_numbers<[1], [0], [0], [1], [0, 0, 1, 1], [], []>} : vector<64x32xbf16>, vector<32x64xbf16>, vector<64x64xf32> -> vector<64x64xf32>
    %7 = arith.addf %0, %6 : vector<64x64xf32>
    %8 = vector.shape_cast %7 : vector<64x64xf32> to vector<4x16x64xf32>
    %9 = vector.extract_strided_slice %8 {offsets = [0, 0, 0], sizes = [4, 4, 64], strides = [1, 1, 1]} : vector<4x16x64xf32> to vector<4x4x64xf32>
    %c0_6 = arith.constant 0 : index
    %c0_7 = arith.constant 0 : index
    %c0_8 = arith.constant 0 : index
    %c0_9 = arith.constant 0 : index
    %10 = vector.load %arg4[%c0_6, %c0_7, %c0_8, %c0_9] : memref<1x4x4x64xf32, #tpu.memory_space<vmem>>, vector<1x4x4x64xf32>
    %11 = vector.shape_cast %10 : vector<1x4x4x64xf32> to vector<4x4x64xf32>
    %12 = vector.shape_cast %9 : vector<4x4x64xf32> to vector<1x4x4x64xf32>
    tpu.vector_store %arg4[%c0_6, %c0_7, %c0_8, %c0_9], %12 {strides = array<i32>} : memref<1x4x4x64xf32, #tpu.memory_space<vmem>>, vector<1x4x4x64xf32>,
    return
  }
  func.func @transform_0(%arg0: i32, %arg1: i32) -> (i32, i32, i32, i32) {
    %c0_i32 = arith.constant 0 : i32
    %c0_i32_0 = arith.constant 0 : i32
    %c0_i32_1 = arith.constant 0 : i32
    %c0_i32_2 = arith.constant 0 : i32
    return %arg0, %c0_i32, %c0_i32_0, %c0_i32_1 : i32, i32, i32, i32
  }
  func.func @transform_1(%arg0: i32, %arg1: i32) -> (i32, i32, i32) {
    %c0_i32 = arith.constant 0 : i32
    %c0_i32_0 = arith.constant 0 : i32
    %c0_i32_1 = arith.constant 0 : i32
    return %c0_i32, %c0_i32_0, %arg1 : i32, i32, i32
  }
  func.func @transform_2(%arg0: i32, %arg1: i32) -> (i32, i32, i32, i32) {
    %c0_i32 = arith.constant 0 : i32
    %c0_i32_0 = arith.constant 0 : i32
    %c0_i32_1 = arith.constant 0 : i32
    return %arg0, %c0_i32, %c0_i32_0, %arg1 : i32, i32, i32, i32
  }
}

</mosaic_0001>

<llo_original>
// kernel: tile.34
$region0: #{tile.34}
  %s0 = inlined_call_operand.vmem [shape: f32[8,32,32], index: 0, kind: input, shape index: {}]
  %s1 = inlined_call_operand.vmem [shape: f32[256,32], index: 1, kind: output, shape index: {}]
  %v2 = vld [vmem:[%s0] ss:$4 sm:$0xff]
  %vm3 = vcmask 261120
  %4 = vst.msk [vmem:[%s1] ss:$8 sm:$0x3] %vm3, %v2
  %s5 = scalar_lea.vmem %s1, 4294967281
  %6 = vst.msk [vmem:[%s5] ss:$8 sm:$0xc] %vm3, %v2
  %s7 = scalar_lea.vmem %s1, 4294967266
  %8 = vst.msk [vmem:[%s7] ss:$8 sm:$0x30] %vm3, %v2
  %s9 = scalar_lea.vmem %s1, 4294967251
  %10 = vst.msk [vmem:[%s9] ss:$8 sm:$0xc0] %vm3, %v2
  %s11 = scalar_lea.vmem %s0, 32
  %v12 = vld [vmem:[%s11] ss:$4 sm:$0xff]
  %vm13 = vcmask 261120
  %s14 = scalar_lea.vmem %s1, 4
  %15 = vst.msk [vmem:[%s14] ss:$8 sm:$0x3] %vm13, %v12
  %s16 = scalar_lea.vmem %s1, 4294967285
  %17 = vst.msk [vmem:[%s16] ss:$8 sm:$0xc] %vm13, %v12
  %s18 = scalar_lea.vmem %s1, 4294967270
  %19 = vst.msk [vmem:[%s18] ss:$8 sm:$0x30] %vm13, %v12
  %s20 = scalar_lea.vmem %s1, 4294967255
  %21 = vst.msk [vmem:[%s20] ss:$8 sm:$0xc0] %vm13, %v12
  %s22 = scalar_lea.vmem %s0, 64
  %v23 = vld [vmem:[%s22] ss:$4 sm:$0xff]
  %vm24 = vcmask 261120
  %s25 = scalar_lea.vmem %s1, 16
  %26 = vst.msk [vmem:[%s25] ss:$8 sm:$0x3] %vm24, %v23
  %s27 = scalar_lea.vmem %s1, 1
  %28 = vst.msk [vmem:[%s27] ss:$8 sm:$0xc] %vm24, %v23
  %s29 = scalar_lea.vmem %s1, 4294967282
  %30 = vst.msk [vmem:[%s29] ss:$8 sm:$0x30] %vm24, %v23
  %s31 = scalar_lea.vmem %s1, 4294967267
  %32 = vst.msk [vmem:[%s31] ss:$8 sm:$0xc0] %vm24, %v23
  %s33 = scalar_lea.vmem %s0, 96
  %v34 = vld [vmem:[%s33] ss:$4 sm:$0xff]
  %vm35 = vcmask 261120
  %s36 = scalar_lea.vmem %s1, 20
  %37 = vst.msk [vmem:[%s36] ss:$8 sm:$0x3] %vm35, %v34
  %s38 = scalar_lea.vmem %s1, 5
  %39 = vst.msk [vmem:[%s38] ss:$8 sm:$0xc] %vm35, %v34
  %s40 = scalar_lea.vmem %s1, 4294967286
  %41 = vst.msk [vmem:[%s40] ss:$8 sm:$0x30] %vm35, %v34
  %s42 = scalar_lea.vmem %s1, 4294967271
  %43 = vst.msk [vmem:[%s42] ss:$8 sm:$0xc0] %vm35, %v34
  %s44 = scalar_lea.vmem %s0, 128
  %v45 = vld [vmem:[%s44] ss:$4 sm:$0xff]
  %vm46 = vcmask 261120
  %s47 = scalar_lea.vmem %s1, 32
  %48 = vst.msk [vmem:[%s47] ss:$8 sm:$0x3] %vm46, %v45
  %s49 = scalar_lea.vmem %s1, 17
  %50 = vst.msk [vmem:[%s49] ss:$8 sm:$0xc] %vm46, %v45
  %s51 = scalar_lea.vmem %s1, 2
  %52 = vst.msk [vmem:[%s51] ss:$8 sm:$0x30] %vm46, %v45
  %s53 = scalar_lea.vmem %s1, 4294967283
  %54 = vst.msk [vmem:[%s53] ss:$8 sm:$0xc0] %vm46, %v45
  %s55 = scalar_lea.vmem %s0, 160
  %v56 = vld [vmem:[%s55] ss:$4 sm:$0xff]
  %vm57 = vcmask 261120
  %s58 = scalar_lea.vmem %s1, 36
  %59 = vst.msk [vmem:[%s58] ss:$8 sm:$0x3] %vm57, %v56
  %s60 = scalar_lea.vmem %s1, 21
  %61 = vst.msk [vmem:[%s60] ss:$8 sm:$0xc] %vm57, %v56
  %s62 = scalar_lea.vmem %s1, 6
  %63 = vst.msk [vmem:[%s62] ss:$8 sm:$0x30] %vm57, %v56
  %s64 = scalar_lea.vmem %s1, 4294967287
  %65 = vst.msk [vmem:[%s64] ss:$8 sm:$0xc0] %vm57, %v56
  %s66 = scalar_lea.vmem %s0, 192
  %v67 = vld [vmem:[%s66] ss:$4 sm:$0xff]
  %vm68 = vcmask 261120
  %s69 = scalar_lea.vmem %s1, 48
  %70 = vst.msk [vmem:[%s69] ss:$8 sm:$0x3] %vm68, %v67
  %s71 = scalar_lea.vmem %s1, 33
  %72 = vst.msk [vmem:[%s71] ss:$8 sm:$0xc] %vm68, %v67
  %s73 = scalar_lea.vmem %s1, 18
  %74 = vst.msk [vmem:[%s73] ss:$8 sm:$0x30] %vm68, %v67
  %s75 = scalar_lea.vmem %s1, 3
  %76 = vst.msk [vmem:[%s75] ss:$8 sm:$0xc0] %vm68, %v67
  %s77 = scalar_lea.vmem %s0, 224
  %v78 = vld [vmem:[%s77] ss:$4 sm:$0xff]
  %vm79 = vcmask 261120
  %s80 = scalar_lea.vmem %s1, 52
  %81 = vst.msk [vmem:[%s80] ss:$8 sm:$0x3] %vm79, %v78
  %s82 = scalar_lea.vmem %s1, 37
  %83 = vst.msk [vmem:[%s82] ss:$8 sm:$0xc] %vm79, %v78
  %s84 = scalar_lea.vmem %s1, 22
  %85 = vst.msk [vmem:[%s84] ss:$8 sm:$0x30] %vm79, %v78
  %s86 = scalar_lea.vmem %s1, 7
  %87 = vst.msk [vmem:[%s86] ss:$8 sm:$0xc0] %vm79, %v78
  %s88 = scalar_lea.vmem %s0, 3
  %v89 = vld [vmem:[%s88] ss:$8 sm:$0xf]
  %s90 = scalar_lea.vmem %s0, 3
  %v91 = vld [vmem:[%s90] ss:$8 sm:$0xf0]
  %vm92 = vcmask 1047556
  %v93 = vsel %vm92, %v91, %v89
  %94 = vrot.lane.b32.xlu0 %v93, 96
  %v95 = vpop.permute.xlu0 %94
  %vm96 = vcmask 1048320
  %97 = vst.msk [vmem:[%s1] sm:$0xff] %vm96, %v95
  %s98 = scalar_lea.vmem %s0, 131
  %v99 = vld [vmem:[%s98] ss:$8 sm:$0xf]
  %s100 = scalar_lea.vmem %s0, 131
  %v101 = vld [vmem:[%s100] ss:$8 sm:$0xf0]
  %vm102 = vcmask 1047556
  %v103 = vsel %vm102, %v101, %v99
  %104 = vrot.lane.b32.xlu0 %v103, 96
  %v105 = vpop.permute.xlu0 %104
  %vm106 = vcmask 1048320
  %s107 = scalar_lea.vmem %s1, 32
  %108 = vst.msk [vmem:[%s107] sm:$0xff] %vm106, %v105
  %s109 = scalar_lea.vmem %s0, 7
  %v110 = vld [vmem:[%s109] ss:$8 sm:$0xf]
  %s111 = scalar_lea.vmem %s0, 7
  %v112 = vld [vmem:[%s111] ss:$8 sm:$0xf0]
  %vm113 = vcmask 1047556
  %v114 = vsel %vm113, %v112, %v110
  %115 = vrot.lane.b32.xlu0 %v114, 96
  %v116 = vpop.permute.xlu0 %115
  %vm117 = vcmask 1048320
  %s118 = scalar_lea.vmem %s1, 8
  %119 = vst.msk [vmem:[%s118] sm:$0xff] %vm117, %v116
  %s120 = scalar_lea.vmem %s0, 135
  %v121 = vld [vmem:[%s120] ss:$8 sm:$0xf]
  %s122 = scalar_lea.vmem %s0, 135
  %v123 = vld [vmem:[%s122] ss:$8 sm:$0xf0]
  %vm124 = vcmask 1047556
  %v125 = vsel %vm124, %v123, %v121
  %126 = vrot.lane.b32.xlu0 %v125, 96
  %v127 = vpop.permute.xlu0 %126
  %vm128 = vcmask 1048320
  %s129 = scalar_lea.vmem %s1, 40
  %130 = vst.msk [vmem:[%s129] sm:$0xff] %vm128, %v127
  %s131 = scalar_lea.vmem %s0, 67
  %v132 = vld [vmem:[%s131] ss:$8 sm:$0xf]
  %s133 = scalar_lea.vmem %s0, 67
  %v134 = vld [vmem:[%s133] ss:$8 sm:$0xf0]
  %vm135 = vcmask 1047556
  %v136 = vsel %vm135, %v134, %v132
  %137 = vrot.lane.b32.xlu0 %v136, 96
  %v138 = vpop.permute.xlu0 %137
  %vm139 = vcmask 1048320
  %s140 = scalar_lea.vmem %s1, 16
  %141 = vst.msk [vmem:[%s140] sm:$0xff] %vm139, %v138
  %s142 = scalar_lea.vmem %s0, 195
  %v143 = vld [vmem:[%s142] ss:$8 sm:$0xf]
  %s144 = scalar_lea.vmem %s0, 195
  %v145 = vld [vmem:[%s144] ss:$8 sm:$0xf0]
  %vm146 = vcmask 1047556
  %v147 = vsel %vm146, %v145, %v143
  %148 = vrot.lane.b32.xlu0 %v147, 96
  %v149 = vpop.permute.xlu0 %148
  %vm150 = vcmask 1048320
  %s151 = scalar_lea.vmem %s1, 48
  %152 = vst.msk [vmem:[%s151] sm:$0xff] %vm150, %v149
  %s153 = scalar_lea.vmem %s0, 71
  %v154 = vld [vmem:[%s153] ss:$8 sm:$0xf]
  %s155 = scalar_lea.vmem %s0, 71
  %v156 = vld [vmem:[%s155] ss:$8 sm:$0xf0]
  %vm157 = vcmask 1047556
  %v158 = vsel %vm157, %v156, %v154
  %159 = vrot.lane.b32.xlu0 %v158, 96
  %v160 = vpop.permute.xlu0 %159
  %vm161 = vcmask 1048320
  %s162 = scalar_lea.vmem %s1, 24
  %163 = vst.msk [vmem:[%s162] sm:$0xff] %vm161, %v160
  %s164 = scalar_lea.vmem %s0, 199
  %v165 = vld [vmem:[%s164] ss:$8 sm:$0xf]
  %s166 = scalar_lea.vmem %s0, 199
  %v167 = vld [vmem:[%s166] ss:$8 sm:$0xf0]
  %vm168 = vcmask 1047556
  %v169 = vsel %vm168, %v167, %v165
  %170 = vrot.lane.b32.xlu0 %v169, 96
  %v171 = vpop.permute.xlu0 %170
  %vm172 = vcmask 1048320
  %s173 = scalar_lea.vmem %s1, 56
  %174 = vst.msk [vmem:[%s173] sm:$0xff] %vm172, %v171
  %s175 = scalar_lea.vmem %s0, 2
  %v176 = vld [vmem:[%s175] ss:$8 sm:$0xf]
  %s177 = scalar_lea.vmem %s0, 2
  %v178 = vld [vmem:[%s177] ss:$8 sm:$0xf0]
  %vm179 = vcmask 1047556
  %v180 = vsel %vm179, %v178, %v176
  %181 = vrot.lane.b32.xlu0 %v180, 64
  %v182 = vpop.permute.xlu0 %181
  %vm183 = vcmask 785920
  %184 = vst.msk [vmem:[%s1] sm:$0xff] %vm183, %v182
  %s185 = scalar_lea.vmem %s0, 130
  %v186 = vld [vmem:[%s185] ss:$8 sm:$0xf]
  %s187 = scalar_lea.vmem %s0, 130
  %v188 = vld [vmem:[%s187] ss:$8 sm:$0xf0]
  %vm189 = vcmask 1047556
  %v190 = vsel %vm189, %v188, %v186
  %191 = vrot.lane.b32.xlu0 %v190, 64
  %v192 = vpop.permute.xlu0 %191
  %vm193 = vcmask 785920
  %s194 = scalar_lea.vmem %s1, 32
  %195 = vst.msk [vmem:[%s194] sm:$0xff] %vm193, %v192
  %s196 = scalar_lea.vmem %s0, 6
  %v197 = vld [vmem:[%s196] ss:$8 sm:$0xf]
  %s198 = scalar_lea.vmem %s0, 6
  %v199 = vld [vmem:[%s198] ss:$8 sm:$0xf0]
  %vm200 = vcmask 1047556
  %v201 = vsel %vm200, %v199, %v197
  %202 = vrot.lane.b32.xlu0 %v201, 64
  %v203 = vpop.permute.xlu0 %202
  %vm204 = vcmask 785920
  %s205 = scalar_lea.vmem %s1, 8
  %206 = vst.msk [vmem:[%s205] sm:$0xff] %vm204, %v203
  %s207 = scalar_lea.vmem %s0, 134
  %v208 = vld [vmem:[%s207] ss:$8 sm:$0xf]
  %s209 = scalar_lea.vmem %s0, 134
  %v210 = vld [vmem:[%s209] ss:$8 sm:$0xf0]
  %vm211 = vcmask 1047556
  %v212 = vsel %vm211, %v210, %v208
  %213 = vrot.lane.b32.xlu0 %v212, 64
  %v214 = vpop.permute.xlu0 %213
  %vm215 = vcmask 785920
  %s216 = scalar_lea.vmem %s1, 40
  %217 = vst.msk [vmem:[%s216] sm:$0xff] %vm215, %v214
  %s218 = scalar_lea.vmem %s0, 66
  %v219 = vld [vmem:[%s218] ss:$8 sm:$0xf]
  %s220 = scalar_lea.vmem %s0, 66
  %v221 = vld [vmem:[%s220] ss:$8 sm:$0xf0]
  %vm222 = vcmask 1047556
  %v223 = vsel %vm222, %v221, %v219
  %224 = vrot.lane.b32.xlu0 %v223, 64
  %v225 = vpop.permute.xlu0 %224
  %vm226 = vcmask 785920
  %s227 = scalar_lea.vmem %s1, 16
  %228 = vst.msk [vmem:[%s227] sm:$0xff] %vm226, %v225
  %s229 = scalar_lea.vmem %s0, 194
  %v230 = vld [vmem:[%s229] ss:$8 sm:$0xf]
  %s231 = scalar_lea.vmem %s0, 194
  %v232 = vld [vmem:[%s231] ss:$8 sm:$0xf0]
  %vm233 = vcmask 1047556
  %v234 = vsel %vm233, %v232, %v230
  %235 = vrot.lane.b32.xlu0 %v234, 64
  %v236 = vpop.permute.xlu0 %235
  %vm237 = vcmask 785920
  %s238 = scalar_lea.vmem %s1, 48
  %239 = vst.msk [vmem:[%s238] sm:$0xff] %vm237, %v236
  %s240 = scalar_lea.vmem %s0, 70
  %v241 = vld [vmem:[%s240] ss:$8 sm:$0xf]
  %s242 = scalar_lea.vmem %s0, 70
  %v243 = vld [vmem:[%s242] ss:$8 sm:$0xf0]
  %vm244 = vcmask 1047556
  %v245 = vsel %vm244, %v243, %v241
  %246 = vrot.lane.b32.xlu0 %v245, 64
  %v247 = vpop.permute.xlu0 %246
  %vm248 = vcmask 785920
  %s249 = scalar_lea.vmem %s1, 24
  %250 = vst.msk [vmem:[%s249] sm:$0xff] %vm248, %v247
  %s251 = scalar_lea.vmem %s0, 198
  %v252 = vld [vmem:[%s251] ss:$8 sm:$0xf]
  %s253 = scalar_lea.vmem %s0, 198
  %v254 = vld [vmem:[%s253] ss:$8 sm:$0xf0]
  %vm255 = vcmask 1047556
  %v256 = vsel %vm255, %v254, %v252
  %257 = vrot.lane.b32.xlu0 %v256, 64
  %v258 = vpop.permute.xlu0 %257
  %vm259 = vcmask 785920
  %s260 = scalar_lea.vmem %s1, 56
  %261 = vst.msk [vmem:[%s260] sm:$0xff] %vm259, %v258
  %s262 = scalar_lea.vmem %s0, 1
  %v263 = vld [vmem:[%s262] ss:$8 sm:$0xf]
  %s264 = scalar_lea.vmem %s0, 1
  %v265 = vld [vmem:[%s264] ss:$8 sm:$0xf0]
  %vm266 = vcmask 1047556
  %v267 = vsel %vm266, %v265, %v263
  %268 = vrot.lane.b32.xlu0 %v267, 32
  %v269 = vpop.permute.xlu0 %268
  %vm270 = vcmask 523520
  %271 = vst.msk [vmem:[%s1] sm:$0xff] %vm270, %v269
  %s272 = scalar_lea.vmem %s0, 129
  %v273 = vld [vmem:[%s272] ss:$8 sm:$0xf]
  %s274 = scalar_lea.vmem %s0, 129
  %v275 = vld [vmem:[%s274] ss:$8 sm:$0xf0]
  %vm276 = vcmask 1047556
  %v277 = vsel %vm276, %v275, %v273
  %278 = vrot.lane.b32.xlu0 %v277, 32
  %v279 = vpop.permute.xlu0 %278
  %vm280 = vcmask 523520
  %s281 = scalar_lea.vmem %s1, 32
  %282 = vst.msk [vmem:[%s281] sm:$0xff] %vm280, %v279
  %s283 = scalar_lea.vmem %s0, 5
  %v284 = vld [vmem:[%s283] ss:$8 sm:$0xf]
  %s285 = scalar_lea.vmem %s0, 5
  %v286 = vld [vmem:[%s285] ss:$8 sm:$0xf0]
  %vm287 = vcmask 1047556
  %v288 = vsel %vm287, %v286, %v284
  %289 = vrot.lane.b32.xlu0 %v288, 32
  %v290 = vpop.permute.xlu0 %289
  %vm291 = vcmask 523520
  %s292 = scalar_lea.vmem %s1, 8
  %293 = vst.msk [vmem:[%s292] sm:$0xff] %vm291, %v290
  %s294 = scalar_lea.vmem %s0, 133
  %v295 = vld [vmem:[%s294] ss:$8 sm:$0xf]
  %s296 = scalar_lea.vmem %s0, 133
  %v297 = vld [vmem:[%s296] ss:$8 sm:$0xf0]
  %vm298 = vcmask 1047556
  %v299 = vsel %vm298, %v297, %v295
  %300 = vrot.lane.b32.xlu0 %v299, 32
  %v301 = vpop.permute.xlu0 %300
  %vm302 = vcmask 523520
  %s303 = scalar_lea.vmem %s1, 40
  %304 = vst.msk [vmem:[%s303] sm:$0xff] %vm302, %v301
  %s305 = scalar_lea.vmem %s0, 65
  %v306 = vld [vmem:[%s305] ss:$8 sm:$0xf]
  %s307 = scalar_lea.vmem %s0, 65
  %v308 = vld [vmem:[%s307] ss:$8 sm:$0xf0]
  %vm309 = vcmask 1047556
  %v310 = vsel %vm309, %v308, %v306
  %311 = vrot.lane.b32.xlu0 %v310, 32
  %v312 = vpop.permute.xlu0 %311
  %vm313 = vcmask 523520
  %s314 = scalar_lea.vmem %s1, 16
  %315 = vst.msk [vmem:[%s314] sm:$0xff] %vm313, %v312
  %s316 = scalar_lea.vmem %s0, 193
  %v317 = vld [vmem:[%s316] ss:$8 sm:$0xf]
  %s318 = scalar_lea.vmem %s0, 193
  %v319 = vld [vmem:[%s318] ss:$8 sm:$0xf0]
  %vm320 = vcmask 1047556
  %v321 = vsel %vm320, %v319, %v317
  %322 = vrot.lane.b32.xlu0 %v321, 32
  %v323 = vpop.permute.xlu0 %322
  %vm324 = vcmask 523520
  %s325 = scalar_lea.vmem %s1, 48
  %326 = vst.msk [vmem:[%s325] sm:$0xff] %vm324, %v323
  %s327 = scalar_lea.vmem %s0, 69
  %v328 = vld [vmem:[%s327] ss:$8 sm:$0xf]
  %s329 = scalar_lea.vmem %s0, 69
  %v330 = vld [vmem:[%s329] ss:$8 sm:$0xf0]
  %vm331 = vcmask 1047556
  %v332 = vsel %vm331, %v330, %v328
  %333 = vrot.lane.b32.xlu0 %v332, 32
  %v334 = vpop.permute.xlu0 %333
  %vm335 = vcmask 523520
  %s336 = scalar_lea.vmem %s1, 24
  %337 = vst.msk [vmem:[%s336] sm:$0xff] %vm335, %v334
  %s338 = scalar_lea.vmem %s0, 197
  %v339 = vld [vmem:[%s338] ss:$8 sm:$0xf]
  %s340 = scalar_lea.vmem %s0, 197
  %v341 = vld [vmem:[%s340] ss:$8 sm:$0xf0]
  %vm342 = vcmask 1047556
  %v343 = vsel %vm342, %v341, %v339
  %344 = vrot.lane.b32.xlu0 %v343, 32
  %v345 = vpop.permute.xlu0 %344
  %vm346 = vcmask 523520
  %s347 = scalar_lea.vmem %s1, 56
  %348 = vst.msk [vmem:[%s347] sm:$0xff] %vm346, %v345

// kernel: tile.38
$region0: #{tile.38}
  #allocation0 [shape = 's32[1]{0}', space=sflag, size = 0x4, scoped, tag = 'scoped memory for tile.38']
  %s0 = inlined_call_operand.vmem [shape: f32[32], index: 0, kind: input, shape index: {}]
  %s1 = inlined_call_operand.vmem [shape: f32[8,32], index: 1, kind: output, shape index: {}]
  // Predicated region
  $region2: #{tile.38} parent=0 // pred_check
    _
  $region3: #{tile.38} parent=0 // pred_check_branch
    %3 = sbr.rel (0) target = $region5
  $region4: #{tile.38} parent=0 // pred_region
    _
  $region5: #{tile.38} parent=0 // pred_fallthru
    _
  %v4 = vld [vmem:[%s0] ss:$0 sm:$0xff]
  %5 = vst [vmem:[%s1] sm:$0xff] %v4

// kernel: tile.39
$region0: #{tile.39}
  %s0 = inlined_call_operand.vmem [shape: f32[8,32], index: 0, kind: input, shape index: {}]
  %s1 = inlined_call_operand.vmem [shape: f32[1,256], index: 1, kind: output, shape index: {}]
  $region1: #{tile.39} parent=0
    #allocation0 [shape = 'u8[8192]{0}', space=vmem, size = 0x2000, scoped, tag = 'scoped mem for output reshape']
    %s2 = smov 3
    %v3 = vld [vmem:[%s0] ss:$4 sm:%s2]
    %vm4 = vcmask 261120
    %5 = vst.msk [vmem:[#allocation0] ss:$8 sm:$0x3] %vm4, %v3
    %s6 = scalar_lea.vmem %s0, 3
    %s7 = smov 3
    %v8 = vld [vmem:[%s6] ss:$4 sm:%s7]
    %9 = vrot.lane.b32.xlu0 %v8, 96
    %v10 = vpop.permute.xlu0 %9
    %vm11 = vcmask 1048320
    %12 = vst.msk [vmem:[#allocation0] ss:$8 sm:$0x3] %vm11, %v10
    %s13 = scalar_lea.vmem %s0, 2
    %s14 = smov 3
    %v15 = vld [vmem:[%s13] ss:$4 sm:%s14]
    %16 = vrot.lane.b32.xlu0 %v15, 64
    %v17 = vpop.permute.xlu0 %16
    %vm18 = vcmask 785920
    %19 = vst.msk [vmem:[#allocation0] ss:$8 sm:$0x3] %vm18, %v17
    %s20 = scalar_lea.vmem %s0, 1
    %s21 = smov 3
    %v22 = vld [vmem:[%s20] ss:$4 sm:%s21]
    %23 = vrot.lane.b32.xlu0 %v22, 32
    %v24 = vpop.permute.xlu0 %23
    %vm25 = vcmask 523520
    %26 = vst.msk [vmem:[#allocation0] ss:$8 sm:$0x3] %vm25, %v24
    %s28 = sshllo.u32 0, 1
    %v30 = vld [vmem:[#allocation0] sm:%s28]
    %s31 = sshllo.u32 0, 1
    %32 = vst [vmem:[%s1] sm:%s31] %v30
    %s33 = scalar_lea.vmem [#allocation0], 8
    %v34 = vld [vmem:[%s33] sm:%s28]
    %s35 = sshllo.u32 0, 1
    %s36 = scalar_lea.vmem %s1, 1
    %37 = vst [vmem:[%s36] sm:%s35] %v34

// kernel: tile.49
$region0: #{tile.49}
  %s0 = inlined_call_operand.vmem [shape: f32[4,64,32], index: 0, kind: input, shape index: {}]
  %s1 = inlined_call_operand.vmem [shape: f32[256,32], index: 1, kind: output, shape index: {}]
  $region1: #{tile.49} parent=0
    #allocation0 [shape = 'u8[131072]{0}', space=vmem, size = 0x20000, scoped, tag = 'scoped mem for input reshape']
    %s3 = sshllo.u32 0, 4
    %s4 = smul.addr 4, 31
    %s5 = scalar_lea.vmem %s0, %s4
    %v6 = vld [vmem:[%s5] sm:%s3]
    %s7 = scalar_lea.vmem [#allocation0], 248
    %8 = vst [vmem:[%s7] sm:%s3] %v6
    %s9 = smul.addr 4, 30
    %s10 = scalar_lea.vmem %s0, %s9
    %v11 = vld [vmem:[%s10] sm:%s3]
    %s12 = scalar_lea.vmem [#allocation0], 240
    %13 = vst [vmem:[%s12] sm:%s3] %v11
    %s14 = smul.addr 4, 29
    %s15 = scalar_lea.vmem %s0, %s14
    %v16 = vld [vmem:[%s15] sm:%s3]
    %s17 = scalar_lea.vmem [#allocation0], 232
    %18 = vst [vmem:[%s17] sm:%s3] %v16
    %s19 = smul.addr 4, 28
    %s20 = scalar_lea.vmem %s0, %s19
    %v21 = vld [vmem:[%s20] sm:%s3]
    %s22 = scalar_lea.vmem [#allocation0], 224
    %23 = vst [vmem:[%s22] sm:%s3] %v21
    %s24 = smul.addr 4, 27
    %s25 = scalar_lea.vmem %s0, %s24
    %v26 = vld [vmem:[%s25] sm:%s3]
    %s27 = scalar_lea.vmem [#allocation0], 216
    %28 = vst [vmem:[%s27] sm:%s3] %v26
    %s29 = smul.addr 4, 26
    %s30 = scalar_lea.vmem %s0, %s29
    %v31 = vld [vmem:[%s30] sm:%s3]
    %s32 = scalar_lea.vmem [#allocation0], 208
    %33 = vst [vmem:[%s32] sm:%s3] %v31
    %s34 = smul.addr 4, 25
    %s35 = scalar_lea.vmem %s0, %s34
    %v36 = vld [vmem:[%s35] sm:%s3]
    %s37 = scalar_lea.vmem [#allocation0], 200
    %38 = vst [vmem:[%s37] sm:%s3] %v36
    %s39 = smul.addr 4, 24
    %s40 = scalar_lea.vmem %s0, %s39
    %v41 = vld [vmem:[%s40] sm:%s3]
    %s42 = scalar_lea.vmem [#allocation0], 192
    %43 = vst [vmem:[%s42] sm:%s3] %v41
    %s44 = smul.addr 4, 23
    %s45 = scalar_lea.vmem %s0, %s44
    %v46 = vld [vmem:[%s45] sm:%s3]
    %s47 = scalar_lea.vmem [#allocation0], 184
    %48 = vst [vmem:[%s47] sm:%s3] %v46
    %s49 = smul.addr 4, 22
    %s50 = scalar_lea.vmem %s0, %s49
    %v51 = vld [vmem:[%s50] sm:%s3]
    %s52 = scalar_lea.vmem [#allocation0], 176
    %53 = vst [vmem:[%s52] sm:%s3] %v51
    %s54 = smul.addr 4, 21
    %s55 = scalar_lea.vmem %s0, %s54
    %v56 = vld [vmem:[%s55] sm:%s3]
    %s57 = scalar_lea.vmem [#allocation0], 168
    %58 = vst [vmem:[%s57] sm:%s3] %v56
    %s59 = smul.addr 4, 20
    %s60 = scalar_lea.vmem %s0, %s59
    %v61 = vld [vmem:[%s60] sm:%s3]
    %s62 = scalar_lea.vmem [#allocation0], 160
    %63 = vst [vmem:[%s62] sm:%s3] %v61
    %s64 = smul.addr 4, 19
    %s65 = scalar_lea.vmem %s0, %s64
    %v66 = vld [vmem:[%s65] sm:%s3]
    %s67 = scalar_lea.vmem [#allocation0], 152
    %68 = vst [vmem:[%s67] sm:%s3] %v66
    %s69 = smul.addr 4, 18
    %s70 = scalar_lea.vmem %s0, %s69
    %v71 = vld [vmem:[%s70] sm:%s3]
    %s72 = scalar_lea.vmem [#allocation0], 144
    %73 = vst [vmem:[%s72] sm:%s3] %v71
    %s74 = smul.addr 4, 17
    %s75 = scalar_lea.vmem %s0, %s74
    %v76 = vld [vmem:[%s75] sm:%s3]
    %s77 = scalar_lea.vmem [#allocation0], 136
    %78 = vst [vmem:[%s77] sm:%s3] %v76
    %s79 = smul.addr 4, 16
    %s80 = scalar_lea.vmem %s0, %s79
    %v81 = vld [vmem:[%s80] sm:%s3]
    %s82 = scalar_lea.vmem [#allocation0], 128
    %83 = vst [vmem:[%s82] sm:%s3] %v81
    %s84 = smul.addr 4, 15
    %s85 = scalar_lea.vmem %s0, %s84
    %v86 = vld [vmem:[%s85] sm:%s3]
    %s87 = scalar_lea.vmem [#allocation0], 120
    %88 = vst [vmem:[%s87] sm:%s3] %v86
    %s89 = smul.addr 4, 14
    %s90 = scalar_lea.vmem %s0, %s89
    %v91 = vld [vmem:[%s90] sm:%s3]
    %s92 = scalar_lea.vmem [#allocation0], 112
    %93 = vst [vmem:[%s92] sm:%s3] %v91
    %s94 = smul.addr 4, 13
    %s95 = scalar_lea.vmem %s0, %s94
    %v96 = vld [vmem:[%s95] sm:%s3]
    %s97 = scalar_lea.vmem [#allocation0], 104
    %98 = vst [vmem:[%s97] sm:%s3] %v96
    %s99 = smul.addr 4, 12
    %s100 = scalar_lea.vmem %s0, %s99
    %v101 = vld [vmem:[%s100] sm:%s3]
    %s102 = scalar_lea.vmem [#allocation0], 96
    %103 = vst [vmem:[%s102] sm:%s3] %v101
    %s104 = smul.addr 4, 11
    %s105 = scalar_lea.vmem %s0, %s104
    %v106 = vld [vmem:[%s105] sm:%s3]
    %s107 = scalar_lea.vmem [#allocation0], 88
    %108 = vst [vmem:[%s107] sm:%s3] %v106
    %s109 = smul.addr 4, 10
    %s110 = scalar_lea.vmem %s0, %s109
    %v111 = vld [vmem:[%s110] sm:%s3]
    %s112 = scalar_lea.vmem [#allocation0], 80
    %113 = vst [vmem:[%s112] sm:%s3] %v111
    %s114 = smul.addr 4, 9
    %s115 = scalar_lea.vmem %s0, %s114
    %v116 = vld [vmem:[%s115] sm:%s3]
    %s117 = scalar_lea.vmem [#allocation0], 72
    %118 = vst [vmem:[%s117] sm:%s3] %v116
    %s119 = smul.addr 4, 8
    %s120 = scalar_lea.vmem %s0, %s119
    %v121 = vld [vmem:[%s120] sm:%s3]
    %s122 = scalar_lea.vmem [#allocation0], 64
    %123 = vst [vmem:[%s122] sm:%s3] %v121
    %s124 = smul.addr 4, 7
    %s125 = scalar_lea.vmem %s0, %s124
    %v126 = vld [vmem:[%s125] sm:%s3]
    %s127 = scalar_lea.vmem [#allocation0], 56
    %128 = vst [vmem:[%s127] sm:%s3] %v126
    %s129 = smul.addr 4, 6
    %s130 = scalar_lea.vmem %s0, %s129
    %v131 = vld [vmem:[%s130] sm:%s3]
    %s132 = scalar_lea.vmem [#allocation0], 48
    %133 = vst [vmem:[%s132] sm:%s3] %v131
    %s134 = smul.addr 4, 5
    %s135 = scalar_lea.vmem %s0, %s134
    %v136 = vld [vmem:[%s135] sm:%s3]
    %s137 = scalar_lea.vmem [#allocation0], 40
    %138 = vst [vmem:[%s137] sm:%s3] %v136
    %s139 = smul.addr 4, 4
    %s140 = scalar_lea.vmem %s0, %s139
    %v141 = vld [vmem:[%s140] sm:%s3]
    %s142 = scalar_lea.vmem [#allocation0], 32
    %143 = vst [vmem:[%s142] sm:%s3] %v141
    %s144 = smul.addr 4, 3
    %s145 = scalar_lea.vmem %s0, %s144
    %v146 = vld [vmem:[%s145] sm:%s3]
    %s147 = scalar_lea.vmem [#allocation0], 24
    %148 = vst [vmem:[%s147] sm:%s3] %v146
    %s149 = smul.addr 4, 2
    %s150 = scalar_lea.vmem %s0, %s149
    %v151 = vld [vmem:[%s150] sm:%s3]
    %s152 = scalar_lea.vmem [#allocation0], 16
    %153 = vst [vmem:[%s152] sm:%s3] %v151
    %s154 = scalar_lea.vmem %s0, 4
    %v155 = vld [vmem:[%s154] sm:%s3]
    %s156 = scalar_lea.vmem [#allocation0], 8
    %157 = vst [vmem:[%s156] sm:%s3] %v155
    %v158 = vld [vmem:[%s0] sm:%s3]
    %159 = vst [vmem:[#allocation0] sm:%s3] %v158
    %s160 = smov 3
    %v161 = vld [vmem:[#allocation0] ss:$2 sm:%s160]
    %vm162 = vcmask 523264
    %163 = vst.msk [vmem:[%s1] ss:$8 sm:$0x3] %vm162, %v161
    %s164 = scalar_lea.vmem [#allocation0], 8
    %s165 = smov 3
    %v166 = vld [vmem:[%s164] ss:$2 sm:%s165]
    %vm167 = vcmask 523264
    %s168 = scalar_lea.vmem %s1, 1
    %169 = vst.msk [vmem:[%s168] ss:$8 sm:$0x3] %vm167, %v166
    %s170 = scalar_lea.vmem [#allocation0], 16
    %s171 = smov 3
    %v172 = vld [vmem:[%s170] ss:$2 sm:%s171]
    %vm173 = vcmask 523264
    %s174 = scalar_lea.vmem %s1, 2
    %175 = vst.msk [vmem:[%s174] ss:$8 sm:$0x3] %vm173, %v172
    %s176 = scalar_lea.vmem [#allocation0], 24
    %s177 = smov 3
    %v178 = vld [vmem:[%s176] ss:$2 sm:%s177]
    %vm179 = vcmask 523264
    %s180 = scalar_lea.vmem %s1, 3
    %181 = vst.msk [vmem:[%s180] ss:$8 sm:$0x3] %vm179, %v178
    %s182 = scalar_lea.vmem [#allocation0], 32
    %s183 = smov 3
    %v184 = vld [vmem:[%s182] ss:$2 sm:%s183]
    %vm185 = vcmask 523264
    %s186 = scalar_lea.vmem %s1, 4
    %187 = vst.msk [vmem:[%s186] ss:$8 sm:$0x3] %vm185, %v184
    %s188 = scalar_lea.vmem [#allocation0], 40
    %s189 = smov 3
    %v190 = vld [vmem:[%s188] ss:$2 sm:%s189]
    %vm191 = vcmask 523264
    %s192 = scalar_lea.vmem %s1, 5
    %193 = vst.msk [vmem:[%s192] ss:$8 sm:$0x3] %vm191, %v190
    %s194 = scalar_lea.vmem [#allocation0], 48
    %s195 = smov 3
    %v196 = vld [vmem:[%s194] ss:$2 sm:%s195]
    %vm197 = vcmask 523264
    %s198 = scalar_lea.vmem %s1, 6
    %199 = vst.msk [vmem:[%s198] ss:$8 sm:$0x3] %vm197, %v196
    %s200 = scalar_lea.vmem [#allocation0], 56
    %s201 = smov 3
    %v202 = vld [vmem:[%s200] ss:$2 sm:%s201]
    %vm203 = vcmask 523264
    %s204 = scalar_lea.vmem %s1, 7
    %205 = vst.msk [vmem:[%s204] ss:$8 sm:$0x3] %vm203, %v202
    %s206 = scalar_lea.vmem [#allocation0], 64
    %s207 = smov 3
    %v208 = vld [vmem:[%s206] ss:$2 sm:%s207]
    %vm209 = vcmask 523264
    %s210 = scalar_lea.vmem %s1, 16
    %211 = vst.msk [vmem:[%s210] ss:$8 sm:$0x3] %vm209, %v208
    %s212 = scalar_lea.vmem [#allocation0], 72
    %s213 = smov 3
    %v214 = vld [vmem:[%s212] ss:$2 sm:%s213]
    %vm215 = vcmask 523264
    %s216 = scalar_lea.vmem %s1, 17
    %217 = vst.msk [vmem:[%s216] ss:$8 sm:$0x3] %vm215, %v214
    %s218 = scalar_lea.vmem [#allocation0], 80
    %s219 = smov 3
    %v220 = vld [vmem:[%s218] ss:$2 sm:%s219]
    %vm221 = vcmask 523264
    %s222 = scalar_lea.vmem %s1, 18
    %223 = vst.msk [vmem:[%s222] ss:$8 sm:$0x3] %vm221, %v220
    %s224 = scalar_lea.vmem [#allocation0], 88
    %s225 = smov 3
    %v226 = vld [vmem:[%s224] ss:$2 sm:%s225]
    %vm227 = vcmask 523264
    %s228 = scalar_lea.vmem %s1, 19
    %229 = vst.msk [vmem:[%s228] ss:$8 sm:$0x3] %vm227, %v226
    %s230 = scalar_lea.vmem [#allocation0], 96
    %s231 = smov 3
    %v232 = vld [vmem:[%s230] ss:$2 sm:%s231]
    %vm233 = vcmask 523264
    %s234 = scalar_lea.vmem %s1, 20
    %235 = vst.msk [vmem:[%s234] ss:$8 sm:$0x3] %vm233, %v232
    %s236 = scalar_lea.vmem [#allocation0], 104
    %s237 = smov 3
    %v238 = vld [vmem:[%s236] ss:$2 sm:%s237]
    %vm239 = vcmask 523264
    %s240 = scalar_lea.vmem %s1, 21
    %241 = vst.msk [vmem:[%s240] ss:$8 sm:$0x3] %vm239, %v238
    %s242 = scalar_lea.vmem [#allocation0], 112
    %s243 = smov 3
    %v244 = vld [vmem:[%s242] ss:$2 sm:%s243]
    %vm245 = vcmask 523264
    %s246 = scalar_lea.vmem %s1, 22
    %247 = vst.msk [vmem:[%s246] ss:$8 sm:$0x3] %vm245, %v244
    %s248 = scalar_lea.vmem [#allocation0], 120
    %s249 = smov 3
    %v250 = vld [vmem:[%s248] ss:$2 sm:%s249]
    %vm251 = vcmask 523264
    %s252 = scalar_lea.vmem %s1, 23
    %253 = vst.msk [vmem:[%s252] ss:$8 sm:$0x3] %vm251, %v250
    %s254 = scalar_lea.vmem [#allocation0], 128
    %s255 = smov 3
    %v256 = vld [vmem:[%s254] ss:$2 sm:%s255]
    %vm257 = vcmask 523264
    %s258 = scalar_lea.vmem %s1, 32
    %259 = vst.msk [vmem:[%s258] ss:$8 sm:$0x3] %vm257, %v256
    %s260 = scalar_lea.vmem [#allocation0], 136
    %s261 = smov 3
    %v262 = vld [vmem:[%s260] ss:$2 sm:%s261]
    %vm263 = vcmask 523264
    %s264 = scalar_lea.vmem %s1, 33
    %265 = vst.msk [vmem:[%s264] ss:$8 sm:$0x3] %vm263, %v262
    %s266 = scalar_lea.vmem [#allocation0], 144
    %s267 = smov 3
    %v268 = vld [vmem:[%s266] ss:$2 sm:%s267]
    %vm269 = vcmask 523264
    %s270 = scalar_lea.vmem %s1, 34
    %271 = vst.msk [vmem:[%s270] ss:$8 sm:$0x3] %vm269, %v268
    %s272 = scalar_lea.vmem [#allocation0], 152
    %s273 = smov 3
    %v274 = vld [vmem:[%s272] ss:$2 sm:%s273]
    %vm275 = vcmask 523264
    %s276 = scalar_lea.vmem %s1, 35
    %277 = vst.msk [vmem:[%s276] ss:$8 sm:$0x3] %vm275, %v274
    %s278 = scalar_lea.vmem [#allocation0], 160
    %s279 = smov 3
    %v280 = vld [vmem:[%s278] ss:$2 sm:%s279]
    %vm281 = vcmask 523264
    %s282 = scalar_lea.vmem %s1, 36
    %283 = vst.msk [vmem:[%s282] ss:$8 sm:$0x3] %vm281, %v280
    %s284 = scalar_lea.vmem [#allocation0], 168
    %s285 = smov 3
    %v286 = vld [vmem:[%s284] ss:$2 sm:%s285]
    %vm287 = vcmask 523264
    %s288 = scalar_lea.vmem %s1, 37
    %289 = vst.msk [vmem:[%s288] ss:$8 sm:$0x3] %vm287, %v286
    %s290 = scalar_lea.vmem [#allocation0], 176
    %s291 = smov 3
    %v292 = vld [vmem:[%s290] ss:$2 sm:%s291]
    %vm293 = vcmask 523264
    %s294 = scalar_lea.vmem %s1, 38
    %295 = vst.msk [vmem:[%s294] ss:$8 sm:$0x3] %vm293, %v292
    %s296 = scalar_lea.vmem [#allocation0], 184
    %s297 = smov 3
    %v298 = vld [vmem:[%s296] ss:$2 sm:%s297]
    %vm299 = vcmask 523264
    %s300 = scalar_lea.vmem %s1, 39
    %301 = vst.msk [vmem:[%s300] ss:$8 sm:$0x3] %vm299, %v298
    %s302 = scalar_lea.vmem [#allocation0], 192
    %s303 = smov 3
    %v304 = vld [vmem:[%s302] ss:$2 sm:%s303]
    %vm305 = vcmask 523264
    %s306 = scalar_lea.vmem %s1, 48
    %307 = vst.msk [vmem:[%s306] ss:$8 sm:$0x3] %vm305, %v304
    %s308 = scalar_lea.vmem [#allocation0], 200
    %s309 = smov 3
    %v310 = vld [vmem:[%s308] ss:$2 sm:%s309]
    %vm311 = vcmask 523264
    %s312 = scalar_lea.vmem %s1, 49
    %313 = vst.msk [vmem:[%s312] ss:$8 sm:$0x3] %vm311, %v310
    %s314 = scalar_lea.vmem [#allocation0], 208
    %s315 = smov 3
    %v316 = vld [vmem:[%s314] ss:$2 sm:%s315]
    %vm317 = vcmask 523264
    %s318 = scalar_lea.vmem %s1, 50
    %319 = vst.msk [vmem:[%s318] ss:$8 sm:$0x3] %vm317, %v316
    %s320 = scalar_lea.vmem [#allocation0], 216
    %s321 = smov 3
    %v322 = vld [vmem:[%s320] ss:$2 sm:%s321]
    %vm323 = vcmask 523264
    %s324 = scalar_lea.vmem %s1, 51
    %325 = vst.msk [vmem:[%s324] ss:$8 sm:$0x3] %vm323, %v322
    %s326 = scalar_lea.vmem [#allocation0], 224
    %s327 = smov 3
    %v328 = vld [vmem:[%s326] ss:$2 sm:%s327]
    %vm329 = vcmask 523264
    %s330 = scalar_lea.vmem %s1, 52
    %331 = vst.msk [vmem:[%s330] ss:$8 sm:$0x3] %vm329, %v328
    %s332 = scalar_lea.vmem [#allocation0], 232
    %s333 = smov 3
    %v334 = vld [vmem:[%s332] ss:$2 sm:%s333]
    %vm335 = vcmask 523264
    %s336 = scalar_lea.vmem %s1, 53
    %337 = vst.msk [vmem:[%s336] ss:$8 sm:$0x3] %vm335, %v334
    %s338 = scalar_lea.vmem [#allocation0], 240
    %s339 = smov 3
    %v340 = vld [vmem:[%s338] ss:$2 sm:%s339]
    %vm341 = vcmask 523264
    %s342 = scalar_lea.vmem %s1, 54
    %343 = vst.msk [vmem:[%s342] ss:$8 sm:$0x3] %vm341, %v340
    %s344 = scalar_lea.vmem [#allocation0], 248
    %s345 = smov 3
    %v346 = vld [vmem:[%s344] ss:$2 sm:%s345]
    %vm347 = vcmask 523264
    %s348 = scalar_lea.vmem %s1, 55
    %349 = vst.msk [vmem:[%s348] ss:$8 sm:$0x3] %vm347, %v346
    %s350 = scalar_lea.vmem [#allocation0], 1
    %v351 = vld [vmem:[%s350] ss:$8 sm:$0xf]
    %s352 = scalar_lea.vmem [#allocation0], 1
    %v353 = vld [vmem:[%s352] ss:$8 sm:$0xf0]
    %vm354 = vcmask 1047556
    %v355 = vsel %vm354, %v353, %v351
    %356 = vrot.lane.b32.xlu0 %v355, 64
    %v357 = vpop.permute.xlu0 %356
    %vm358 = vcmask 1048064
    %359 = vst.msk [vmem:[%s1] sm:$0xff] %vm358, %v357
    %s360 = scalar_lea.vmem [#allocation0], 129
    %v361 = vld [vmem:[%s360] ss:$8 sm:$0xf]
    %s362 = scalar_lea.vmem [#allocation0], 129
    %v363 = vld [vmem:[%s362] ss:$8 sm:$0xf0]
    %vm364 = vcmask 1047556
    %v365 = vsel %vm364, %v363, %v361
    %366 = vrot.lane.b32.xlu0 %v365, 64
    %v367 = vpop.permute.xlu0 %366
    %vm368 = vcmask 1048064
    %s369 = scalar_lea.vmem %s1, 32
    %370 = vst.msk [vmem:[%s369] sm:$0xff] %vm368, %v367
    %s371 = scalar_lea.vmem [#allocation0], 3
    %v372 = vld [vmem:[%s371] ss:$8 sm:$0xf]
    %s373 = scalar_lea.vmem [#allocation0], 3
    %v374 = vld [vmem:[%s373] ss:$8 sm:$0xf0]
    %vm375 = vcmask 1047556
    %v376 = vsel %vm375, %v374, %v372
    %377 = vrot.lane.b32.xlu0 %v376, 64
    %v378 = vpop.permute.xlu0 %377
    %vm379 = vcmask 1048064
    %s380 = scalar_lea.vmem %s1, 8
    %381 = vst.msk [vmem:[%s380] sm:$0xff] %vm379, %v378
    %s382 = scalar_lea.vmem [#allocation0], 131
    %v383 = vld [vmem:[%s382] ss:$8 sm:$0xf]
    %s384 = scalar_lea.vmem [#allocation0], 131
    %v385 = vld [vmem:[%s384] ss:$8 sm:$0xf0]
    %vm386 = vcmask 1047556
    %v387 = vsel %vm386, %v385, %v383
    %388 = vrot.lane.b32.xlu0 %v387, 64
    %v389 = vpop.permute.xlu0 %388
    %vm390 = vcmask 1048064
    %s391 = scalar_lea.vmem %s1, 40
    %392 = vst.msk [vmem:[%s391] sm:$0xff] %vm390, %v389
    %s393 = scalar_lea.vmem [#allocation0], 65
    %v394 = vld [vmem:[%s393] ss:$8 sm:$0xf]
    %s395 = scalar_lea.vmem [#allocation0], 65
    %v396 = vld [vmem:[%s395] ss:$8 sm:$0xf0]
    %vm397 = vcmask 1047556
    %v398 = vsel %vm397, %v396, %v394
    %399 = vrot.lane.b32.xlu0 %v398, 64
    %v400 = vpop.permute.xlu0 %399
    %vm401 = vcmask 1048064
    %s402 = scalar_lea.vmem %s1, 16
    %403 = vst.msk [vmem:[%s402] sm:$0xff] %vm401, %v400
    %s404 = scalar_lea.vmem [#allocation0], 193
    %v405 = vld [vmem:[%s404] ss:$8 sm:$0xf]
    %s406 = scalar_lea.vmem [#allocation0], 193
    %v407 = vld [vmem:[%s406] ss:$8 sm:$0xf0]
    %vm408 = vcmask 1047556
    %v409 = vsel %vm408, %v407, %v405
    %410 = vrot.lane.b32.xlu0 %v409, 64
    %v411 = vpop.permute.xlu0 %410
    %vm412 = vcmask 1048064
    %s413 = scalar_lea.vmem %s1, 48
    %414 = vst.msk [vmem:[%s413] sm:$0xff] %vm412, %v411
    %s415 = scalar_lea.vmem [#allocation0], 67
    %v416 = vld [vmem:[%s415] ss:$8 sm:$0xf]
    %s417 = scalar_lea.vmem [#allocation0], 67
    %v418 = vld [vmem:[%s417] ss:$8 sm:$0xf0]
    %vm419 = vcmask 1047556
    %v420 = vsel %vm419, %v418, %v416
    %421 = vrot.lane.b32.xlu0 %v420, 64
    %v422 = vpop.permute.xlu0 %421
    %vm423 = vcmask 1048064
    %s424 = scalar_lea.vmem %s1, 24
    %425 = vst.msk [vmem:[%s424] sm:$0xff] %vm423, %v422
    %s426 = scalar_lea.vmem [#allocation0], 195
    %v427 = vld [vmem:[%s426] ss:$8 sm:$0xf]
    %s428 = scalar_lea.vmem [#allocation0], 195
    %v429 = vld [vmem:[%s428] ss:$8 sm:$0xf0]
    %vm430 = vcmask 1047556
    %v431 = vsel %vm430, %v429, %v427
    %432 = vrot.lane.b32.xlu0 %v431, 64
    %v433 = vpop.permute.xlu0 %432
    %vm434 = vcmask 1048064
    %s435 = scalar_lea.vmem %s1, 56
    %436 = vst.msk [vmem:[%s435] sm:$0xff] %vm434, %v433

// kernel: tile.53
$region0: #{tile.53}
  #allocation0 [shape = 's32[1]{0}', space=sflag, size = 0x4, scoped, tag = 'scoped memory for tile.53']
  %s0 = inlined_call_operand.vmem [shape: f32[64], index: 0, kind: input, shape index: {}]
  %s1 = inlined_call_operand.vmem [shape: f32[4,64], index: 1, kind: output, shape index: {}]
  // Predicated region
  $region2: #{tile.53} parent=0 // pred_check
    _
  $region3: #{tile.53} parent=0 // pred_check_branch
    %3 = sbr.rel (0) target = $region5
  $region4: #{tile.53} parent=0 // pred_region
    _
  $region5: #{tile.53} parent=0 // pred_fallthru
    _
  %v4 = vld [vmem:[%s0] ss:$0 sm:$0xff]
  %5 = vst [vmem:[%s1] sm:$0xf] %v4

// kernel: tile.54
$region0: #{tile.54}
  %s0 = inlined_call_operand.vmem [shape: f32[4,64], index: 0, kind: input, shape index: {}]
  %s1 = inlined_call_operand.vmem [shape: f32[1,256], index: 1, kind: output, shape index: {}]
  $region1: #{tile.54} parent=0
    #allocation0 [shape = 'u8[8192]{0}', space=vmem, size = 0x2000, scoped, tag = 'scoped mem for output reshape']
    #allocation1 [shape = 'u8[4096]{0}', space=vmem, size = 0x1000, scoped, tag = 'scoped mem for input reshape']
    %s3 = sshllo.u32 0, 4
    %v4 = vld [vmem:[%s0] sm:%s3]
    %5 = vst [vmem:[#allocation1] sm:%s3] %v4
    %s6 = smov 3
    %v7 = vld [vmem:[#allocation1] ss:$2 sm:%s6]
    %vm8 = vcmask 523264
    %9 = vst.msk [vmem:[#allocation0] ss:$8 sm:$0x3] %vm8, %v7
    %s10 = scalar_lea.vmem [#allocation1], 1
    %s11 = smov 3
    %v12 = vld [vmem:[%s10] ss:$2 sm:%s11]
    %13 = vrot.lane.b32.xlu0 %v12, 64
    %v14 = vpop.permute.xlu0 %13
    %vm15 = vcmask 1048064
    %16 = vst.msk [vmem:[#allocation0] ss:$8 sm:$0x3] %vm15, %v14
    %s18 = sshllo.u32 0, 1
    %v20 = vld [vmem:[#allocation0] sm:%s18]
    %s21 = sshllo.u32 0, 1
    %22 = vst [vmem:[%s1] sm:%s21] %v20
    %s23 = scalar_lea.vmem [#allocation0], 8
    %v24 = vld [vmem:[%s23] sm:%s18]
    %s25 = sshllo.u32 0, 1
    %s26 = scalar_lea.vmem %s1, 1
    %27 = vst [vmem:[%s26] sm:%s25] %v24

// kernel: block_forward.5
$region0: #{block_forward.5}
  #allocation0 [shape = 'u32[]', space=smem, size = 0x4, offset = 0x4, fixed_abs, tag = 'smem constant byte address 0x4 - core index']
  #allocation1 [shape = 'u32[144,128]{1,0:T(1,128)}', space=vmem, size = 0x12000, scoped, tag = 'internal scratch']
  %s0 = inlined_call_operand.vmem [shape: f32[2,8,256], index: 0, kind: input, shape index: {}]
  %s1 = inlined_call_operand.vmem [shape: f32[1,256], index: 1, kind: input, shape index: {}]
  %s2 = inlined_call_operand.vmem [shape: f32[1,256], index: 2, kind: input, shape index: {}]
  %s3 = inlined_call_operand.vmem [shape: f32[256,32], index: 3, kind: input, shape index: {}]
  %s4 = inlined_call_operand.vmem [shape: f32[32,256], index: 4, kind: input, shape index: {}]
  %s5 = inlined_call_operand.vmem [shape: bf16[2,8,256], index: 5, kind: output, shape index: {}]
  %s6 = sld [smem:[#allocation0]]
  $region53: #{block_forward.5} parent=0
    _
  %s8 = ssub.s32 1, %s6
  %s9 = scalar_select 0, %s8, %s6
  loop: start=0, step=1, limit=4
  $region2: #{block_forward.5} parent=0 // loop_pre_header
    _
  $region3: #{block_forward.5} parent=0 // loop_header
    %s11 = sphi 0, %s15
    %p12 = scmp.ge.s32.totalorder %s11, 4
    %s21 = sphi 0, %s23
    %s24 = sphi 0, %s21
    %s25 = sphi 0, %s24
    %s41 = sphi 0, %s25
    %s45 = sphi 0, %s45
    %s47 = sphi 0, %s45
    %s48 = sphi 0, %s47
    %s62 = sphi 0, %s48
    %s66 = sphi 0, %s66
    %s68 = sphi 0, %s66
    %s69 = sphi 0, %s68
    %s83 = sphi 0, %s69
    %s87 = sphi 0, %s87
    %s89 = sphi 0, %s87
    %s90 = sphi 0, %s89
    %s104 = sphi 0, %s90
    %s108 = sphi 0, %s108
    %s110 = sphi 0, %s108
    %s111 = sphi 0, %s110
    %s125 = sphi 0, %s111
    %s131 = sphi 0, %s133
    %s134 = sphi 0, %s131
    %s135 = sphi 0, %s134
    %s151 = sphi 0, %s135
  $region4: #{block_forward.5} parent=0 // loop_header_branch
    %14 = sbr.rel (%p12) target = $region8
  $region5: #{block_forward.5} parent=0 // loop_body
    %s16 = ssub.s32 %s11, 1
    %s17 = ssub.s32 %s11, 2
    %s18 = sadd.s32 %s11, 1
    %s19 = ssub.s32 %s11, %s18
    %p20 = scmp.eq.s32.totalorder %s19, 0
    %s22 = sadd.s32 %s21, 1
    %s23 = scalar_select %p20, %s21, %s22
    %p26 = pneg %p20
    %p27 = scmp.eq.s32.totalorder %s11, 1
    %p28 = por %p26, %p27
    %p29 = scmp.ne.s32.totalorder %s21, %s24
    %p30 = scmp.eq.s32.totalorder %s11, 0
    %p31 = por %p29, %p30
    %p32 = scmp.ne.s32.totalorder %s21, %s24
    %p33 = scmp.eq.s32.totalorder %s16, 1
    %p34 = por %p32, %p33
    %p35 = scmp.ne.s32.totalorder %s24, %s25
    %p36 = scmp.eq.s32.totalorder %s16, 0
    %p37 = por %p35, %p36
    %p38 = scmp.ne.s32.totalorder %s24, %s25
    %p39 = scmp.eq.s32.totalorder %s17, 1
    %p40 = por %p38, %p39
    %p42 = scmp.ne.s32.totalorder %s25, %s41
    %p43 = scmp.eq.s32.totalorder %s17, 0
    %p44 = por %p42, %p43
    %s46 = sadd.s32 %s45, 1
    %p49 = scmp.eq.s32.totalorder %s11, 1
    %p50 = scmp.ne.s32.totalorder %s45, %s47
    %p51 = scmp.eq.s32.totalorder %s11, 0
    %p52 = por %p50, %p51
    %p53 = scmp.ne.s32.totalorder %s45, %s47
    %p54 = scmp.eq.s32.totalorder %s16, 1
    %p55 = por %p53, %p54
    %p56 = scmp.ne.s32.totalorder %s47, %s48
    %p57 = scmp.eq.s32.totalorder %s16, 0
    %p58 = por %p56, %p57
    %p59 = scmp.ne.s32.totalorder %s47, %s48
    %p60 = scmp.eq.s32.totalorder %s17, 1
    %p61 = por %p59, %p60
    %p63 = scmp.ne.s32.totalorder %s48, %s62
    %p64 = scmp.eq.s32.totalorder %s17, 0
    %p65 = por %p63, %p64
    %s67 = sadd.s32 %s66, 1
    %p70 = scmp.eq.s32.totalorder %s11, 1
    %p71 = scmp.ne.s32.totalorder %s66, %s68
    %p72 = scmp.eq.s32.totalorder %s11, 0
    %p73 = por %p71, %p72
    %p74 = scmp.ne.s32.totalorder %s66, %s68
    %p75 = scmp.eq.s32.totalorder %s16, 1
    %p76 = por %p74, %p75
    %p77 = scmp.ne.s32.totalorder %s68, %s69
    %p78 = scmp.eq.s32.totalorder %s16, 0
    %p79 = por %p77, %p78
    %p80 = scmp.ne.s32.totalorder %s68, %s69
    %p81 = scmp.eq.s32.totalorder %s17, 1
    %p82 = por %p80, %p81
    %p84 = scmp.ne.s32.totalorder %s69, %s83
    %p85 = scmp.eq.s32.totalorder %s17, 0
    %p86 = por %p84, %p85
    %s88 = sadd.s32 %s87, 1
    %p91 = scmp.eq.s32.totalorder %s11, 1
    %p92 = scmp.ne.s32.totalorder %s87, %s89
    %p93 = scmp.eq.s32.totalorder %s11, 0
    %p94 = por %p92, %p93
    %p95 = scmp.ne.s32.totalorder %s87, %s89
    %p96 = scmp.eq.s32.totalorder %s16, 1
    %p97 = por %p95, %p96
    %p98 = scmp.ne.s32.totalorder %s89, %s90
    %p99 = scmp.eq.s32.totalorder %s16, 0
    %p100 = por %p98, %p99
    %p101 = scmp.ne.s32.totalorder %s89, %s90
    %p102 = scmp.eq.s32.totalorder %s17, 1
    %p103 = por %p101, %p102
    %p105 = scmp.ne.s32.totalorder %s90, %s104
    %p106 = scmp.eq.s32.totalorder %s17, 0
    %p107 = por %p105, %p106
    %s109 = sadd.s32 %s108, 1
    %p112 = scmp.eq.s32.totalorder %s11, 1
    %p113 = scmp.ne.s32.totalorder %s108, %s110
    %p114 = scmp.eq.s32.totalorder %s11, 0
    %p115 = por %p113, %p114
    %p116 = scmp.ne.s32.totalorder %s108, %s110
    %p117 = scmp.eq.s32.totalorder %s16, 1
    %p118 = por %p116, %p117
    %p119 = scmp.ne.s32.totalorder %s110, %s111
    %p120 = scmp.eq.s32.totalorder %s16, 0
    %p121 = por %p119, %p120
    %p122 = scmp.ne.s32.totalorder %s110, %s111
    %p123 = scmp.eq.s32.totalorder %s17, 1
    %p124 = por %p122, %p123
    %p126 = scmp.ne.s32.totalorder %s111, %s125
    %p127 = scmp.eq.s32.totalorder %s17, 0
    %p128 = por %p126, %p127
    %s129 = ssub.s32 %s11, %s18
    %p130 = scmp.eq.s32.totalorder %s129, 0
    %s132 = sadd.s32 %s131, 1
    %s133 = scalar_select %p130, %s131, %s132
    %p136 = pneg %p130
    %p137 = scmp.eq.s32.totalorder %s11, 1
    %p138 = por %p136, %p137
    %p139 = scmp.ne.s32.totalorder %s131, %s134
    %p140 = scmp.eq.s32.totalorder %s11, 0
    %p141 = por %p139, %p140
    %p142 = scmp.ne.s32.totalorder %s131, %s134
    %p143 = scmp.eq.s32.totalorder %s16, 1
    %p144 = por %p142, %p143
    %p145 = scmp.ne.s32.totalorder %s134, %s135
    %p146 = scmp.eq.s32.totalorder %s16, 0
    %p147 = por %p145, %p146
    %p148 = scmp.ne.s32.totalorder %s134, %s135
    %p149 = scmp.eq.s32.totalorder %s17, 1
    %p150 = por %p148, %p149
    %p152 = scmp.ne.s32.totalorder %s135, %s151
    %p153 = scmp.eq.s32.totalorder %s17, 0
    %p154 = por %p152, %p153
    %p155 = scmp.le.s32.totalorder 1, %s11
    %p156 = scmp.lt.s32.totalorder %s11, 3
    %p157 = pnand %p155, %p156
    %p158 = pneg %p157
    // Predicated region
    $region9: #{block_forward.5} parent=5 // pred_check
      _
    $region10: #{block_forward.5} parent=5 // pred_check_branch
      %160 = sbr.rel (%p157) target = $region12
    $region11: #{block_forward.5} parent=5 // pred_region
      %s161 = ssub.s32 %s11, 1
      // Predicated region
      $region13: #{block_forward.5} parent=11 // pred_check
        %p162 = pneg %p58
      $region14: #{block_forward.5} parent=11 // pred_check_branch
        %164 = sbr.rel (%p162) target = $region16
      $region15: #{block_forward.5} parent=11 // pred_region
        _
      $region16: #{block_forward.5} parent=11 // pred_fallthru
        _
      // Predicated region
      $region17: #{block_forward.5} parent=11 // pred_check
        %p165 = pneg %p79
      $region18: #{block_forward.5} parent=11 // pred_check_branch
        %167 = sbr.rel (%p165) target = $region20
      $region19: #{block_forward.5} parent=11 // pred_region
        _
      $region20: #{block_forward.5} parent=11 // pred_fallthru
        _
      // Predicated region
      $region21: #{block_forward.5} parent=11 // pred_check
        %p168 = pneg %p100
      $region22: #{block_forward.5} parent=11 // pred_check_branch
        %170 = sbr.rel (%p168) target = $region24
      $region23: #{block_forward.5} parent=11 // pred_region
        _
      $region24: #{block_forward.5} parent=11 // pred_fallthru
        _
      // Predicated region
      $region25: #{block_forward.5} parent=11 // pred_check
        %p171 = pneg %p121
      $region26: #{block_forward.5} parent=11 // pred_check_branch
        %173 = sbr.rel (%p171) target = $region28
      $region27: #{block_forward.5} parent=11 // pred_region
        _
      $region28: #{block_forward.5} parent=11 // pred_fallthru
        _
    $region12: #{block_forward.5} parent=5 // pred_fallthru
      _
    %p174 = scmp.lt.s32.totalorder %s11, 2
    // Predicated region
    $region29: #{block_forward.5} parent=5 // pred_check
      %p175 = pneg %p174
    $region30: #{block_forward.5} parent=5 // pred_check_branch
      %177 = sbr.rel (%p175) target = $region32
    $region31: #{block_forward.5} parent=5 // pred_region
      // Predicated region
      $region33: #{block_forward.5} parent=31 // pred_check
        %p178 = pneg %p31
      $region34: #{block_forward.5} parent=31 // pred_check_branch
        %180 = sbr.rel (%p178) target = $region36
      $region35: #{block_forward.5} parent=31 // pred_region
        %p181 = scmp.lt.s32.totalorder %s11, 1
        %s182 = scalar_select %p181, %s11, 1
        %s183 = smul.addr %s182, 2
        %s184 = smul.addr %s183, 8
        %s185 = scalar_lea.vmem %s0, %s184
      $region36: #{block_forward.5} parent=31 // pred_fallthru
        _
    $region32: #{block_forward.5} parent=5 // pred_fallthru
      _
    %p186 = scmp.le.s32.totalorder 1, %s11
    %p187 = scmp.lt.s32.totalorder %s11, 3
    %p188 = pnand %p186, %p187
    %p189 = pneg %p188
    // Predicated region
    $region37: #{block_forward.5} parent=5 // pred_check
      _
    $region38: #{block_forward.5} parent=5 // pred_check_branch
      %191 = sbr.rel (%p188) target = $region40
    $region39: #{block_forward.5} parent=5 // pred_region
      %s192 = ssub.s32 %s11, 1
      %p193 = scmp.lt.s32.totalorder %s16, 1
      %s194 = scalar_select %p193, %s16, 1
      %s195 = smul.addr %s194, 2
      %s196 = smul.addr %s195, 8
      %s197 = scalar_lea.vmem %s0, %s196
      %p198 = pneg %p37
      %p199 = pneg %p34
      %p200 = pneg %p58
      %p201 = pneg %p55
      %p202 = pneg %p79
      %p203 = pneg %p76
      %p204 = pneg %p100
      %p205 = pneg %p97
      %p206 = pneg %p121
      %p207 = pneg %p118
      %p208 = pneg %p147
      %p209 = pneg %p144
      %p210 = scmp.lt.s32.totalorder %s16, 1
      %s211 = scalar_select %p210, %s16, 1
      %s212 = smul.addr %s211, 2
      %s213 = smul.addr %s212, 4
      %s214 = scalar_lea.vmem %s5, %s213
      %p215 = scmp.lt.s32.totalorder %s16, 1
      %s216 = scalar_select %p215, %s16, 1
      %s217 = smul.addr %s216, 2
      %s218 = smul.addr %s217, 8
      %s219 = scalar_lea.vmem %s0, %s218
      %p220 = scmp.lt.s32.totalorder %s16, 1
      %s221 = scalar_select %p220, %s16, 1
      %s222 = smul.addr %s221, 2
      %s223 = smul.addr %s222, 4
      %s224 = scalar_lea.vmem %s5, %s223
      %v225 = vld [vmem:[%s219] sm:$0xff]
      %v226 = vld [vmem:[%s219 + $0x8] sm:$0xff]
      %v227 = vld [vmem:[%s3] sm:$0xff]
      %v228 = vld [vmem:[%s3 + $0x8] sm:$0xff]
      %v229 = vld [vmem:[%s3 + $0x10] sm:$0xff]
      %v230 = vld [vmem:[%s3 + $0x18] sm:$0xff]
      %v231 = vld [vmem:[%s3 + $0x20] sm:$0xff]
      %v232 = vld [vmem:[%s3 + $0x28] sm:$0xff]
      %v233 = vld [vmem:[%s3 + $0x30] sm:$0xff]
      %v234 = vld [vmem:[%s3 + $0x38] sm:$0xff]
      %v235 = vld [vmem:[%s3 + $0x40] sm:$0xff]
      %v236 = vld [vmem:[%s3 + $0x48] sm:$0xff]
      %v237 = vld [vmem:[%s3 + $0x50] sm:$0xff]
      %v238 = vld [vmem:[%s3 + $0x58] sm:$0xff]
      %v239 = vld [vmem:[%s3 + $0x60] sm:$0xff]
      %v240 = vld [vmem:[%s3 + $0x68] sm:$0xff]
      %v241 = vld [vmem:[%s3 + $0x70] sm:$0xff]
      %v242 = vld [vmem:[%s3 + $0x78] sm:$0xff]
      %v243 = vld [vmem:[%s3 + $0x80] sm:$0xff]
      %v244 = vld [vmem:[%s3 + $0x88] sm:$0xff]
      %v245 = vld [vmem:[%s3 + $0x90] sm:$0xff]
      %v246 = vld [vmem:[%s3 + $0x98] sm:$0xff]
      %v247 = vld [vmem:[%s3 + $0xa0] sm:$0xff]
      %v248 = vld [vmem:[%s3 + $0xa8] sm:$0xff]
      %v249 = vld [vmem:[%s3 + $0xb0] sm:$0xff]
      %v250 = vld [vmem:[%s3 + $0xb8] sm:$0xff]
      %v251 = vld [vmem:[%s3 + $0xc0] sm:$0xff]
      %v252 = vld [vmem:[%s3 + $0xc8] sm:$0xff]
      %v253 = vld [vmem:[%s3 + $0xd0] sm:$0xff]
      %v254 = vld [vmem:[%s3 + $0xd8] sm:$0xff]
      %v255 = vld [vmem:[%s3 + $0xe0] sm:$0xff]
      %v256 = vld [vmem:[%s3 + $0xe8] sm:$0xff]
      %v257 = vld [vmem:[%s3 + $0xf0] sm:$0xff]
      %v258 = vld [vmem:[%s3 + $0xf8] sm:$0xff]
      %v259 = vld [vmem:[%s4] sm:$0xff]
      %v260 = vld [vmem:[%s4 + $0x8] sm:$0xff]
      %v261 = vld [vmem:[%s4 + $0x10] sm:$0xff]
      %v262 = vld [vmem:[%s4 + $0x18] sm:$0xff]
      %v263 = vld [vmem:[%s4 + $0x20] sm:$0xff]
      %v264 = vld [vmem:[%s4 + $0x28] sm:$0xff]
      %v265 = vld [vmem:[%s4 + $0x30] sm:$0xff]
      %v266 = vld [vmem:[%s4 + $0x38] sm:$0xff]
      %v267 = vrot.slane %v225, 4
      %v268 = vadd.f32 %v225, %v267
      %v269 = vrot.slane %v268, 2
      %v270 = vadd.f32 %v268, %v269
      %v271 = vrot.slane %v270, 1
      %v272 = vadd.f32 %v270, %v271
      %v273 = vrot.slane %v226, 4
      %v274 = vadd.f32 %v226, %v273
      %v275 = vrot.slane %v274, 2
      %v276 = vadd.f32 %v274, %v275
      %v277 = vrot.slane %v276, 1
      %v278 = vadd.f32 %v276, %v277
      %279 = vmatprep.subr.mxu0 0.0
      %280 = vmatpush1.msra.mxu0 %v227
      %281 = vmatprep.subr.mxu0 0.0
      %282 = vmatpush1.msra.mxu0 %v228
      %283 = vmatprep.subr.mxu0 0.0
      %284 = vmatpush1.msra.mxu0 %v229
      %285 = vmatprep.subr.mxu0 0.0
      %286 = vmatpush1.msra.mxu0 %v230
      %287 = vmatprep.subr.mxu0 0.0
      %288 = vmatpush1.msra.mxu0 %v231
      %289 = vmatprep.subr.mxu0 0.0
      %290 = vmatpush1.msra.mxu0 %v232
      %291 = vmatprep.subr.mxu0 0.0
      %292 = vmatpush1.msra.mxu0 %v233
      %293 = vmatprep.subr.mxu0 0.0
      %294 = vmatpush1.msra.mxu0 %v234
      %295 = vmatprep.subr.mxu0 0.0
      %296 = vmatpush1.msra.mxu0 %v235
      %297 = vmatprep.subr.mxu0 0.0
      %298 = vmatpush1.msra.mxu0 %v236
      %299 = vmatprep.subr.mxu0 0.0
      %300 = vmatpush1.msra.mxu0 %v237
      %301 = vmatprep.subr.mxu0 0.0
      %302 = vmatpush1.msra.mxu0 %v238
      %303 = vmatprep.subr.mxu0 0.0
      %304 = vmatpush1.msra.mxu0 %v239
      %305 = vmatprep.subr.mxu0 0.0
      %306 = vmatpush1.msra.mxu0 %v240
      %307 = vmatprep.subr.mxu0 0.0
      %308 = vmatpush1.msra.mxu0 %v241
      %309 = vmatprep.subr.mxu0 0.0
      %310 = vmatpush1.msra.mxu0 %v242
      %311 = vmatprep.subr.mxu0 0.0
      %312 = vmatpush1.msra.mxu0 %v243
      %313 = vmatprep.subr.mxu0 0.0
      %314 = vmatpush1.msra.mxu0 %v244
      %315 = vmatprep.subr.mxu0 0.0
      %316 = vmatpush1.msra.mxu0 %v245
      %317 = vmatprep.subr.mxu0 0.0
      %318 = vmatpush1.msra.mxu0 %v246
      %319 = vmatprep.subr.mxu0 0.0
      %320 = vmatpush1.msra.mxu0 %v247
      %321 = vmatprep.subr.mxu0 0.0
      %322 = vmatpush1.msra.mxu0 %v248
      %323 = vmatprep.subr.mxu0 0.0
      %324 = vmatpush1.msra.mxu0 %v249
      %325 = vmatprep.subr.mxu0 0.0
      %326 = vmatpush1.msra.mxu0 %v250
      %327 = vmatprep.subr.mxu0 0.0
      %328 = vmatpush1.msra.mxu0 %v251
      %329 = vmatprep.subr.mxu0 0.0
      %330 = vmatpush1.msra.mxu0 %v252
      %331 = vmatprep.subr.mxu0 0.0
      %332 = vmatpush1.msra.mxu0 %v253
      %333 = vmatprep.subr.mxu0 0.0
      %334 = vmatpush1.msra.mxu0 %v254
      %335 = vmatprep.subr.mxu0 0.0
      %336 = vmatpush1.msra.mxu0 %v255
      %337 = vmatprep.subr.mxu0 0.0
      %338 = vmatpush1.msra.mxu0 %v256
      %339 = vmatprep.subr.mxu0 0.0
      %340 = vmatpush1.msra.mxu0 %v257
      %341 = vmatprep.subr.mxu0 0.0
      %342 = vmatpush1.msra.mxu0 %v258
      %343 = vmatprep.mubr.f32.mxu0 %v278
      %344 = vmatmul.mubr.f32.gmra.mrb[0].mxu0 %v272
      %v345 = vpop.f32.mrb[0].mxu0
      %v346 = vadd.f32 0.0, %v345
      %v347 = vpop.f32.mrb[0].mxu0
      %348 = vdwg.mxu0
      %v349 = vrcp.pop 64.0
      %v350 = vmul.f32 %v346, %v349
      %vm351 = vcmask 261120
      %v353 = vsel %vm351, %v350, 0
      %355 = vmatprep.subr.mxu0 %v260
      %356 = vmatpush1.msra.mxu0 %v259
      %357 = vmatprep.subr.mxu0 %v262
      %358 = vmatpush1.msra.mxu0 %v261
      %359 = vmatprep.subr.mxu0 %v264
      %360 = vmatpush1.msra.mxu0 %v263
      %361 = vmatprep.subr.mxu0 %v266
      %362 = vmatpush1.msra.mxu0 %v265
      %363 = vmatprep.subr.mxu0 0.0
      %364 = vmatpush1.msra.mxu0 0.0
      %365 = vmatprep.subr.mxu0 0.0
      %366 = vmatpush1.msra.mxu0 0.0
      %367 = vmatprep.subr.mxu0 0.0
      %368 = vmatpush1.msra.mxu0 0.0
      %369 = vmatprep.subr.mxu0 0.0
      %370 = vmatpush1.msra.mxu0 0.0
      %371 = vmatprep.subr.mxu0 0.0
      %372 = vmatpush1.msra.mxu0 0.0
      %373 = vmatprep.subr.mxu0 0.0
      %374 = vmatpush1.msra.mxu0 0.0
      %375 = vmatprep.subr.mxu0 0.0
      %376 = vmatpush1.msra.mxu0 0.0
      %377 = vmatprep.subr.mxu0 0.0
      %378 = vmatpush1.msra.mxu0 0.0
      %379 = vmatprep.subr.mxu0 0.0
      %380 = vmatpush1.msra.mxu0 0.0
      %381 = vmatprep.subr.mxu0 0.0
      %382 = vmatpush1.msra.mxu0 0.0
      %383 = vmatprep.subr.mxu0 0.0
      %384 = vmatpush1.msra.mxu0 0.0
      %385 = vmatprep.subr.mxu0 0.0
      %386 = vmatpush1.msra.mxu0 0.0
      %387 = vmatprep.subr.mxu0 0.0
      %388 = vmatpush1.msra.mxu0 0.0
      %389 = vmatprep.subr.mxu0 0.0
      %390 = vmatpush1.msra.mxu0 0.0
      %391 = vmatprep.subr.mxu0 0.0
      %392 = vmatpush1.msra.mxu0 0.0
      %393 = vmatprep.subr.mxu0 0.0
      %394 = vmatpush1.msra.mxu0 0.0
      %395 = vmatprep.subr.mxu0 0.0
      %396 = vmatpush1.msra.mxu0 0.0
      %397 = vmatprep.subr.mxu0 0.0
      %398 = vmatpush1.msra.mxu0 0.0
      %399 = vmatprep.subr.mxu0 0.0
      %400 = vmatpush1.msra.mxu0 0.0
      %401 = vmatprep.subr.mxu0 0.0
      %402 = vmatpush1.msra.mxu0 0.0
      %403 = vmatprep.subr.mxu0 0.0
      %404 = vmatpush1.msra.mxu0 0.0
      %405 = vmatprep.subr.mxu0 0.0
      %406 = vmatpush1.msra.mxu0 0.0
      %407 = vmatprep.subr.mxu0 0.0
      %408 = vmatpush1.msra.mxu0 0.0
      %409 = vmatprep.subr.mxu0 0.0
      %410 = vmatpush1.msra.mxu0 0.0
      %411 = vmatprep.subr.mxu0 0.0
      %412 = vmatpush1.msra.mxu0 0.0
      %413 = vmatprep.subr.mxu0 0.0
      %414 = vmatpush1.msra.mxu0 0.0
      %415 = vmatprep.subr.mxu0 0.0
      %416 = vmatpush1.msra.mxu0 0.0
      %417 = vmatprep.subr.mxu0 0.0
      %418 = vmatpush1.msra.mxu0 0.0
      %419 = vmatprep.mubr.f32.mxu0 0.0
      %420 = vmatmul.mubr.f32.gmra.mrb[0].mxu0 %v353
      %v421 = vpop.f32.mrb[0].mxu0
      %v422 = vadd.f32 0.0, %v421
      %v423 = vpop.f32.mrb[0].mxu0
      %v424 = vadd.f32 0.0, %v423
      %425 = vdwg.mxu0
      %v426 = vlaneseq
      %v427 = vshrl.u32 %v426, 7
      %v428 = vsub.s32 0, %v427
      %v429 = vrot.slane %v422, %v428
      %v430 = vlaneseq
      %v431 = vshrl.u32 %v430, 7
      %v432 = vsub.s32 0, %v431
      %v433 = vrot.slane %v424, %v432
      %v434 = vsub.f32 %v225, %v429
      %v435 = vsub.f32 %v226, %v433
      %v436 = vmul.f32 %v434, %v434
      %v437 = vmul.f32 %v435, %v435
      %v438 = vrot.slane %v436, 4
      %v439 = vadd.f32 %v436, %v438
      %v440 = vrot.slane %v439, 2
      %v441 = vadd.f32 %v439, %v440
      %v442 = vrot.slane %v441, 1
      %v443 = vadd.f32 %v441, %v442
      %v444 = vrot.slane %v437, 4
      %v445 = vadd.f32 %v437, %v444
      %v446 = vrot.slane %v445, 2
      %v447 = vadd.f32 %v445, %v446
      %v448 = vrot.slane %v447, 1
      %v449 = vadd.f32 %v447, %v448
      %450 = vmatprep.subr.mxu0 0.0
      %451 = vmatpush1.msra.mxu0 %v227
      %452 = vmatprep.subr.mxu0 0.0
      %453 = vmatpush1.msra.mxu0 %v228
      %454 = vmatprep.subr.mxu0 0.0
      %455 = vmatpush1.msra.mxu0 %v229
      %456 = vmatprep.subr.mxu0 0.0
      %457 = vmatpush1.msra.mxu0 %v230
      %458 = vmatprep.subr.mxu0 0.0
      %459 = vmatpush1.msra.mxu0 %v231
      %460 = vmatprep.subr.mxu0 0.0
      %461 = vmatpush1.msra.mxu0 %v232
      %462 = vmatprep.subr.mxu0 0.0
      %463 = vmatpush1.msra.mxu0 %v233
      %464 = vmatprep.subr.mxu0 0.0
      %465 = vmatpush1.msra.mxu0 %v234
      %466 = vmatprep.subr.mxu0 0.0
      %467 = vmatpush1.msra.mxu0 %v235
      %468 = vmatprep.subr.mxu0 0.0
      %469 = vmatpush1.msra.mxu0 %v236
      %470 = vmatprep.subr.mxu0 0.0
      %471 = vmatpush1.msra.mxu0 %v237
      %472 = vmatprep.subr.mxu0 0.0
      %473 = vmatpush1.msra.mxu0 %v238
      %474 = vmatprep.subr.mxu0 0.0
      %475 = vmatpush1.msra.mxu0 %v239
      %476 = vmatprep.subr.mxu0 0.0
      %477 = vmatpush1.msra.mxu0 %v240
      %478 = vmatprep.subr.mxu0 0.0
      %479 = vmatpush1.msra.mxu0 %v241
      %480 = vmatprep.subr.mxu0 0.0
      %481 = vmatpush1.msra.mxu0 %v242
      %482 = vmatprep.subr.mxu0 0.0
      %483 = vmatpush1.msra.mxu0 %v243
      %484 = vmatprep.subr.mxu0 0.0
      %485 = vmatpush1.msra.mxu0 %v244
      %486 = vmatprep.subr.mxu0 0.0
      %487 = vmatpush1.msra.mxu0 %v245
      %488 = vmatprep.subr.mxu0 0.0
      %489 = vmatpush1.msra.mxu0 %v246
      %490 = vmatprep.subr.mxu0 0.0
      %491 = vmatpush1.msra.mxu0 %v247
      %492 = vmatprep.subr.mxu0 0.0
      %493 = vmatpush1.msra.mxu0 %v248
      %494 = vmatprep.subr.mxu0 0.0
      %495 = vmatpush1.msra.mxu0 %v249
      %496 = vmatprep.subr.mxu0 0.0
      %497 = vmatpush1.msra.mxu0 %v250
      %498 = vmatprep.subr.mxu0 0.0
      %499 = vmatpush1.msra.mxu0 %v251
      %500 = vmatprep.subr.mxu0 0.0
      %501 = vmatpush1.msra.mxu0 %v252
      %502 = vmatprep.subr.mxu0 0.0
      %503 = vmatpush1.msra.mxu0 %v253
      %504 = vmatprep.subr.mxu0 0.0
      %505 = vmatpush1.msra.mxu0 %v254
      %506 = vmatprep.subr.mxu0 0.0
      %507 = vmatpush1.msra.mxu0 %v255
      %508 = vmatprep.subr.mxu0 0.0
      %509 = vmatpush1.msra.mxu0 %v256
      %510 = vmatprep.subr.mxu0 0.0
      %511 = vmatpush1.msra.mxu0 %v257
      %512 = vmatprep.subr.mxu0 0.0
      %513 = vmatpush1.msra.mxu0 %v258
      %514 = vmatprep.mubr.f32.mxu0 %v449
      %515 = vmatmul.mubr.f32.gmra.mrb[0].mxu0 %v443
      %v516 = vpop.f32.mrb[0].mxu0
      %v517 = vadd.f32 0.0, %v516
      %v518 = vpop.f32.mrb[0].mxu0
      %519 = vdwg.mxu0
      %v520 = vmul.f32 %v517, %v349
      %v521 = vadd.f32 %v520, 1e-05
      %v522 = vrsqrt.pop %v521
      %v524 = vsel %vm351, %v522, 0
      %526 = vmatprep.subr.mxu0 %v260
      %527 = vmatpush1.msra.mxu0 %v259
      %528 = vmatprep.subr.mxu0 %v262
      %529 = vmatpush1.msra.mxu0 %v261
      %530 = vmatprep.subr.mxu0 %v264
      %531 = vmatpush1.msra.mxu0 %v263
      %532 = vmatprep.subr.mxu0 %v266
      %533 = vmatpush1.msra.mxu0 %v265
      %534 = vmatprep.subr.mxu0 0.0
      %535 = vmatpush1.msra.mxu0 0.0
      %536 = vmatprep.subr.mxu0 0.0
      %537 = vmatpush1.msra.mxu0 0.0
      %538 = vmatprep.subr.mxu0 0.0
      %539 = vmatpush1.msra.mxu0 0.0
      %540 = vmatprep.subr.mxu0 0.0
      %541 = vmatpush1.msra.mxu0 0.0
      %542 = vmatprep.subr.mxu0 0.0
      %543 = vmatpush1.msra.mxu0 0.0
      %544 = vmatprep.subr.mxu0 0.0
      %545 = vmatpush1.msra.mxu0 0.0
      %546 = vmatprep.subr.mxu0 0.0
      %547 = vmatpush1.msra.mxu0 0.0
      %548 = vmatprep.subr.mxu0 0.0
      %549 = vmatpush1.msra.mxu0 0.0
      %550 = vmatprep.subr.mxu0 0.0
      %551 = vmatpush1.msra.mxu0 0.0
      %552 = vmatprep.subr.mxu0 0.0
      %553 = vmatpush1.msra.mxu0 0.0
      %554 = vmatprep.subr.mxu0 0.0
      %555 = vmatpush1.msra.mxu0 0.0
      %556 = vmatprep.subr.mxu0 0.0
      %557 = vmatpush1.msra.mxu0 0.0
      %558 = vmatprep.subr.mxu0 0.0
      %559 = vmatpush1.msra.mxu0 0.0
      %560 = vmatprep.subr.mxu0 0.0
      %561 = vmatpush1.msra.mxu0 0.0
      %562 = vmatprep.subr.mxu0 0.0
      %563 = vmatpush1.msra.mxu0 0.0
      %564 = vmatprep.subr.mxu0 0.0
      %565 = vmatpush1.msra.mxu0 0.0
      %566 = vmatprep.subr.mxu0 0.0
      %567 = vmatpush1.msra.mxu0 0.0
      %568 = vmatprep.subr.mxu0 0.0
      %569 = vmatpush1.msra.mxu0 0.0
      %570 = vmatprep.subr.mxu0 0.0
      %571 = vmatpush1.msra.mxu0 0.0
      %572 = vmatprep.subr.mxu0 0.0
      %573 = vmatpush1.msra.mxu0 0.0
      %574 = vmatprep.subr.mxu0 0.0
      %575 = vmatpush1.msra.mxu0 0.0
      %576 = vmatprep.subr.mxu0 0.0
      %577 = vmatpush1.msra.mxu0 0.0
      %578 = vmatprep.subr.mxu0 0.0
      %579 = vmatpush1.msra.mxu0 0.0
      %580 = vmatprep.subr.mxu0 0.0
      %581 = vmatpush1.msra.mxu0 0.0
      %582 = vmatprep.subr.mxu0 0.0
      %583 = vmatpush1.msra.mxu0 0.0
      %584 = vmatprep.subr.mxu0 0.0
      %585 = vmatpush1.msra.mxu0 0.0
      %586 = vmatprep.subr.mxu0 0.0
      %587 = vmatpush1.msra.mxu0 0.0
      %588 = vmatprep.subr.mxu0 0.0
      %589 = vmatpush1.msra.mxu0 0.0
      %590 = vmatprep.mubr.f32.mxu0 0.0
      %591 = vmatmul.mubr.f32.gmra.mrb[0].mxu0 %v524
      %v592 = vpop.f32.mrb[0].mxu0
      %v593 = vadd.f32 0.0, %v592
      %v594 = vpop.f32.mrb[0].mxu0
      %v595 = vadd.f32 0.0, %v594
      %596 = vdwg.mxu0
      %v597 = vld [vmem:[%s1] sm:$0x3]
      %v599 = vlaneseq
      %v600 = vshrl.u32 %v599, 7
      %v601 = vsub.s32 0, %v600
      %v602 = vrot.slane %v597, %v601
      %v603 = vlaneseq
      %v604 = vshrl.u32 %v603, 7
      %v605 = vsub.s32 1, %v604
      %v606 = vrot.slane %v597, %v605
      %v609 = vmul.f32 %v593, %v602
      %v610 = vmul.f32 %v595, %v606
      %v611 = vld [vmem:[%s2] sm:$0x3]
      %v612 = vlaneseq
      %v613 = vshrl.u32 %v612, 7
      %v614 = vsub.s32 0, %v613
      %v615 = vrot.slane %v609, %v614
      %v616 = vlaneseq
      %v617 = vshrl.u32 %v616, 7
      %v618 = vsub.s32 0, %v617
      %v619 = vrot.slane %v610, %v618
      %v620 = vmul.f32 %v434, %v615
      %v621 = vmul.f32 %v435, %v619
      %v623 = vlaneseq
      %v624 = vshrl.u32 %v623, 7
      %v625 = vsub.s32 0, %v624
      %v626 = vrot.slane %v611, %v625
      %v627 = vlaneseq
      %v628 = vshrl.u32 %v627, 7
      %v629 = vsub.s32 1, %v628
      %v630 = vrot.slane %v611, %v629
      %v633 = vadd.f32 %v620, %v626
      %v634 = vadd.f32 %v621, %v630
      %v635 = vmax.f32 %v633, 0.0
      %v636 = vmax.f32 %v634, 0.0
      %v637 = vpack.c.bf16 %v635, %v635
      %v638 = vpack.c.bf16 %v636, %v636
      %v641 = vunpack.c.l.b16 %v637
      %v642 = vunpack.c.l.b16 %v638
      %v643 = vpack.c.b16 %v642, %v641
      %645 = vst [vmem:[%s224] sm:$0xff] %v643
      %p646 = scmp.lt.s32.totalorder %s16, 1
      %s647 = scalar_select %p646, %s16, 1
      %s648 = smul.addr %s647, 2
      %s649 = smul.addr %s648, 4
      %s650 = scalar_lea.vmem %s5, %s649
      // Predicated region
      $region41: #{block_forward.5} parent=39 // pred_check
        %p651 = pneg %p144
      $region42: #{block_forward.5} parent=39 // pred_check_branch
        %653 = sbr.rel (%p651) target = $region44
      $region43: #{block_forward.5} parent=39 // pred_region
        _
      $region44: #{block_forward.5} parent=39 // pred_fallthru
        _
    $region40: #{block_forward.5} parent=5 // pred_fallthru
      _
    %p654 = scmp.le.s32.totalorder 2, %s11
    // Predicated region
    $region45: #{block_forward.5} parent=5 // pred_check
      %p655 = pneg %p654
    $region46: #{block_forward.5} parent=5 // pred_check_branch
      %657 = sbr.rel (%p655) target = $region48
    $region47: #{block_forward.5} parent=5 // pred_region
      %s658 = ssub.s32 %s11, 2
      // Predicated region
      $region49: #{block_forward.5} parent=47 // pred_check
        %p659 = pneg %p150
      $region50: #{block_forward.5} parent=47 // pred_check_branch
        %661 = sbr.rel (%p659) target = $region52
      $region51: #{block_forward.5} parent=47 // pred_region
        %p662 = scmp.lt.s32.totalorder %s17, 1
        %s663 = scalar_select %p662, %s17, 1
        %s664 = smul.addr %s663, 2
        %s665 = smul.addr %s664, 4
        %s666 = scalar_lea.vmem %s5, %s665
      $region52: #{block_forward.5} parent=47 // pred_fallthru
        _
    $region48: #{block_forward.5} parent=5 // pred_fallthru
      _
  $region6: #{block_forward.5} parent=0 // loop_footer
    %s15 = sadd.s32 1, %s11
  $region7: #{block_forward.5} parent=0 // loop_footer_branch
    %10 = sbr.rel target = $region3
  $region8: #{block_forward.5} parent=0 // loop_exit
    _

// kernel: block_forward.8
$region0: #{block_forward.8}
  #allocation0 [shape = 'u32[]', space=smem, size = 0x4, offset = 0x4, fixed_abs, tag = 'smem constant byte address 0x4 - core index']
  #allocation1 [shape = 'u32[144,128]{1,0:T(1,128)}', space=vmem, size = 0x12000, scoped, tag = 'internal scratch']
  %s0 = inlined_call_operand.vmem [shape: bf16[2,4,256], index: 0, kind: input, shape index: {}]
  %s1 = inlined_call_operand.vmem [shape: f32[1,256], index: 1, kind: input, shape index: {}]
  %s2 = inlined_call_operand.vmem [shape: f32[1,256], index: 2, kind: input, shape index: {}]
  %s3 = inlined_call_operand.vmem [shape: f32[256,32], index: 3, kind: input, shape index: {}]
  %s4 = inlined_call_operand.vmem [shape: f32[32,256], index: 4, kind: input, shape index: {}]
  %s5 = inlined_call_operand.vmem [shape: bf16[2,4,256], index: 5, kind: output, shape index: {}]
  %s6 = sld [smem:[#allocation0]]
  $region53: #{block_forward.8} parent=0
    _
  %s8 = ssub.s32 1, %s6
  %s9 = scalar_select 0, %s8, %s6
  loop: start=0, step=1, limit=4
  $region2: #{block_forward.8} parent=0 // loop_pre_header
    _
  $region3: #{block_forward.8} parent=0 // loop_header
    %s11 = sphi 0, %s15
    %p12 = scmp.ge.s32.totalorder %s11, 4
    %s21 = sphi 0, %s23
    %s24 = sphi 0, %s21
    %s25 = sphi 0, %s24
    %s41 = sphi 0, %s25
    %s45 = sphi 0, %s45
    %s47 = sphi 0, %s45
    %s48 = sphi 0, %s47
    %s62 = sphi 0, %s48
    %s66 = sphi 0, %s66
    %s68 = sphi 0, %s66
    %s69 = sphi 0, %s68
    %s83 = sphi 0, %s69
    %s87 = sphi 0, %s87
    %s89 = sphi 0, %s87
    %s90 = sphi 0, %s89
    %s104 = sphi 0, %s90
    %s108 = sphi 0, %s108
    %s110 = sphi 0, %s108
    %s111 = sphi 0, %s110
    %s125 = sphi 0, %s111
    %s131 = sphi 0, %s133
    %s134 = sphi 0, %s131
    %s135 = sphi 0, %s134
    %s151 = sphi 0, %s135
  $region4: #{block_forward.8} parent=0 // loop_header_branch
    %14 = sbr.rel (%p12) target = $region8
  $region5: #{block_forward.8} parent=0 // loop_body
    %s16 = ssub.s32 %s11, 1
    %s17 = ssub.s32 %s11, 2
    %s18 = sadd.s32 %s11, 1
    %s19 = ssub.s32 %s11, %s18
    %p20 = scmp.eq.s32.totalorder %s19, 0
    %s22 = sadd.s32 %s21, 1
    %s23 = scalar_select %p20, %s21, %s22
    %p26 = pneg %p20
    %p27 = scmp.eq.s32.totalorder %s11, 1
    %p28 = por %p26, %p27
    %p29 = scmp.ne.s32.totalorder %s21, %s24
    %p30 = scmp.eq.s32.totalorder %s11, 0
    %p31 = por %p29, %p30
    %p32 = scmp.ne.s32.totalorder %s21, %s24
    %p33 = scmp.eq.s32.totalorder %s16, 1
    %p34 = por %p32, %p33
    %p35 = scmp.ne.s32.totalorder %s24, %s25
    %p36 = scmp.eq.s32.totalorder %s16, 0
    %p37 = por %p35, %p36
    %p38 = scmp.ne.s32.totalorder %s24, %s25
    %p39 = scmp.eq.s32.totalorder %s17, 1
    %p40 = por %p38, %p39
    %p42 = scmp.ne.s32.totalorder %s25, %s41
    %p43 = scmp.eq.s32.totalorder %s17, 0
    %p44 = por %p42, %p43
    %s46 = sadd.s32 %s45, 1
    %p49 = scmp.eq.s32.totalorder %s11, 1
    %p50 = scmp.ne.s32.totalorder %s45, %s47
    %p51 = scmp.eq.s32.totalorder %s11, 0
    %p52 = por %p50, %p51
    %p53 = scmp.ne.s32.totalorder %s45, %s47
    %p54 = scmp.eq.s32.totalorder %s16, 1
    %p55 = por %p53, %p54
    %p56 = scmp.ne.s32.totalorder %s47, %s48
    %p57 = scmp.eq.s32.totalorder %s16, 0
    %p58 = por %p56, %p57
    %p59 = scmp.ne.s32.totalorder %s47, %s48
    %p60 = scmp.eq.s32.totalorder %s17, 1
    %p61 = por %p59, %p60
    %p63 = scmp.ne.s32.totalorder %s48, %s62
    %p64 = scmp.eq.s32.totalorder %s17, 0
    %p65 = por %p63, %p64
    %s67 = sadd.s32 %s66, 1
    %p70 = scmp.eq.s32.totalorder %s11, 1
    %p71 = scmp.ne.s32.totalorder %s66, %s68
    %p72 = scmp.eq.s32.totalorder %s11, 0
    %p73 = por %p71, %p72
    %p74 = scmp.ne.s32.totalorder %s66, %s68
    %p75 = scmp.eq.s32.totalorder %s16, 1
    %p76 = por %p74, %p75
    %p77 = scmp.ne.s32.totalorder %s68, %s69
    %p78 = scmp.eq.s32.totalorder %s16, 0
    %p79 = por %p77, %p78
    %p80 = scmp.ne.s32.totalorder %s68, %s69
    %p81 = scmp.eq.s32.totalorder %s17, 1
    %p82 = por %p80, %p81
    %p84 = scmp.ne.s32.totalorder %s69, %s83
    %p85 = scmp.eq.s32.totalorder %s17, 0
    %p86 = por %p84, %p85
    %s88 = sadd.s32 %s87, 1
    %p91 = scmp.eq.s32.totalorder %s11, 1
    %p92 = scmp.ne.s32.totalorder %s87, %s89
    %p93 = scmp.eq.s32.totalorder %s11, 0
    %p94 = por %p92, %p93
    %p95 = scmp.ne.s32.totalorder %s87, %s89
    %p96 = scmp.eq.s32.totalorder %s16, 1
    %p97 = por %p95, %p96
    %p98 = scmp.ne.s32.totalorder %s89, %s90
    %p99 = scmp.eq.s32.totalorder %s16, 0
    %p100 = por %p98, %p99
    %p101 = scmp.ne.s32.totalorder %s89, %s90
    %p102 = scmp.eq.s32.totalorder %s17, 1
    %p103 = por %p101, %p102
    %p105 = scmp.ne.s32.totalorder %s90, %s104
    %p106 = scmp.eq.s32.totalorder %s17, 0
    %p107 = por %p105, %p106
    %s109 = sadd.s32 %s108, 1
    %p112 = scmp.eq.s32.totalorder %s11, 1
    %p113 = scmp.ne.s32.totalorder %s108, %s110
    %p114 = scmp.eq.s32.totalorder %s11, 0
    %p115 = por %p113, %p114
    %p116 = scmp.ne.s32.totalorder %s108, %s110
    %p117 = scmp.eq.s32.totalorder %s16, 1
    %p118 = por %p116, %p117
    %p119 = scmp.ne.s32.totalorder %s110, %s111
    %p120 = scmp.eq.s32.totalorder %s16, 0
    %p121 = por %p119, %p120
    %p122 = scmp.ne.s32.totalorder %s110, %s111
    %p123 = scmp.eq.s32.totalorder %s17, 1
    %p124 = por %p122, %p123
    %p126 = scmp.ne.s32.totalorder %s111, %s125
    %p127 = scmp.eq.s32.totalorder %s17, 0
    %p128 = por %p126, %p127
    %s129 = ssub.s32 %s11, %s18
    %p130 = scmp.eq.s32.totalorder %s129, 0
    %s132 = sadd.s32 %s131, 1
    %s133 = scalar_select %p130, %s131, %s132
    %p136 = pneg %p130
    %p137 = scmp.eq.s32.totalorder %s11, 1
    %p138 = por %p136, %p137
    %p139 = scmp.ne.s32.totalorder %s131, %s134
    %p140 = scmp.eq.s32.totalorder %s11, 0
    %p141 = por %p139, %p140
    %p142 = scmp.ne.s32.totalorder %s131, %s134
    %p143 = scmp.eq.s32.totalorder %s16, 1
    %p144 = por %p142, %p143
    %p145 = scmp.ne.s32.totalorder %s134, %s135
    %p146 = scmp.eq.s32.totalorder %s16, 0
    %p147 = por %p145, %p146
    %p148 = scmp.ne.s32.totalorder %s134, %s135
    %p149 = scmp.eq.s32.totalorder %s17, 1
    %p150 = por %p148, %p149
    %p152 = scmp.ne.s32.totalorder %s135, %s151
    %p153 = scmp.eq.s32.totalorder %s17, 0
    %p154 = por %p152, %p153
    %p155 = scmp.le.s32.totalorder 1, %s11
    %p156 = scmp.lt.s32.totalorder %s11, 3
    %p157 = pnand %p155, %p156
    %p158 = pneg %p157
    // Predicated region
    $region9: #{block_forward.8} parent=5 // pred_check
      _
    $region10: #{block_forward.8} parent=5 // pred_check_branch
      %160 = sbr.rel (%p157) target = $region12
    $region11: #{block_forward.8} parent=5 // pred_region
      %s161 = ssub.s32 %s11, 1
      // Predicated region
      $region13: #{block_forward.8} parent=11 // pred_check
        %p162 = pneg %p58
      $region14: #{block_forward.8} parent=11 // pred_check_branch
        %164 = sbr.rel (%p162) target = $region16
      $region15: #{block_forward.8} parent=11 // pred_region
        _
      $region16: #{block_forward.8} parent=11 // pred_fallthru
        _
      // Predicated region
      $region17: #{block_forward.8} parent=11 // pred_check
        %p165 = pneg %p79
      $region18: #{block_forward.8} parent=11 // pred_check_branch
        %167 = sbr.rel (%p165) target = $region20
      $region19: #{block_forward.8} parent=11 // pred_region
        _
      $region20: #{block_forward.8} parent=11 // pred_fallthru
        _
      // Predicated region
      $region21: #{block_forward.8} parent=11 // pred_check
        %p168 = pneg %p100
      $region22: #{block_forward.8} parent=11 // pred_check_branch
        %170 = sbr.rel (%p168) target = $region24
      $region23: #{block_forward.8} parent=11 // pred_region
        _
      $region24: #{block_forward.8} parent=11 // pred_fallthru
        _
      // Predicated region
      $region25: #{block_forward.8} parent=11 // pred_check
        %p171 = pneg %p121
      $region26: #{block_forward.8} parent=11 // pred_check_branch
        %173 = sbr.rel (%p171) target = $region28
      $region27: #{block_forward.8} parent=11 // pred_region
        _
      $region28: #{block_forward.8} parent=11 // pred_fallthru
        _
    $region12: #{block_forward.8} parent=5 // pred_fallthru
      _
    %p174 = scmp.lt.s32.totalorder %s11, 2
    // Predicated region
    $region29: #{block_forward.8} parent=5 // pred_check
      %p175 = pneg %p174
    $region30: #{block_forward.8} parent=5 // pred_check_branch
      %177 = sbr.rel (%p175) target = $region32
    $region31: #{block_forward.8} parent=5 // pred_region
      // Predicated region
      $region33: #{block_forward.8} parent=31 // pred_check
        %p178 = pneg %p31
      $region34: #{block_forward.8} parent=31 // pred_check_branch
        %180 = sbr.rel (%p178) target = $region36
      $region35: #{block_forward.8} parent=31 // pred_region
        %p181 = scmp.lt.s32.totalorder %s11, 1
        %s182 = scalar_select %p181, %s11, 1
        %s183 = smul.addr %s182, 2
        %s184 = smul.addr %s183, 2
        %s185 = scalar_lea.vmem %s0, %s184
      $region36: #{block_forward.8} parent=31 // pred_fallthru
        _
    $region32: #{block_forward.8} parent=5 // pred_fallthru
      _
    %p186 = scmp.le.s32.totalorder 1, %s11
    %p187 = scmp.lt.s32.totalorder %s11, 3
    %p188 = pnand %p186, %p187
    %p189 = pneg %p188
    // Predicated region
    $region37: #{block_forward.8} parent=5 // pred_check
      _
    $region38: #{block_forward.8} parent=5 // pred_check_branch
      %191 = sbr.rel (%p188) target = $region40
    $region39: #{block_forward.8} parent=5 // pred_region
      %s192 = ssub.s32 %s11, 1
      %p193 = scmp.lt.s32.totalorder %s16, 1
      %s194 = scalar_select %p193, %s16, 1
      %s195 = smul.addr %s194, 2
      %s196 = smul.addr %s195, 2
      %s197 = scalar_lea.vmem %s0, %s196
      %p198 = pneg %p37
      %p199 = pneg %p34
      %p200 = pneg %p58
      %p201 = pneg %p55
      %p202 = pneg %p79
      %p203 = pneg %p76
      %p204 = pneg %p100
      %p205 = pneg %p97
      %p206 = pneg %p121
      %p207 = pneg %p118
      %p208 = pneg %p147
      %p209 = pneg %p144
      %p210 = scmp.lt.s32.totalorder %s16, 1
      %s211 = scalar_select %p210, %s16, 1
      %s212 = smul.addr %s211, 2
      %s213 = smul.addr %s212, 2
      %s214 = scalar_lea.vmem %s5, %s213
      %p215 = scmp.lt.s32.totalorder %s16, 1
      %s216 = scalar_select %p215, %s16, 1
      %s217 = smul.addr %s216, 2
      %s218 = smul.addr %s217, 2
      %s219 = scalar_lea.vmem %s0, %s218
      %p220 = scmp.lt.s32.totalorder %s16, 1
      %s221 = scalar_select %p220, %s16, 1
      %s222 = smul.addr %s221, 2
      %s223 = smul.addr %s222, 2
      %s224 = scalar_lea.vmem %s5, %s223
      %v225 = vld [vmem:[%s219] sm:$0xf]
      %v226 = vunpack.c.l.bf16 %v225
      %v227 = vld [vmem:[%s3] sm:$0xff]
      %v228 = vld [vmem:[%s3 + $0x8] sm:$0xff]
      %v229 = vld [vmem:[%s3 + $0x10] sm:$0xff]
      %v230 = vld [vmem:[%s3 + $0x18] sm:$0xff]
      %v231 = vld [vmem:[%s3 + $0x20] sm:$0xff]
      %v232 = vld [vmem:[%s3 + $0x28] sm:$0xff]
      %v233 = vld [vmem:[%s3 + $0x30] sm:$0xff]
      %v234 = vld [vmem:[%s3 + $0x38] sm:$0xff]
      %v235 = vld [vmem:[%s3 + $0x40] sm:$0xff]
      %v236 = vld [vmem:[%s3 + $0x48] sm:$0xff]
      %v237 = vld [vmem:[%s3 + $0x50] sm:$0xff]
      %v238 = vld [vmem:[%s3 + $0x58] sm:$0xff]
      %v239 = vld [vmem:[%s3 + $0x60] sm:$0xff]
      %v240 = vld [vmem:[%s3 + $0x68] sm:$0xff]
      %v241 = vld [vmem:[%s3 + $0x70] sm:$0xff]
      %v242 = vld [vmem:[%s3 + $0x78] sm:$0xff]
      %v243 = vld [vmem:[%s3 + $0x80] sm:$0xff]
      %v244 = vld [vmem:[%s3 + $0x88] sm:$0xff]
      %v245 = vld [vmem:[%s3 + $0x90] sm:$0xff]
      %v246 = vld [vmem:[%s3 + $0x98] sm:$0xff]
      %v247 = vld [vmem:[%s3 + $0xa0] sm:$0xff]
      %v248 = vld [vmem:[%s3 + $0xa8] sm:$0xff]
      %v249 = vld [vmem:[%s3 + $0xb0] sm:$0xff]
      %v250 = vld [vmem:[%s3 + $0xb8] sm:$0xff]
      %v251 = vld [vmem:[%s3 + $0xc0] sm:$0xff]
      %v252 = vld [vmem:[%s3 + $0xc8] sm:$0xff]
      %v253 = vld [vmem:[%s3 + $0xd0] sm:$0xff]
      %v254 = vld [vmem:[%s3 + $0xd8] sm:$0xff]
      %v255 = vld [vmem:[%s3 + $0xe0] sm:$0xff]
      %v256 = vld [vmem:[%s3 + $0xe8] sm:$0xff]
      %v257 = vld [vmem:[%s3 + $0xf0] sm:$0xff]
      %v258 = vld [vmem:[%s3 + $0xf8] sm:$0xff]
      %v259 = vld [vmem:[%s4] sm:$0xff]
      %v260 = vld [vmem:[%s4 + $0x8] sm:$0xff]
      %v261 = vld [vmem:[%s4 + $0x10] sm:$0xff]
      %v262 = vld [vmem:[%s4 + $0x18] sm:$0xff]
      %v263 = vld [vmem:[%s4 + $0x20] sm:$0xff]
      %v264 = vld [vmem:[%s4 + $0x28] sm:$0xff]
      %v265 = vld [vmem:[%s4 + $0x30] sm:$0xff]
      %v266 = vld [vmem:[%s4 + $0x38] sm:$0xff]
      %v268 = vcombine.high %v226, %v226
      %vm270 = vcmask 1043456
      %v271 = vsel %vm270, %v226, 0.0
      %v272 = vrot.slane %v271, 4
      %v273 = vadd.f32 %v271, %v272
      %v274 = vrot.slane %v273, 2
      %v275 = vadd.f32 %v273, %v274
      %v276 = vrot.slane %v275, 1
      %v277 = vadd.f32 %v275, %v276
      %v278 = vsel %vm270, %v268, 0.0
      %v279 = vrot.slane %v278, 4
      %v280 = vadd.f32 %v278, %v279
      %v281 = vrot.slane %v280, 2
      %v282 = vadd.f32 %v280, %v281
      %v283 = vrot.slane %v282, 1
      %v284 = vadd.f32 %v282, %v283
      %285 = vmatprep.subr.mxu0 0.0
      %286 = vmatpush1.msra.mxu0 %v227
      %287 = vmatprep.subr.mxu0 0.0
      %288 = vmatpush1.msra.mxu0 %v228
      %289 = vmatprep.subr.mxu0 0.0
      %290 = vmatpush1.msra.mxu0 %v229
      %291 = vmatprep.subr.mxu0 0.0
      %292 = vmatpush1.msra.mxu0 %v230
      %293 = vmatprep.subr.mxu0 0.0
      %294 = vmatpush1.msra.mxu0 %v231
      %295 = vmatprep.subr.mxu0 0.0
      %296 = vmatpush1.msra.mxu0 %v232
      %297 = vmatprep.subr.mxu0 0.0
      %298 = vmatpush1.msra.mxu0 %v233
      %299 = vmatprep.subr.mxu0 0.0
      %300 = vmatpush1.msra.mxu0 %v234
      %301 = vmatprep.subr.mxu0 0.0
      %302 = vmatpush1.msra.mxu0 %v235
      %303 = vmatprep.subr.mxu0 0.0
      %304 = vmatpush1.msra.mxu0 %v236
      %305 = vmatprep.subr.mxu0 0.0
      %306 = vmatpush1.msra.mxu0 %v237
      %307 = vmatprep.subr.mxu0 0.0
      %308 = vmatpush1.msra.mxu0 %v238
      %309 = vmatprep.subr.mxu0 0.0
      %310 = vmatpush1.msra.mxu0 %v239
      %311 = vmatprep.subr.mxu0 0.0
      %312 = vmatpush1.msra.mxu0 %v240
      %313 = vmatprep.subr.mxu0 0.0
      %314 = vmatpush1.msra.mxu0 %v241
      %315 = vmatprep.subr.mxu0 0.0
      %316 = vmatpush1.msra.mxu0 %v242
      %317 = vmatprep.subr.mxu0 0.0
      %318 = vmatpush1.msra.mxu0 %v243
      %319 = vmatprep.subr.mxu0 0.0
      %320 = vmatpush1.msra.mxu0 %v244
      %321 = vmatprep.subr.mxu0 0.0
      %322 = vmatpush1.msra.mxu0 %v245
      %323 = vmatprep.subr.mxu0 0.0
      %324 = vmatpush1.msra.mxu0 %v246
      %325 = vmatprep.subr.mxu0 0.0
      %326 = vmatpush1.msra.mxu0 %v247
      %327 = vmatprep.subr.mxu0 0.0
      %328 = vmatpush1.msra.mxu0 %v248
      %329 = vmatprep.subr.mxu0 0.0
      %330 = vmatpush1.msra.mxu0 %v249
      %331 = vmatprep.subr.mxu0 0.0
      %332 = vmatpush1.msra.mxu0 %v250
      %333 = vmatprep.subr.mxu0 0.0
      %334 = vmatpush1.msra.mxu0 %v251
      %335 = vmatprep.subr.mxu0 0.0
      %336 = vmatpush1.msra.mxu0 %v252
      %337 = vmatprep.subr.mxu0 0.0
      %338 = vmatpush1.msra.mxu0 %v253
      %339 = vmatprep.subr.mxu0 0.0
      %340 = vmatpush1.msra.mxu0 %v254
      %341 = vmatprep.subr.mxu0 0.0
      %342 = vmatpush1.msra.mxu0 %v255
      %343 = vmatprep.subr.mxu0 0.0
      %344 = vmatpush1.msra.mxu0 %v256
      %345 = vmatprep.subr.mxu0 0.0
      %346 = vmatpush1.msra.mxu0 %v257
      %347 = vmatprep.subr.mxu0 0.0
      %348 = vmatpush1.msra.mxu0 %v258
      %349 = vmatprep.mubr.f32.mxu0 %v284
      %350 = vmatmul.mubr.f32.gmra.mrb[0].mxu0 %v277
      %v351 = vpop.f32.mrb[0].mxu0
      %v352 = vadd.f32 0.0, %v351
      %v353 = vpop.f32.mrb[0].mxu0
      %354 = vdwg.mxu0
      %v355 = vrcp.pop 32.0
      %v356 = vmul.f32 %v352, %v355
      %vm357 = vcmask 261120
      %v359 = vsel %vm357, %v356, 0
      %361 = vmatprep.subr.mxu0 %v260
      %362 = vmatpush1.msra.mxu0 %v259
      %363 = vmatprep.subr.mxu0 %v262
      %364 = vmatpush1.msra.mxu0 %v261
      %365 = vmatprep.subr.mxu0 %v264
      %366 = vmatpush1.msra.mxu0 %v263
      %367 = vmatprep.subr.mxu0 %v266
      %368 = vmatpush1.msra.mxu0 %v265
      %369 = vmatprep.subr.mxu0 0.0
      %370 = vmatpush1.msra.mxu0 0.0
      %371 = vmatprep.subr.mxu0 0.0
      %372 = vmatpush1.msra.mxu0 0.0
      %373 = vmatprep.subr.mxu0 0.0
      %374 = vmatpush1.msra.mxu0 0.0
      %375 = vmatprep.subr.mxu0 0.0
      %376 = vmatpush1.msra.mxu0 0.0
      %377 = vmatprep.subr.mxu0 0.0
      %378 = vmatpush1.msra.mxu0 0.0
      %379 = vmatprep.subr.mxu0 0.0
      %380 = vmatpush1.msra.mxu0 0.0
      %381 = vmatprep.subr.mxu0 0.0
      %382 = vmatpush1.msra.mxu0 0.0
      %383 = vmatprep.subr.mxu0 0.0
      %384 = vmatpush1.msra.mxu0 0.0
      %385 = vmatprep.subr.mxu0 0.0
      %386 = vmatpush1.msra.mxu0 0.0
      %387 = vmatprep.subr.mxu0 0.0
      %388 = vmatpush1.msra.mxu0 0.0
      %389 = vmatprep.subr.mxu0 0.0
      %390 = vmatpush1.msra.mxu0 0.0
      %391 = vmatprep.subr.mxu0 0.0
      %392 = vmatpush1.msra.mxu0 0.0
      %393 = vmatprep.subr.mxu0 0.0
      %394 = vmatpush1.msra.mxu0 0.0
      %395 = vmatprep.subr.mxu0 0.0
      %396 = vmatpush1.msra.mxu0 0.0
      %397 = vmatprep.subr.mxu0 0.0
      %398 = vmatpush1.msra.mxu0 0.0
      %399 = vmatprep.subr.mxu0 0.0
      %400 = vmatpush1.msra.mxu0 0.0
      %401 = vmatprep.subr.mxu0 0.0
      %402 = vmatpush1.msra.mxu0 0.0
      %403 = vmatprep.subr.mxu0 0.0
      %404 = vmatpush1.msra.mxu0 0.0
      %405 = vmatprep.subr.mxu0 0.0
      %406 = vmatpush1.msra.mxu0 0.0
      %407 = vmatprep.subr.mxu0 0.0
      %408 = vmatpush1.msra.mxu0 0.0
      %409 = vmatprep.subr.mxu0 0.0
      %410 = vmatpush1.msra.mxu0 0.0
      %411 = vmatprep.subr.mxu0 0.0
      %412 = vmatpush1.msra.mxu0 0.0
      %413 = vmatprep.subr.mxu0 0.0
      %414 = vmatpush1.msra.mxu0 0.0
      %415 = vmatprep.subr.mxu0 0.0
      %416 = vmatpush1.msra.mxu0 0.0
      %417 = vmatprep.subr.mxu0 0.0
      %418 = vmatpush1.msra.mxu0 0.0
      %419 = vmatprep.subr.mxu0 0.0
      %420 = vmatpush1.msra.mxu0 0.0
      %421 = vmatprep.subr.mxu0 0.0
      %422 = vmatpush1.msra.mxu0 0.0
      %423 = vmatprep.subr.mxu0 0.0
      %424 = vmatpush1.msra.mxu0 0.0
      %425 = vmatprep.mubr.f32.mxu0 0.0
      %426 = vmatmul.mubr.f32.gmra.mrb[0].mxu0 %v359
      %v427 = vpop.f32.mrb[0].mxu0
      %v428 = vadd.f32 0.0, %v427
      %v429 = vpop.f32.mrb[0].mxu0
      %v430 = vadd.f32 0.0, %v429
      %431 = vdwg.mxu0
      %v432 = vlaneseq
      %v433 = vshrl.u32 %v432, 7
      %v434 = vsub.s32 0, %v433
      %v435 = vrot.slane %v428, %v434
      %v436 = vlaneseq
      %v437 = vshrl.u32 %v436, 7
      %v438 = vsub.s32 0, %v437
      %v439 = vrot.slane %v430, %v438
      %v442 = vcombine.low %v435, %v439
      %v444 = vsub.f32 %v226, %v442
      %v445 = vmul.f32 %v444, %v444
      %v447 = vcombine.high %v445, %v445
      %v449 = vsel %vm270, %v445, 0.0
      %v450 = vrot.slane %v449, 4
      %v451 = vadd.f32 %v449, %v450
      %v452 = vrot.slane %v451, 2
      %v453 = vadd.f32 %v451, %v452
      %v454 = vrot.slane %v453, 1
      %v455 = vadd.f32 %v453, %v454
      %v456 = vsel %vm270, %v447, 0.0
      %v457 = vrot.slane %v456, 4
      %v458 = vadd.f32 %v456, %v457
      %v459 = vrot.slane %v458, 2
      %v460 = vadd.f32 %v458, %v459
      %v461 = vrot.slane %v460, 1
      %v462 = vadd.f32 %v460, %v461
      %463 = vmatprep.subr.mxu0 0.0
      %464 = vmatpush1.msra.mxu0 %v227
      %465 = vmatprep.subr.mxu0 0.0
      %466 = vmatpush1.msra.mxu0 %v228
      %467 = vmatprep.subr.mxu0 0.0
      %468 = vmatpush1.msra.mxu0 %v229
      %469 = vmatprep.subr.mxu0 0.0
      %470 = vmatpush1.msra.mxu0 %v230
      %471 = vmatprep.subr.mxu0 0.0
      %472 = vmatpush1.msra.mxu0 %v231
      %473 = vmatprep.subr.mxu0 0.0
      %474 = vmatpush1.msra.mxu0 %v232
      %475 = vmatprep.subr.mxu0 0.0
      %476 = vmatpush1.msra.mxu0 %v233
      %477 = vmatprep.subr.mxu0 0.0
      %478 = vmatpush1.msra.mxu0 %v234
      %479 = vmatprep.subr.mxu0 0.0
      %480 = vmatpush1.msra.mxu0 %v235
      %481 = vmatprep.subr.mxu0 0.0
      %482 = vmatpush1.msra.mxu0 %v236
      %483 = vmatprep.subr.mxu0 0.0
      %484 = vmatpush1.msra.mxu0 %v237
      %485 = vmatprep.subr.mxu0 0.0
      %486 = vmatpush1.msra.mxu0 %v238
      %487 = vmatprep.subr.mxu0 0.0
      %488 = vmatpush1.msra.mxu0 %v239
      %489 = vmatprep.subr.mxu0 0.0
      %490 = vmatpush1.msra.mxu0 %v240
      %491 = vmatprep.subr.mxu0 0.0
      %492 = vmatpush1.msra.mxu0 %v241
      %493 = vmatprep.subr.mxu0 0.0
      %494 = vmatpush1.msra.mxu0 %v242
      %495 = vmatprep.subr.mxu0 0.0
      %496 = vmatpush1.msra.mxu0 %v243
      %497 = vmatprep.subr.mxu0 0.0
      %498 = vmatpush1.msra.mxu0 %v244
      %499 = vmatprep.subr.mxu0 0.0
      %500 = vmatpush1.msra.mxu0 %v245
      %501 = vmatprep.subr.mxu0 0.0
      %502 = vmatpush1.msra.mxu0 %v246
      %503 = vmatprep.subr.mxu0 0.0
      %504 = vmatpush1.msra.mxu0 %v247
      %505 = vmatprep.subr.mxu0 0.0
      %506 = vmatpush1.msra.mxu0 %v248
      %507 = vmatprep.subr.mxu0 0.0
      %508 = vmatpush1.msra.mxu0 %v249
      %509 = vmatprep.subr.mxu0 0.0
      %510 = vmatpush1.msra.mxu0 %v250
      %511 = vmatprep.subr.mxu0 0.0
      %512 = vmatpush1.msra.mxu0 %v251
      %513 = vmatprep.subr.mxu0 0.0
      %514 = vmatpush1.msra.mxu0 %v252
      %515 = vmatprep.subr.mxu0 0.0
      %516 = vmatpush1.msra.mxu0 %v253
      %517 = vmatprep.subr.mxu0 0.0
      %518 = vmatpush1.msra.mxu0 %v254
      %519 = vmatprep.subr.mxu0 0.0
      %520 = vmatpush1.msra.mxu0 %v255
      %521 = vmatprep.subr.mxu0 0.0
      %522 = vmatpush1.msra.mxu0 %v256
      %523 = vmatprep.subr.mxu0 0.0
      %524 = vmatpush1.msra.mxu0 %v257
      %525 = vmatprep.subr.mxu0 0.0
      %526 = vmatpush1.msra.mxu0 %v258
      %527 = vmatprep.mubr.f32.mxu0 %v462
      %528 = vmatmul.mubr.f32.gmra.mrb[0].mxu0 %v455
      %v529 = vpop.f32.mrb[0].mxu0
      %v530 = vadd.f32 0.0, %v529
      %v531 = vpop.f32.mrb[0].mxu0
      %532 = vdwg.mxu0
      %v533 = vmul.f32 %v530, %v355
      %v534 = vadd.f32 %v533, 1e-05
      %v535 = vrsqrt.pop %v534
      %v537 = vsel %vm357, %v535, 0
      %539 = vmatprep.subr.mxu0 %v260
      %540 = vmatpush1.msra.mxu0 %v259
      %541 = vmatprep.subr.mxu0 %v262
      %542 = vmatpush1.msra.mxu0 %v261
      %543 = vmatprep.subr.mxu0 %v264
      %544 = vmatpush1.msra.mxu0 %v263
      %545 = vmatprep.subr.mxu0 %v266
      %546 = vmatpush1.msra.mxu0 %v265
      %547 = vmatprep.subr.mxu0 0.0
      %548 = vmatpush1.msra.mxu0 0.0
      %549 = vmatprep.subr.mxu0 0.0
      %550 = vmatpush1.msra.mxu0 0.0
      %551 = vmatprep.subr.mxu0 0.0
      %552 = vmatpush1.msra.mxu0 0.0
      %553 = vmatprep.subr.mxu0 0.0
      %554 = vmatpush1.msra.mxu0 0.0
      %555 = vmatprep.subr.mxu0 0.0
      %556 = vmatpush1.msra.mxu0 0.0
      %557 = vmatprep.subr.mxu0 0.0
      %558 = vmatpush1.msra.mxu0 0.0
      %559 = vmatprep.subr.mxu0 0.0
      %560 = vmatpush1.msra.mxu0 0.0
      %561 = vmatprep.subr.mxu0 0.0
      %562 = vmatpush1.msra.mxu0 0.0
      %563 = vmatprep.subr.mxu0 0.0
      %564 = vmatpush1.msra.mxu0 0.0
      %565 = vmatprep.subr.mxu0 0.0
      %566 = vmatpush1.msra.mxu0 0.0
      %567 = vmatprep.subr.mxu0 0.0
      %568 = vmatpush1.msra.mxu0 0.0
      %569 = vmatprep.subr.mxu0 0.0
      %570 = vmatpush1.msra.mxu0 0.0
      %571 = vmatprep.subr.mxu0 0.0
      %572 = vmatpush1.msra.mxu0 0.0
      %573 = vmatprep.subr.mxu0 0.0
      %574 = vmatpush1.msra.mxu0 0.0
      %575 = vmatprep.subr.mxu0 0.0
      %576 = vmatpush1.msra.mxu0 0.0
      %577 = vmatprep.subr.mxu0 0.0
      %578 = vmatpush1.msra.mxu0 0.0
      %579 = vmatprep.subr.mxu0 0.0
      %580 = vmatpush1.msra.mxu0 0.0
      %581 = vmatprep.subr.mxu0 0.0
      %582 = vmatpush1.msra.mxu0 0.0
      %583 = vmatprep.subr.mxu0 0.0
      %584 = vmatpush1.msra.mxu0 0.0
      %585 = vmatprep.subr.mxu0 0.0
      %586 = vmatpush1.msra.mxu0 0.0
      %587 = vmatprep.subr.mxu0 0.0
      %588 = vmatpush1.msra.mxu0 0.0
      %589 = vmatprep.subr.mxu0 0.0
      %590 = vmatpush1.msra.mxu0 0.0
      %591 = vmatprep.subr.mxu0 0.0
      %592 = vmatpush1.msra.mxu0 0.0
      %593 = vmatprep.subr.mxu0 0.0
      %594 = vmatpush1.msra.mxu0 0.0
      %595 = vmatprep.subr.mxu0 0.0
      %596 = vmatpush1.msra.mxu0 0.0
      %597 = vmatprep.subr.mxu0 0.0
      %598 = vmatpush1.msra.mxu0 0.0
      %599 = vmatprep.subr.mxu0 0.0
      %600 = vmatpush1.msra.mxu0 0.0
      %601 = vmatprep.subr.mxu0 0.0
      %602 = vmatpush1.msra.mxu0 0.0
      %603 = vmatprep.mubr.f32.mxu0 0.0
      %604 = vmatmul.mubr.f32.gmra.mrb[0].mxu0 %v537
      %v605 = vpop.f32.mrb[0].mxu0
      %v606 = vadd.f32 0.0, %v605
      %v607 = vpop.f32.mrb[0].mxu0
      %v608 = vadd.f32 0.0, %v607
      %609 = vdwg.mxu0
      %v610 = vld [vmem:[%s1] sm:$0x3]
      %v612 = vlaneseq
      %v613 = vshrl.u32 %v612, 7
      %v614 = vsub.s32 0, %v613
      %v615 = vrot.slane %v610, %v614
      %v616 = vlaneseq
      %v617 = vshrl.u32 %v616, 7
      %v618 = vsub.s32 1, %v617
      %v619 = vrot.slane %v610, %v618
      %v622 = vmul.f32 %v606, %v615
      %v623 = vmul.f32 %v608, %v619
      %v624 = vld [vmem:[%s2] sm:$0x3]
      %v625 = vlaneseq
      %v626 = vshrl.u32 %v625, 7
      %v627 = vsub.s32 0, %v626
      %v628 = vrot.slane %v622, %v627
      %v629 = vlaneseq
      %v630 = vshrl.u32 %v629, 7
      %v631 = vsub.s32 0, %v630
      %v632 = vrot.slane %v623, %v631
      %v635 = vcombine.low %v628, %v632
      %v637 = vmul.f32 %v444, %v635
      %v639 = vlaneseq
      %v640 = vshrl.u32 %v639, 7
      %v641 = vsub.s32 0, %v640
      %v642 = vrot.slane %v624, %v641
      %v643 = vlaneseq
      %v644 = vshrl.u32 %v643, 7
      %v645 = vsub.s32 1, %v644
      %v646 = vrot.slane %v624, %v645
      %v647 = vcombine.low %v642, %v646
      %v649 = vadd.f32 %v637, %v647
      %v650 = vmax.f32 %v649, 0.0
      %v652 = vcombine.high %v650, %v650
      %v654 = vpack.c.bf16 %v650, %v650
      %v655 = vpack.c.bf16 %v652, %v652
      %v658 = vcombine.low %v654, %v655
      %v660 = vunpack.c.l.s4 1983009808
      %v661 = vunpack.c.0.s8 %v660
      %v662 = vlaneseq
      %v663 = vshrl.u32 %v662, 7
      %v664 = vsub.s32 %v661, %v663
      %v665 = vrot.slane %v658, %v664
      %667 = vst [vmem:[%s224] sm:$0xf] %v665
      %p668 = scmp.lt.s32.totalorder %s16, 1
      %s669 = scalar_select %p668, %s16, 1
      %s670 = smul.addr %s669, 2
      %s671 = smul.addr %s670, 2
      %s672 = scalar_lea.vmem %s5, %s671
      // Predicated region
      $region41: #{block_forward.8} parent=39 // pred_check
        %p673 = pneg %p144
      $region42: #{block_forward.8} parent=39 // pred_check_branch
        %675 = sbr.rel (%p673) target = $region44
      $region43: #{block_forward.8} parent=39 // pred_region
        _
      $region44: #{block_forward.8} parent=39 // pred_fallthru
        _
    $region40: #{block_forward.8} parent=5 // pred_fallthru
      _
    %p676 = scmp.le.s32.totalorder 2, %s11
    // Predicated region
    $region45: #{block_forward.8} parent=5 // pred_check
      %p677 = pneg %p676
    $region46: #{block_forward.8} parent=5 // pred_check_branch
      %679 = sbr.rel (%p677) target = $region48
    $region47: #{block_forward.8} parent=5 // pred_region
      %s680 = ssub.s32 %s11, 2
      // Predicated region
      $region49: #{block_forward.8} parent=47 // pred_check
        %p681 = pneg %p150
      $region50: #{block_forward.8} parent=47 // pred_check_branch
        %683 = sbr.rel (%p681) target = $region52
      $region51: #{block_forward.8} parent=47 // pred_region
        %p684 = scmp.lt.s32.totalorder %s17, 1
        %s685 = scalar_select %p684, %s17, 1
        %s686 = smul.addr %s685, 2
        %s687 = smul.addr %s686, 2
        %s688 = scalar_lea.vmem %s5, %s687
      $region52: #{block_forward.8} parent=47 // pred_fallthru
        _
    $region48: #{block_forward.8} parent=5 // pred_fallthru
      _
  $region6: #{block_forward.8} parent=0 // loop_footer
    %s15 = sadd.s32 1, %s11
  $region7: #{block_forward.8} parent=0 // loop_footer_branch
    %10 = sbr.rel target = $region3
  $region8: #{block_forward.8} parent=0 // loop_exit
    _

// kernel: block_forward.6
$region0: #{block_forward.6}
  #allocation0 [shape = 'u32[]', space=smem, size = 0x4, offset = 0x4, fixed_abs, tag = 'smem constant byte address 0x4 - core index']
  #allocation1 [shape = 'u32[144,128]{1,0:T(1,128)}', space=vmem, size = 0x12000, scoped, tag = 'internal scratch']
  %s0 = inlined_call_operand.vmem [shape: bf16[8,5,17,32], index: 0, kind: input, shape index: {}]
  %s1 = inlined_call_operand.vmem [shape: bf16[1,32,64], index: 1, kind: input, shape index: {}]
  %s2 = inlined_call_operand.vmem [shape: f32[2,4,4,64], index: 2, kind: output, shape index: {}]
  %s3 = sld [smem:[#allocation0]]
  $region41: #{block_forward.6} parent=0
    _
  %s5 = ssub.s32 1, %s3
  %s6 = scalar_select 0, %s5, %s3
  loop: start=0, step=1, limit=4
  $region2: #{block_forward.6} parent=0 // loop_pre_header
    _
  $region3: #{block_forward.6} parent=0 // loop_header
    %s8 = sphi 0, %s12
    %p9 = scmp.ge.s32.totalorder %s8, 4
    %s15 = sphi 0, %s27
    %s16 = sphi 0, %s23
    %s17 = sphi 0, %s15
    %s18 = sphi 0, %s16
    %s19 = sphi 0, %s17
    %s20 = sphi 0, %s18
    %s30 = sphi 0, %s32
    %s33 = sphi 0, %s30
    %s34 = sphi 0, %s33
    %s50 = sphi 0, %s34
    %s56 = sphi 0, %s58
    %s59 = sphi 0, %s56
    %s60 = sphi 0, %s59
    %s76 = sphi 0, %s60
    %s84 = sphi 0, %s86
    %s87 = sphi 0, %s84
    %s88 = sphi 0, %s87
    %s104 = sphi 0, %s88
  $region4: #{block_forward.6} parent=0 // loop_header_branch
    %11 = sbr.rel (%p9) target = $region8
  $region5: #{block_forward.6} parent=0 // loop_body
    %s13 = ssub.s32 %s8, 1
    %s14 = ssub.s32 %s8, 2
    %s21 = sadd.s32 1, %s16
    %p22 = scmp.ge.s32.totalorder %s21, 1
    %s23 = scalar_select %p22, 0, %s21
    %s24 = sadd.s32 1, %s15
    %s25 = scalar_select %p22, %s24, %s15
    %p26 = scmp.ge.s32.totalorder %s25, 2
    %s27 = scalar_select %p26, 0, %s25
    %s28 = ssub.s32 %s15, %s27
    %p29 = scmp.eq.s32.totalorder %s28, 0
    %s31 = sadd.s32 %s30, 1
    %s32 = scalar_select %p29, %s30, %s31
    %p35 = pneg %p29
    %p36 = scmp.eq.s32.totalorder %s8, 1
    %p37 = por %p35, %p36
    %p38 = scmp.ne.s32.totalorder %s30, %s33
    %p39 = scmp.eq.s32.totalorder %s8, 0
    %p40 = por %p38, %p39
    %p41 = scmp.ne.s32.totalorder %s30, %s33
    %p42 = scmp.eq.s32.totalorder %s13, 1
    %p43 = por %p41, %p42
    %p44 = scmp.ne.s32.totalorder %s33, %s34
    %p45 = scmp.eq.s32.totalorder %s13, 0
    %p46 = por %p44, %p45
    %p47 = scmp.ne.s32.totalorder %s33, %s34
    %p48 = scmp.eq.s32.totalorder %s14, 1
    %p49 = por %p47, %p48
    %p51 = scmp.ne.s32.totalorder %s34, %s50
    %p52 = scmp.eq.s32.totalorder %s14, 0
    %p53 = por %p51, %p52
    %s54 = ssub.s32 %s16, %s23
    %p55 = scmp.eq.s32.totalorder %s54, 0
    %s57 = sadd.s32 %s56, 1
    %s58 = scalar_select %p55, %s56, %s57
    %p61 = pneg %p55
    %p62 = scmp.eq.s32.totalorder %s8, 1
    %p63 = por %p61, %p62
    %p64 = scmp.ne.s32.totalorder %s56, %s59
    %p65 = scmp.eq.s32.totalorder %s8, 0
    %p66 = por %p64, %p65
    %p67 = scmp.ne.s32.totalorder %s56, %s59
    %p68 = scmp.eq.s32.totalorder %s13, 1
    %p69 = por %p67, %p68
    %p70 = scmp.ne.s32.totalorder %s59, %s60
    %p71 = scmp.eq.s32.totalorder %s13, 0
    %p72 = por %p70, %p71
    %p73 = scmp.ne.s32.totalorder %s59, %s60
    %p74 = scmp.eq.s32.totalorder %s14, 1
    %p75 = por %p73, %p74
    %p77 = scmp.ne.s32.totalorder %s60, %s76
    %p78 = scmp.eq.s32.totalorder %s14, 0
    %p79 = por %p77, %p78
    %s80 = ssub.s32 %s15, %s27
    %s81 = ssub.s32 %s16, %s23
    %s82 = sor.u32 %s80, %s81
    %p83 = scmp.eq.s32.totalorder %s82, 0
    %s85 = sadd.s32 %s84, 1
    %s86 = scalar_select %p83, %s84, %s85
    %p89 = pneg %p83
    %p90 = scmp.eq.s32.totalorder %s8, 1
    %p91 = por %p89, %p90
    %p92 = scmp.ne.s32.totalorder %s84, %s87
    %p93 = scmp.eq.s32.totalorder %s8, 0
    %p94 = por %p92, %p93
    %p95 = scmp.ne.s32.totalorder %s84, %s87
    %p96 = scmp.eq.s32.totalorder %s13, 1
    %p97 = por %p95, %p96
    %p98 = scmp.ne.s32.totalorder %s87, %s88
    %p99 = scmp.eq.s32.totalorder %s13, 0
    %p100 = por %p98, %p99
    %p101 = scmp.ne.s32.totalorder %s87, %s88
    %p102 = scmp.eq.s32.totalorder %s14, 1
    %p103 = por %p101, %p102
    %p105 = scmp.ne.s32.totalorder %s88, %s104
    %p106 = scmp.eq.s32.totalorder %s14, 0
    %p107 = por %p105, %p106
    %p108 = scmp.le.s32.totalorder 1, %s8
    %p109 = scmp.lt.s32.totalorder %s8, 3
    %p110 = pnand %p108, %p109
    %p111 = pneg %p110
    // Predicated region
    $region9: #{block_forward.6} parent=5 // pred_check
      _
    $region10: #{block_forward.6} parent=5 // pred_check_branch
      %113 = sbr.rel (%p110) target = $region12
    $region11: #{block_forward.6} parent=5 // pred_region
      %s114 = ssub.s32 %s8, 1
      // Predicated region
      $region13: #{block_forward.6} parent=11 // pred_check
        %p115 = pneg %p72
      $region14: #{block_forward.6} parent=11 // pred_check_branch
        %117 = sbr.rel (%p115) target = $region16
      $region15: #{block_forward.6} parent=11 // pred_region
        %p118 = scmp.lt.s32.totalorder %s18, 0
        %s119 = scalar_select %p118, %s18, 0
        %s120 = smul.addr %s119, 4
        %s121 = scalar_lea.vmem %s1, %s120
      $region16: #{block_forward.6} parent=11 // pred_fallthru
        _
    $region12: #{block_forward.6} parent=5 // pred_fallthru
      _
    %p122 = scmp.lt.s32.totalorder %s8, 2
    // Predicated region
    $region17: #{block_forward.6} parent=5 // pred_check
      %p123 = pneg %p122
    $region18: #{block_forward.6} parent=5 // pred_check_branch
      %125 = sbr.rel (%p123) target = $region20
    $region19: #{block_forward.6} parent=5 // pred_region
      // Predicated region
      $region21: #{block_forward.6} parent=19 // pred_check
        %p126 = pneg %p40
      $region22: #{block_forward.6} parent=19 // pred_check_branch
        %128 = sbr.rel (%p126) target = $region24
      $region23: #{block_forward.6} parent=19 // pred_region
        %s129 = smul.u32 4, %s15
        %p130 = scmp.lt.s32.totalorder %s129, 7
        %s131 = scalar_select %p130, %s129, 7
        %s132 = smul.addr %s131, 15
        %s133 = smul.addr %s132, 4
        %s134 = scalar_lea.vmem %s0, %s133
        %s135 = smul.u32 4, %s15
      $region24: #{block_forward.6} parent=19 // pred_fallthru
        _
    $region20: #{block_forward.6} parent=5 // pred_fallthru
      _
    %p136 = scmp.le.s32.totalorder 1, %s8
    %p137 = scmp.lt.s32.totalorder %s8, 3
    %p138 = pnand %p136, %p137
    %p139 = pneg %p138
    // Predicated region
    $region25: #{block_forward.6} parent=5 // pred_check
      _
    $region26: #{block_forward.6} parent=5 // pred_check_branch
      %141 = sbr.rel (%p138) target = $region28
    $region27: #{block_forward.6} parent=5 // pred_region
      %s142 = ssub.s32 %s8, 1
      %s143 = smul.u32 4, %s17
      %p144 = scmp.lt.s32.totalorder %s143, 7
      %s145 = scalar_select %p144, %s143, 7
      %s146 = smul.addr %s145, 15
      %s147 = smul.addr %s146, 4
      %s148 = scalar_lea.vmem %s0, %s147
      %p149 = pneg %p46
      %p150 = pneg %p43
      %p151 = scmp.lt.s32.totalorder %s18, 0
      %s152 = scalar_select %p151, %s18, 0
      %s153 = smul.addr %s152, 4
      %s154 = scalar_lea.vmem %s1, %s153
      %p155 = pneg %p72
      %p156 = pneg %p69
      %p157 = pneg %p100
      %p158 = pneg %p97
      %p159 = scmp.lt.s32.totalorder %s17, 1
      %s160 = scalar_select %p159, %s17, 1
      %p161 = scmp.lt.s32.totalorder %s18, 0
      %s162 = scalar_select %p161, %s18, 0
      %s163 = smul.addr %s160, 4
      %s164 = sadd.s32 %s162, %s163
      %s165 = smul.addr %s164, 4
      %s166 = scalar_lea.vmem %s2, %s165
      %s167 = smul.u32 4, %s17
      %p168 = scmp.lt.s32.totalorder %s167, 7
      %s169 = scalar_select %p168, %s167, 7
      %s170 = smul.addr %s169, 15
      %s171 = smul.addr %s170, 4
      %s172 = scalar_lea.vmem %s0, %s171
      %s173 = smul.u32 4, %s17
      %p174 = scmp.lt.s32.totalorder %s18, 0
      %s175 = scalar_select %p174, %s18, 0
      %s176 = smul.addr %s175, 4
      %s177 = scalar_lea.vmem %s1, %s176
      %p178 = scmp.lt.s32.totalorder %s17, 1
      %s179 = scalar_select %p178, %s17, 1
      %p180 = scmp.lt.s32.totalorder %s18, 0
      %s181 = scalar_select %p180, %s18, 0
      %s182 = smul.addr %s179, 4
      %s183 = sadd.s32 %s181, %s182
      %s184 = smul.addr %s183, 4
      %s185 = scalar_lea.vmem %s2, %s184
      %s187 = scalar_lea.vmem %s172, 180
      %v188 = vld [vmem:[%s187] sm:$0xf]
      %v189 = vld [vmem:[%s187 + $0x4] sm:$0xf]
      %v190 = vld [vmem:[%s187 + $0xc] sm:$0xf]
      %v191 = vld [vmem:[%s187 + $0x10] sm:$0xf]
      %v192 = vld [vmem:[%s187 + $0x18] sm:$0xf]
      %v193 = vld [vmem:[%s187 + $0x1c] sm:$0xf]
      %v194 = vld [vmem:[%s187 + $0x24] sm:$0xf]
      %v195 = vld [vmem:[%s187 + $0x28] sm:$0xf]
      %v196 = vld [vmem:[%s177] sm:$0xf]
      %v197 = vld [vmem:[%s177 + $0x4] sm:$0xf]
      %v198 = vld [vmem:[%s177 + $0x8] sm:$0xf]
      %v199 = vld [vmem:[%s177 + $0xc] sm:$0xf]
      %v208 = vunpack.c.l.b16 %v188
      %v209 = vunpack.c.l.b16 %v189
      %v210 = vunpack.c.l.b16 %v190
      %v211 = vunpack.c.l.b16 %v191
      %v212 = vunpack.c.l.b16 %v192
      %v213 = vunpack.c.l.b16 %v193
      %v214 = vunpack.c.l.b16 %v194
      %v215 = vunpack.c.l.b16 %v195
      %v216 = vpack.c.b16 %v209, %v208
      %v217 = vpack.c.b16 %v211, %v210
      %v218 = vpack.c.b16 %v213, %v212
      %v219 = vpack.c.b16 %v215, %v214
      %v224 = vunpack.c.l.b16 %v196
      %v225 = vunpack.c.l.b16 %v197
      %v226 = vunpack.c.l.b16 %v198
      %v227 = vunpack.c.l.b16 %v199
      %v228 = vpack.c.b16 %v225, %v224
      %v229 = vpack.c.b16 %v227, %v226
      %vm232 = vcmask 261120
      %v234 = vsel %vm232, %v216, 0
      %v237 = vsel %vm232, %v217, 0
      %v240 = vsel %vm232, %v218, 0
      %v243 = vsel %vm232, %v219, 0
      %245 = vmatprep.subr.bf16.mxu0 0
      %246 = vmatpush1.bf16.msra.mxu0 %v228
      %247 = vmatprep.subr.bf16.mxu0 0
      %248 = vmatpush1.bf16.msra.mxu0 %v229
      %249 = vmatprep.subr.bf16.mxu0 0
      %250 = vmatpush1.bf16.msra.mxu0 0
      %251 = vmatprep.subr.bf16.mxu0 0
      %252 = vmatpush1.bf16.msra.mxu0 0
      %253 = vmatprep.subr.bf16.mxu0 0
      %254 = vmatpush1.bf16.msra.mxu0 0
      %255 = vmatprep.subr.bf16.mxu0 0
      %256 = vmatpush1.bf16.msra.mxu0 0
      %257 = vmatprep.subr.bf16.mxu0 0
      %258 = vmatpush1.bf16.msra.mxu0 0
      %259 = vmatprep.subr.bf16.mxu0 0
      %260 = vmatpush1.bf16.msra.mxu0 0
      %261 = vmatprep.subr.bf16.mxu0 0
      %262 = vmatpush1.bf16.msra.mxu0 0
      %263 = vmatprep.subr.bf16.mxu0 0
      %264 = vmatpush1.bf16.msra.mxu0 0
      %265 = vmatprep.subr.bf16.mxu0 0
      %266 = vmatpush1.bf16.msra.mxu0 0
      %267 = vmatprep.subr.bf16.mxu0 0
      %268 = vmatpush1.bf16.msra.mxu0 0
      %269 = vmatprep.subr.bf16.mxu0 0
      %270 = vmatpush1.bf16.msra.mxu0 0
      %271 = vmatprep.subr.bf16.mxu0 0
      %272 = vmatpush1.bf16.msra.mxu0 0
      %273 = vmatprep.subr.bf16.mxu0 0
      %274 = vmatpush1.bf16.msra.mxu0 0
      %275 = vmatprep.subr.bf16.mxu0 0
      %276 = vmatpush1.bf16.msra.mxu0 0
      %277 = vmatprep.mubr.bf16.mxu0 0
      %278 = vmatmul.mubr.bf16.gmra.mrb[0].mxu0 %v234
      %v279 = vpop.f32.mrb[0].mxu0
      %v280 = vadd.f32 0.0, %v279
      %v281 = vpop.f32.mrb[0].mxu0
      %v282 = vpop.f32.mrb[0].mxu0
      %v283 = vpop.f32.mrb[0].mxu0
      %284 = vmatprep.mubr.bf16.mxu0 0
      %285 = vmatmul.mubr.bf16.gmra.mrb[0].mxu0 %v237
      %v286 = vpop.f32.mrb[0].mxu0
      %v287 = vadd.f32 0.0, %v286
      %v288 = vpop.f32.mrb[0].mxu0
      %v289 = vpop.f32.mrb[0].mxu0
      %v290 = vpop.f32.mrb[0].mxu0
      %291 = vmatprep.mubr.bf16.mxu0 0
      %292 = vmatmul.mubr.bf16.gmra.mrb[0].mxu0 %v240
      %v293 = vpop.f32.mrb[0].mxu0
      %v294 = vadd.f32 0.0, %v293
      %v295 = vpop.f32.mrb[0].mxu0
      %v296 = vpop.f32.mrb[0].mxu0
      %v297 = vpop.f32.mrb[0].mxu0
      %298 = vmatprep.mubr.bf16.mxu0 0
      %299 = vmatmul.mubr.bf16.gmra.mrb[0].mxu0 %v243
      %v300 = vpop.f32.mrb[0].mxu0
      %v301 = vadd.f32 0.0, %v300
      %v302 = vpop.f32.mrb[0].mxu0
      %v303 = vpop.f32.mrb[0].mxu0
      %v304 = vpop.f32.mrb[0].mxu0
      %305 = vdwg.mxu0
      %vm306 = vcmask 519168
      %307 = vst.msk [vmem:[%s185] sm:$0xf] %vm306, %v280
      %308 = vst.msk [vmem:[%s185 + $0x4] sm:$0xf] %vm306, %v287
      %309 = vst.msk [vmem:[%s185 + $0x8] sm:$0xf] %vm306, %v294
      %310 = vst.msk [vmem:[%s185 + $0xc] sm:$0xf] %vm306, %v301
      %p311 = scmp.lt.s32.totalorder %s17, 1
      %s312 = scalar_select %p311, %s17, 1
      %p313 = scmp.lt.s32.totalorder %s18, 0
      %s314 = scalar_select %p313, %s18, 0
      %s315 = smul.addr %s312, 4
      %s316 = sadd.s32 %s314, %s315
      %s317 = smul.addr %s316, 4
      %s318 = scalar_lea.vmem %s2, %s317
      // Predicated region
      $region29: #{block_forward.6} parent=27 // pred_check
        %p319 = pneg %p97
      $region30: #{block_forward.6} parent=27 // pred_check_branch
        %321 = sbr.rel (%p319) target = $region32
      $region31: #{block_forward.6} parent=27 // pred_region
        _
      $region32: #{block_forward.6} parent=27 // pred_fallthru
        _
    $region28: #{block_forward.6} parent=5 // pred_fallthru
      _
    %p322 = scmp.le.s32.totalorder 2, %s8
    // Predicated region
    $region33: #{block_forward.6} parent=5 // pred_check
      %p323 = pneg %p322
    $region34: #{block_forward.6} parent=5 // pred_check_branch
      %325 = sbr.rel (%p323) target = $region36
    $region35: #{block_forward.6} parent=5 // pred_region
      %s326 = ssub.s32 %s8, 2
      // Predicated region
      $region37: #{block_forward.6} parent=35 // pred_check
        %p327 = pneg %p103
      $region38: #{block_forward.6} parent=35 // pred_check_branch
        %329 = sbr.rel (%p327) target = $region40
      $region39: #{block_forward.6} parent=35 // pred_region
        %p330 = scmp.lt.s32.totalorder %s19, 1
        %s331 = scalar_select %p330, %s19, 1
        %p332 = scmp.lt.s32.totalorder %s20, 0
        %s333 = scalar_select %p332, %s20, 0
        %s334 = smul.addr %s331, 4
        %s335 = sadd.s32 %s333, %s334
        %s336 = smul.addr %s335, 4
        %s337 = scalar_lea.vmem %s2, %s336
      $region40: #{block_forward.6} parent=35 // pred_fallthru
        _
    $region36: #{block_forward.6} parent=5 // pred_fallthru
      _
  $region6: #{block_forward.6} parent=0 // loop_footer
    %s12 = sadd.s32 1, %s8
  $region7: #{block_forward.6} parent=0 // loop_footer_branch
    %7 = sbr.rel target = $region3
  $region8: #{block_forward.6} parent=0 // loop_exit
    _

// kernel: block_forward.7
$region0: #{block_forward.7}
  #allocation0 [shape = 'u32[]', space=smem, size = 0x4, offset = 0x4, fixed_abs, tag = 'smem constant byte address 0x4 - core index']
  #allocation1 [shape = 'u32[144,128]{1,0:T(1,128)}', space=vmem, size = 0x12000, scoped, tag = 'internal scratch']
  %s0 = inlined_call_operand.vmem [shape: bf16[8,5,17,32], index: 0, kind: input, shape index: {}]
  %s1 = inlined_call_operand.vmem [shape: bf16[9,32,64], index: 1, kind: input, shape index: {}]
  %s2 = inlined_call_operand.vmem [shape: bf16[2,4,4,64], index: 2, kind: output, shape index: {}]
  %s3 = sld [smem:[#allocation0]]
  $region41: #{block_forward.7} parent=0
    _
  %s5 = ssub.s32 1, %s3
  %s6 = scalar_select 0, %s5, %s3
  loop: start=0, step=1, limit=4
  $region2: #{block_forward.7} parent=0 // loop_pre_header
    _
  $region3: #{block_forward.7} parent=0 // loop_header
    %s8 = sphi 0, %s12
    %p9 = scmp.ge.s32.totalorder %s8, 4
    %s15 = sphi 0, %s27
    %s16 = sphi 0, %s23
    %s17 = sphi 0, %s15
    %s18 = sphi 0, %s16
    %s19 = sphi 0, %s17
    %s20 = sphi 0, %s18
    %s30 = sphi 0, %s32
    %s33 = sphi 0, %s30
    %s34 = sphi 0, %s33
    %s50 = sphi 0, %s34
    %s56 = sphi 0, %s58
    %s59 = sphi 0, %s56
    %s60 = sphi 0, %s59
    %s76 = sphi 0, %s60
    %s84 = sphi 0, %s86
    %s87 = sphi 0, %s84
    %s88 = sphi 0, %s87
    %s104 = sphi 0, %s88
  $region4: #{block_forward.7} parent=0 // loop_header_branch
    %11 = sbr.rel (%p9) target = $region8
  $region5: #{block_forward.7} parent=0 // loop_body
    %s13 = ssub.s32 %s8, 1
    %s14 = ssub.s32 %s8, 2
    %s21 = sadd.s32 1, %s16
    %p22 = scmp.ge.s32.totalorder %s21, 1
    %s23 = scalar_select %p22, 0, %s21
    %s24 = sadd.s32 1, %s15
    %s25 = scalar_select %p22, %s24, %s15
    %p26 = scmp.ge.s32.totalorder %s25, 2
    %s27 = scalar_select %p26, 0, %s25
    %s28 = ssub.s32 %s15, %s27
    %p29 = scmp.eq.s32.totalorder %s28, 0
    %s31 = sadd.s32 %s30, 1
    %s32 = scalar_select %p29, %s30, %s31
    %p35 = pneg %p29
    %p36 = scmp.eq.s32.totalorder %s8, 1
    %p37 = por %p35, %p36
    %p38 = scmp.ne.s32.totalorder %s30, %s33
    %p39 = scmp.eq.s32.totalorder %s8, 0
    %p40 = por %p38, %p39
    %p41 = scmp.ne.s32.totalorder %s30, %s33
    %p42 = scmp.eq.s32.totalorder %s13, 1
    %p43 = por %p41, %p42
    %p44 = scmp.ne.s32.totalorder %s33, %s34
    %p45 = scmp.eq.s32.totalorder %s13, 0
    %p46 = por %p44, %p45
    %p47 = scmp.ne.s32.totalorder %s33, %s34
    %p48 = scmp.eq.s32.totalorder %s14, 1
    %p49 = por %p47, %p48
    %p51 = scmp.ne.s32.totalorder %s34, %s50
    %p52 = scmp.eq.s32.totalorder %s14, 0
    %p53 = por %p51, %p52
    %s54 = ssub.s32 %s16, %s23
    %p55 = scmp.eq.s32.totalorder %s54, 0
    %s57 = sadd.s32 %s56, 1
    %s58 = scalar_select %p55, %s56, %s57
    %p61 = pneg %p55
    %p62 = scmp.eq.s32.totalorder %s8, 1
    %p63 = por %p61, %p62
    %p64 = scmp.ne.s32.totalorder %s56, %s59
    %p65 = scmp.eq.s32.totalorder %s8, 0
    %p66 = por %p64, %p65
    %p67 = scmp.ne.s32.totalorder %s56, %s59
    %p68 = scmp.eq.s32.totalorder %s13, 1
    %p69 = por %p67, %p68
    %p70 = scmp.ne.s32.totalorder %s59, %s60
    %p71 = scmp.eq.s32.totalorder %s13, 0
    %p72 = por %p70, %p71
    %p73 = scmp.ne.s32.totalorder %s59, %s60
    %p74 = scmp.eq.s32.totalorder %s14, 1
    %p75 = por %p73, %p74
    %p77 = scmp.ne.s32.totalorder %s60, %s76
    %p78 = scmp.eq.s32.totalorder %s14, 0
    %p79 = por %p77, %p78
    %s80 = ssub.s32 %s15, %s27
    %s81 = ssub.s32 %s16, %s23
    %s82 = sor.u32 %s80, %s81
    %p83 = scmp.eq.s32.totalorder %s82, 0
    %s85 = sadd.s32 %s84, 1
    %s86 = scalar_select %p83, %s84, %s85
    %p89 = pneg %p83
    %p90 = scmp.eq.s32.totalorder %s8, 1
    %p91 = por %p89, %p90
    %p92 = scmp.ne.s32.totalorder %s84, %s87
    %p93 = scmp.eq.s32.totalorder %s8, 0
    %p94 = por %p92, %p93
    %p95 = scmp.ne.s32.totalorder %s84, %s87
    %p96 = scmp.eq.s32.totalorder %s13, 1
    %p97 = por %p95, %p96
    %p98 = scmp.ne.s32.totalorder %s87, %s88
    %p99 = scmp.eq.s32.totalorder %s13, 0
    %p100 = por %p98, %p99
    %p101 = scmp.ne.s32.totalorder %s87, %s88
    %p102 = scmp.eq.s32.totalorder %s14, 1
    %p103 = por %p101, %p102
    %p105 = scmp.ne.s32.totalorder %s88, %s104
    %p106 = scmp.eq.s32.totalorder %s14, 0
    %p107 = por %p105, %p106
    %p108 = scmp.le.s32.totalorder 1, %s8
    %p109 = scmp.lt.s32.totalorder %s8, 3
    %p110 = pnand %p108, %p109
    %p111 = pneg %p110
    // Predicated region
    $region9: #{block_forward.7} parent=5 // pred_check
      _
    $region10: #{block_forward.7} parent=5 // pred_check_branch
      %113 = sbr.rel (%p110) target = $region12
    $region11: #{block_forward.7} parent=5 // pred_region
      %s114 = ssub.s32 %s8, 1
      // Predicated region
      $region13: #{block_forward.7} parent=11 // pred_check
        %p115 = pneg %p72
      $region14: #{block_forward.7} parent=11 // pred_check_branch
        %117 = sbr.rel (%p115) target = $region16
      $region15: #{block_forward.7} parent=11 // pred_region
        %p118 = scmp.lt.s32.totalorder %s18, 0
        %s119 = scalar_select %p118, %s18, 0
        %s120 = smul.addr %s119, 4
        %s121 = scalar_lea.vmem %s1, %s120
      $region16: #{block_forward.7} parent=11 // pred_fallthru
        _
    $region12: #{block_forward.7} parent=5 // pred_fallthru
      _
    %p122 = scmp.lt.s32.totalorder %s8, 2
    // Predicated region
    $region17: #{block_forward.7} parent=5 // pred_check
      %p123 = pneg %p122
    $region18: #{block_forward.7} parent=5 // pred_check_branch
      %125 = sbr.rel (%p123) target = $region20
    $region19: #{block_forward.7} parent=5 // pred_region
      // Predicated region
      $region21: #{block_forward.7} parent=19 // pred_check
        %p126 = pneg %p40
      $region22: #{block_forward.7} parent=19 // pred_check_branch
        %128 = sbr.rel (%p126) target = $region24
      $region23: #{block_forward.7} parent=19 // pred_region
        %s129 = smul.u32 4, %s15
        %p130 = scmp.lt.s32.totalorder %s129, 7
        %s131 = scalar_select %p130, %s129, 7
        %s132 = smul.addr %s131, 15
        %s133 = smul.addr %s132, 4
        %s134 = scalar_lea.vmem %s0, %s133
        %s135 = smul.u32 4, %s15
      $region24: #{block_forward.7} parent=19 // pred_fallthru
        _
    $region20: #{block_forward.7} parent=5 // pred_fallthru
      _
    %p136 = scmp.le.s32.totalorder 1, %s8
    %p137 = scmp.lt.s32.totalorder %s8, 3
    %p138 = pnand %p136, %p137
    %p139 = pneg %p138
    // Predicated region
    $region25: #{block_forward.7} parent=5 // pred_check
      _
    $region26: #{block_forward.7} parent=5 // pred_check_branch
      %141 = sbr.rel (%p138) target = $region28
    $region27: #{block_forward.7} parent=5 // pred_region
      %s142 = ssub.s32 %s8, 1
      %s143 = smul.u32 4, %s17
      %p144 = scmp.lt.s32.totalorder %s143, 7
      %s145 = scalar_select %p144, %s143, 7
      %s146 = smul.addr %s145, 15
      %s147 = smul.addr %s146, 4
      %s148 = scalar_lea.vmem %s0, %s147
      %p149 = pneg %p46
      %p150 = pneg %p43
      %p151 = scmp.lt.s32.totalorder %s18, 0
      %s152 = scalar_select %p151, %s18, 0
      %s153 = smul.addr %s152, 4
      %s154 = scalar_lea.vmem %s1, %s153
      %p155 = pneg %p72
      %p156 = pneg %p69
      %p157 = pneg %p100
      %p158 = pneg %p97
      %p159 = scmp.lt.s32.totalorder %s17, 1
      %s160 = scalar_select %p159, %s17, 1
      %p161 = scmp.lt.s32.totalorder %s18, 0
      %s162 = scalar_select %p161, %s18, 0
      %s163 = smul.addr %s160, 4
      %s164 = sadd.s32 %s162, %s163
      %s165 = smul.addr %s164, 2
      %s166 = scalar_lea.vmem %s2, %s165
      %s167 = smul.u32 4, %s17
      %p168 = scmp.lt.s32.totalorder %s167, 7
      %s169 = scalar_select %p168, %s167, 7
      %s170 = smul.addr %s169, 15
      %s171 = smul.addr %s170, 4
      %s172 = scalar_lea.vmem %s0, %s171
      %s173 = smul.u32 4, %s17
      %p174 = scmp.lt.s32.totalorder %s18, 0
      %s175 = scalar_select %p174, %s18, 0
      %s176 = smul.addr %s175, 4
      %s177 = scalar_lea.vmem %s1, %s176
      %p178 = scmp.lt.s32.totalorder %s17, 1
      %s179 = scalar_select %p178, %s17, 1
      %p180 = scmp.lt.s32.totalorder %s18, 0
      %s181 = scalar_select %p180, %s18, 0
      %s182 = smul.addr %s179, 4
      %s183 = sadd.s32 %s181, %s182
      %s184 = smul.addr %s183, 2
      %s185 = scalar_lea.vmem %s2, %s184
      %v187 = vld [vmem:[%s172] sm:$0xf]
      %v188 = vld [vmem:[%s172 + $0x4] sm:$0xf]
      %v189 = vld [vmem:[%s172 + $0xc] sm:$0xf]
      %v190 = vld [vmem:[%s172 + $0x10] sm:$0xf]
      %v191 = vld [vmem:[%s172 + $0x18] sm:$0xf]
      %v192 = vld [vmem:[%s172 + $0x1c] sm:$0xf]
      %v193 = vld [vmem:[%s172 + $0x24] sm:$0xf]
      %v194 = vld [vmem:[%s172 + $0x28] sm:$0xf]
      %v195 = vld [vmem:[%s177] sm:$0xf]
      %v196 = vld [vmem:[%s177 + $0x4] sm:$0xf]
      %v197 = vld [vmem:[%s177 + $0x8] sm:$0xf]
      %v198 = vld [vmem:[%s177 + $0xc] sm:$0xf]
      %s199 = scalar_lea.vmem %s172, 60
      %v200 = vld [vmem:[%s199] sm:$0xf]
      %v201 = vld [vmem:[%s199 + $0x4] sm:$0xf]
      %v202 = vld [vmem:[%s199 + $0xc] sm:$0xf]
      %v203 = vld [vmem:[%s199 + $0x10] sm:$0xf]
      %v204 = vld [vmem:[%s199 + $0x18] sm:$0xf]
      %v205 = vld [vmem:[%s199 + $0x1c] sm:$0xf]
      %v206 = vld [vmem:[%s199 + $0x24] sm:$0xf]
      %v207 = vld [vmem:[%s199 + $0x28] sm:$0xf]
      %s208 = scalar_lea.vmem %s177, 16
      %v209 = vld [vmem:[%s208] sm:$0xf]
      %v210 = vld [vmem:[%s208 + $0x4] sm:$0xf]
      %v211 = vld [vmem:[%s208 + $0x8] sm:$0xf]
      %v212 = vld [vmem:[%s208 + $0xc] sm:$0xf]
      %v221 = vunpack.c.l.b16 %v200
      %v222 = vunpack.c.l.b16 %v201
      %v223 = vunpack.c.l.b16 %v202
      %v224 = vunpack.c.l.b16 %v203
      %v225 = vunpack.c.l.b16 %v204
      %v226 = vunpack.c.l.b16 %v205
      %v227 = vunpack.c.l.b16 %v206
      %v228 = vunpack.c.l.b16 %v207
      %v229 = vpack.c.b16 %v222, %v221
      %v230 = vpack.c.b16 %v224, %v223
      %v231 = vpack.c.b16 %v226, %v225
      %v232 = vpack.c.b16 %v228, %v227
      %v237 = vunpack.c.l.b16 %v209
      %v238 = vunpack.c.l.b16 %v210
      %v239 = vunpack.c.l.b16 %v211
      %v240 = vunpack.c.l.b16 %v212
      %v241 = vpack.c.b16 %v238, %v237
      %v242 = vpack.c.b16 %v240, %v239
      %vm245 = vcmask 261120
      %v247 = vsel %vm245, %v229, 0
      %v250 = vsel %vm245, %v230, 0
      %v253 = vsel %vm245, %v231, 0
      %v256 = vsel %vm245, %v232, 0
      %258 = vmatprep.subr.bf16.mxu0 0
      %259 = vmatpush1.bf16.msra.mxu0 %v241
      %260 = vmatprep.subr.bf16.mxu0 0
      %261 = vmatpush1.bf16.msra.mxu0 %v242
      %262 = vmatprep.subr.bf16.mxu0 0
      %263 = vmatpush1.bf16.msra.mxu0 0
      %264 = vmatprep.subr.bf16.mxu0 0
      %265 = vmatpush1.bf16.msra.mxu0 0
      %266 = vmatprep.subr.bf16.mxu0 0
      %267 = vmatpush1.bf16.msra.mxu0 0
      %268 = vmatprep.subr.bf16.mxu0 0
      %269 = vmatpush1.bf16.msra.mxu0 0
      %270 = vmatprep.subr.bf16.mxu0 0
      %271 = vmatpush1.bf16.msra.mxu0 0
      %272 = vmatprep.subr.bf16.mxu0 0
      %273 = vmatpush1.bf16.msra.mxu0 0
      %274 = vmatprep.subr.bf16.mxu0 0
      %275 = vmatpush1.bf16.msra.mxu0 0
      %276 = vmatprep.subr.bf16.mxu0 0
      %277 = vmatpush1.bf16.msra.mxu0 0
      %278 = vmatprep.subr.bf16.mxu0 0
      %279 = vmatpush1.bf16.msra.mxu0 0
      %280 = vmatprep.subr.bf16.mxu0 0
      %281 = vmatpush1.bf16.msra.mxu0 0
      %282 = vmatprep.subr.bf16.mxu0 0
      %283 = vmatpush1.bf16.msra.mxu0 0
      %284 = vmatprep.subr.bf16.mxu0 0
      %285 = vmatpush1.bf16.msra.mxu0 0
      %286 = vmatprep.subr.bf16.mxu0 0
      %287 = vmatpush1.bf16.msra.mxu0 0
      %288 = vmatprep.subr.bf16.mxu0 0
      %289 = vmatpush1.bf16.msra.mxu0 0
      %290 = vmatprep.mubr.bf16.mxu0 0
      %291 = vmatmul.mubr.bf16.gmra.mrb[0].mxu0 %v247
      %v292 = vpop.f32.mrb[0].mxu0
      %v293 = vadd.f32 0.0, %v292
      %v294 = vpop.f32.mrb[0].mxu0
      %v295 = vpop.f32.mrb[0].mxu0
      %v296 = vpop.f32.mrb[0].mxu0
      %297 = vmatprep.mubr.bf16.mxu0 0
      %298 = vmatmul.mubr.bf16.gmra.mrb[0].mxu0 %v250
      %v299 = vpop.f32.mrb[0].mxu0
      %v300 = vadd.f32 0.0, %v299
      %v301 = vpop.f32.mrb[0].mxu0
      %v302 = vpop.f32.mrb[0].mxu0
      %v303 = vpop.f32.mrb[0].mxu0
      %304 = vmatprep.mubr.bf16.mxu0 0
      %305 = vmatmul.mubr.bf16.gmra.mrb[0].mxu0 %v253
      %v306 = vpop.f32.mrb[0].mxu0
      %v307 = vadd.f32 0.0, %v306
      %v308 = vpop.f32.mrb[0].mxu0
      %v309 = vpop.f32.mrb[0].mxu0
      %v310 = vpop.f32.mrb[0].mxu0
      %311 = vmatprep.mubr.bf16.mxu0 0
      %312 = vmatmul.mubr.bf16.gmra.mrb[0].mxu0 %v256
      %v313 = vpop.f32.mrb[0].mxu0
      %v314 = vadd.f32 0.0, %v313
      %v315 = vpop.f32.mrb[0].mxu0
      %v316 = vpop.f32.mrb[0].mxu0
      %v317 = vpop.f32.mrb[0].mxu0
      %318 = vdwg.mxu0
      %v327 = vunpack.c.l.b16 %v187
      %v328 = vunpack.c.l.b16 %v188
      %v329 = vunpack.c.l.b16 %v189
      %v330 = vunpack.c.l.b16 %v190
      %v331 = vunpack.c.l.b16 %v191
      %v332 = vunpack.c.l.b16 %v192
      %v333 = vunpack.c.l.b16 %v193
      %v334 = vunpack.c.l.b16 %v194
      %v335 = vpack.c.b16 %v328, %v327
      %v336 = vpack.c.b16 %v330, %v329
      %v337 = vpack.c.b16 %v332, %v331
      %v338 = vpack.c.b16 %v334, %v333
      %v343 = vunpack.c.l.b16 %v195
      %v344 = vunpack.c.l.b16 %v196
      %v345 = vunpack.c.l.b16 %v197
      %v346 = vunpack.c.l.b16 %v198
      %v347 = vpack.c.b16 %v344, %v343
      %v348 = vpack.c.b16 %v346, %v345
      %v352 = vsel %vm245, %v335, 0
      %v355 = vsel %vm245, %v336, 0
      %v358 = vsel %vm245, %v337, 0
      %v361 = vsel %vm245, %v338, 0
      %363 = vmatprep.subr.bf16.mxu0 0
      %364 = vmatpush1.bf16.msra.mxu0 %v347
      %365 = vmatprep.subr.bf16.mxu0 0
      %366 = vmatpush1.bf16.msra.mxu0 %v348
      %367 = vmatprep.subr.bf16.mxu0 0
      %368 = vmatpush1.bf16.msra.mxu0 0
      %369 = vmatprep.subr.bf16.mxu0 0
      %370 = vmatpush1.bf16.msra.mxu0 0
      %371 = vmatprep.subr.bf16.mxu0 0
      %372 = vmatpush1.bf16.msra.mxu0 0
      %373 = vmatprep.subr.bf16.mxu0 0
      %374 = vmatpush1.bf16.msra.mxu0 0
      %375 = vmatprep.subr.bf16.mxu0 0
      %376 = vmatpush1.bf16.msra.mxu0 0
      %377 = vmatprep.subr.bf16.mxu0 0
      %378 = vmatpush1.bf16.msra.mxu0 0
      %379 = vmatprep.subr.bf16.mxu0 0
      %380 = vmatpush1.bf16.msra.mxu0 0
      %381 = vmatprep.subr.bf16.mxu0 0
      %382 = vmatpush1.bf16.msra.mxu0 0
      %383 = vmatprep.subr.bf16.mxu0 0
      %384 = vmatpush1.bf16.msra.mxu0 0
      %385 = vmatprep.subr.bf16.mxu0 0
      %386 = vmatpush1.bf16.msra.mxu0 0
      %387 = vmatprep.subr.bf16.mxu0 0
      %388 = vmatpush1.bf16.msra.mxu0 0
      %389 = vmatprep.subr.bf16.mxu0 0
      %390 = vmatpush1.bf16.msra.mxu0 0
      %391 = vmatprep.subr.bf16.mxu0 0
      %392 = vmatpush1.bf16.msra.mxu0 0
      %393 = vmatprep.subr.bf16.mxu0 0
      %394 = vmatpush1.bf16.msra.mxu0 0
      %395 = vmatprep.mubr.bf16.mxu0 0
      %396 = vmatmul.mubr.bf16.gmra.mrb[0].mxu0 %v352
      %v397 = vpop.f32.mrb[0].mxu0
      %v398 = vadd.f32 %v293, %v397
      %v399 = vpop.f32.mrb[0].mxu0
      %v400 = vpop.f32.mrb[0].mxu0
      %v401 = vpop.f32.mrb[0].mxu0
      %402 = vmatprep.mubr.bf16.mxu0 0
      %403 = vmatmul.mubr.bf16.gmra.mrb[0].mxu0 %v355
      %v404 = vpop.f32.mrb[0].mxu0
      %v405 = vadd.f32 %v300, %v404
      %v406 = vpop.f32.mrb[0].mxu0
      %v407 = vpop.f32.mrb[0].mxu0
      %v408 = vpop.f32.mrb[0].mxu0
      %409 = vmatprep.mubr.bf16.mxu0 0
      %410 = vmatmul.mubr.bf16.gmra.mrb[0].mxu0 %v358
      %v411 = vpop.f32.mrb[0].mxu0
      %v412 = vadd.f32 %v307, %v411
      %v413 = vpop.f32.mrb[0].mxu0
      %v414 = vpop.f32.mrb[0].mxu0
      %v415 = vpop.f32.mrb[0].mxu0
      %416 = vmatprep.mubr.bf16.mxu0 0
      %417 = vmatmul.mubr.bf16.gmra.mrb[0].mxu0 %v361
      %v418 = vpop.f32.mrb[0].mxu0
      %v419 = vadd.f32 %v314, %v418
      %v420 = vpop.f32.mrb[0].mxu0
      %v421 = vpop.f32.mrb[0].mxu0
      %v422 = vpop.f32.mrb[0].mxu0
      %423 = vdwg.mxu0
      %v424 = vld [vmem:[%s172] sm:$0xf]
      %v425 = vld [vmem:[%s172 + $0x4] sm:$0xf]
      %v426 = vld [vmem:[%s172 + $0x8] sm:$0x1]
      %v427 = vld [vmem:[%s172 + $0xc] sm:$0xf]
      %v428 = vld [vmem:[%s172 + $0x10] sm:$0xf]
      %v429 = vld [vmem:[%s172 + $0x14] sm:$0x1]
      %v430 = vld [vmem:[%s172 + $0x18] sm:$0xf]
      %v431 = vld [vmem:[%s172 + $0x1c] sm:$0xf]
      %v432 = vld [vmem:[%s172 + $0x20] sm:$0x1]
      %v433 = vld [vmem:[%s172 + $0x24] sm:$0xf]
      %v434 = vld [vmem:[%s172 + $0x28] sm:$0xf]
      %v435 = vld [vmem:[%s172 + $0x2c] sm:$0x1]
      %vm436 = vsmask.f32 3328
      %vm437 = vsmask.f32 7440
      %vm438 = vmor %vm436, %vm437
      %v440 = vshrl.u32 %v424, 16
      %v442 = vrot.slane %v440, 4
      %v443 = vshll.u32 %v424, 16
      %v445 = vrot.slane %v443, 5
      %v446 = vor.u32 %v442, %v445
      %v447 = vrot.slane %v446, 4
      %v449 = vshll.u32 %v425, 16
      %v451 = vrot.slane %v449, 5
      %v452 = vsel %vm438, %v447, %v451
      %v453 = vshrl.u32 %v425, 16
      %v455 = vrot.slane %v453, 4
      %v456 = vor.u32 %v455, %v451
      %v457 = vrot.slane %v456, 4
      %v459 = vshll.u32 %v426, 16
      %v461 = vrot.slane %v459, 5
      %v462 = vsel %vm438, %v457, %v461
      %v464 = vshrl.u32 %v427, 16
      %v466 = vrot.slane %v464, 4
      %v467 = vshll.u32 %v427, 16
      %v469 = vrot.slane %v467, 5
      %v470 = vor.u32 %v466, %v469
      %v471 = vrot.slane %v470, 4
      %v473 = vshll.u32 %v428, 16
      %v475 = vrot.slane %v473, 5
      %v476 = vsel %vm438, %v471, %v475
      %v477 = vshrl.u32 %v428, 16
      %v479 = vrot.slane %v477, 4
      %v480 = vor.u32 %v479, %v475
      %v481 = vrot.slane %v480, 4
      %v483 = vshll.u32 %v429, 16
      %v485 = vrot.slane %v483, 5
      %v486 = vsel %vm438, %v481, %v485
      %v488 = vshrl.u32 %v430, 16
      %v490 = vrot.slane %v488, 4
      %v491 = vshll.u32 %v430, 16
      %v493 = vrot.slane %v491, 5
      %v494 = vor.u32 %v490, %v493
      %v495 = vrot.slane %v494, 4
      %v497 = vshll.u32 %v431, 16
      %v499 = vrot.slane %v497, 5
      %v500 = vsel %vm438, %v495, %v499
      %v501 = vshrl.u32 %v431, 16
      %v503 = vrot.slane %v501, 4
      %v504 = vor.u32 %v503, %v499
      %v505 = vrot.slane %v504, 4
      %v507 = vshll.u32 %v432, 16
      %v509 = vrot.slane %v507, 5
      %v510 = vsel %vm438, %v505, %v509
      %v512 = vshrl.u32 %v433, 16
      %v514 = vrot.slane %v512, 4
      %v515 = vshll.u32 %v433, 16
      %v517 = vrot.slane %v515, 5
      %v518 = vor.u32 %v514, %v517
      %v519 = vrot.slane %v518, 4
      %v521 = vshll.u32 %v434, 16
      %v523 = vrot.slane %v521, 5
      %v524 = vsel %vm438, %v519, %v523
      %v525 = vshrl.u32 %v434, 16
      %v527 = vrot.slane %v525, 4
      %v528 = vor.u32 %v527, %v523
      %v529 = vrot.slane %v528, 4
      %v531 = vshll.u32 %v435, 16
      %v533 = vrot.slane %v531, 5
      %v534 = vsel %vm438, %v529, %v533
      %s535 = scalar_lea.vmem %s177, 32
      %v536 = vld [vmem:[%s535] sm:$0xf]
      %v537 = vld [vmem:[%s535 + $0x4] sm:$0xf]
      %v538 = vld [vmem:[%s535 + $0x8] sm:$0xf]
      %v539 = vld [vmem:[%s535 + $0xc] sm:$0xf]
      %v540 = vunpack.c.l.b16 %v452
      %v541 = vunpack.c.l.b16 %v462
      %v542 = vunpack.c.l.b16 %v476
      %v543 = vunpack.c.l.b16 %v486
      %v544 = vunpack.c.l.b16 %v500
      %v545 = vunpack.c.l.b16 %v510
      %v546 = vunpack.c.l.b16 %v524
      %v547 = vunpack.c.l.b16 %v534
      %v548 = vpack.c.b16 %v541, %v540
      %v549 = vpack.c.b16 %v543, %v542
      %v550 = vpack.c.b16 %v545, %v544
      %v551 = vpack.c.b16 %v547, %v546
      %v556 = vunpack.c.l.b16 %v536
      %v557 = vunpack.c.l.b16 %v537
      %v558 = vunpack.c.l.b16 %v538
      %v559 = vunpack.c.l.b16 %v539
      %v560 = vpack.c.b16 %v557, %v556
      %v561 = vpack.c.b16 %v559, %v558
      %v565 = vsel %vm245, %v548, 0
      %v568 = vsel %vm245, %v549, 0
      %v571 = vsel %vm245, %v550, 0
      %v574 = vsel %vm245, %v551, 0
      %576 = vmatprep.subr.bf16.mxu0 0
      %577 = vmatpush1.bf16.msra.mxu0 %v560
      %578 = vmatprep.subr.bf16.mxu0 0
      %579 = vmatpush1.bf16.msra.mxu0 %v561
      %580 = vmatprep.subr.bf16.mxu0 0
      %581 = vmatpush1.bf16.msra.mxu0 0
      %582 = vmatprep.subr.bf16.mxu0 0
      %583 = vmatpush1.bf16.msra.mxu0 0
      %584 = vmatprep.subr.bf16.mxu0 0
      %585 = vmatpush1.bf16.msra.mxu0 0
      %586 = vmatprep.subr.bf16.mxu0 0
      %587 = vmatpush1.bf16.msra.mxu0 0
      %588 = vmatprep.subr.bf16.mxu0 0
      %589 = vmatpush1.bf16.msra.mxu0 0
      %590 = vmatprep.subr.bf16.mxu0 0
      %591 = vmatpush1.bf16.msra.mxu0 0
      %592 = vmatprep.subr.bf16.mxu0 0
      %593 = vmatpush1.bf16.msra.mxu0 0
      %594 = vmatprep.subr.bf16.mxu0 0
      %595 = vmatpush1.bf16.msra.mxu0 0
      %596 = vmatprep.subr.bf16.mxu0 0
      %597 = vmatpush1.bf16.msra.mxu0 0
      %598 = vmatprep.subr.bf16.mxu0 0
      %599 = vmatpush1.bf16.msra.mxu0 0
      %600 = vmatprep.subr.bf16.mxu0 0
      %601 = vmatpush1.bf16.msra.mxu0 0
      %602 = vmatprep.subr.bf16.mxu0 0
      %603 = vmatpush1.bf16.msra.mxu0 0
      %604 = vmatprep.subr.bf16.mxu0 0
      %605 = vmatpush1.bf16.msra.mxu0 0
      %606 = vmatprep.subr.bf16.mxu0 0
      %607 = vmatpush1.bf16.msra.mxu0 0
      %608 = vmatprep.mubr.bf16.mxu0 0
      %609 = vmatmul.mubr.bf16.gmra.mrb[0].mxu0 %v565
      %v610 = vpop.f32.mrb[0].mxu0
      %v611 = vadd.f32 0.0, %v610
      %v612 = vpop.f32.mrb[0].mxu0
      %v613 = vpop.f32.mrb[0].mxu0
      %v614 = vpop.f32.mrb[0].mxu0
      %615 = vmatprep.mubr.bf16.mxu0 0
      %616 = vmatmul.mubr.bf16.gmra.mrb[0].mxu0 %v568
      %v617 = vpop.f32.mrb[0].mxu0
      %v618 = vadd.f32 0.0, %v617
      %v619 = vpop.f32.mrb[0].mxu0
      %v620 = vpop.f32.mrb[0].mxu0
      %v621 = vpop.f32.mrb[0].mxu0
      %622 = vmatprep.mubr.bf16.mxu0 0
      %623 = vmatmul.mubr.bf16.gmra.mrb[0].mxu0 %v571
      %v624 = vpop.f32.mrb[0].mxu0
      %v625 = vadd.f32 0.0, %v624
      %v626 = vpop.f32.mrb[0].mxu0
      %v627 = vpop.f32.mrb[0].mxu0
      %v628 = vpop.f32.mrb[0].mxu0
      %629 = vmatprep.mubr.bf16.mxu0 0
      %630 = vmatmul.mubr.bf16.gmra.mrb[0].mxu0 %v574
      %v631 = vpop.f32.mrb[0].mxu0
      %v632 = vadd.f32 0.0, %v631
      %v633 = vpop.f32.mrb[0].mxu0
      %v634 = vpop.f32.mrb[0].mxu0
      %v635 = vpop.f32.mrb[0].mxu0
      %636 = vdwg.mxu0
      %v637 = vadd.f32 %v398, %v611
      %v638 = vadd.f32 %v405, %v618
      %v639 = vadd.f32 %v412, %v625
      %v640 = vadd.f32 %v419, %v632
      %s641 = scalar_lea.vmem %s172, 120
      %v642 = vld [vmem:[%s641] sm:$0xf]
      %v643 = vld [vmem:[%s641 + $0x4] sm:$0xf]
      %v644 = vld [vmem:[%s641 + $0xc] sm:$0xf]
      %v645 = vld [vmem:[%s641 + $0x10] sm:$0xf]
      %v646 = vld [vmem:[%s641 + $0x18] sm:$0xf]
      %v647 = vld [vmem:[%s641 + $0x1c] sm:$0xf]
      %v648 = vld [vmem:[%s641 + $0x24] sm:$0xf]
      %v649 = vld [vmem:[%s641 + $0x28] sm:$0xf]
      %s650 = scalar_lea.vmem %s177, 48
      %v651 = vld [vmem:[%s650] sm:$0xf]
      %v652 = vld [vmem:[%s650 + $0x4] sm:$0xf]
      %v653 = vld [vmem:[%s650 + $0x8] sm:$0xf]
      %v654 = vld [vmem:[%s650 + $0xc] sm:$0xf]
      %v663 = vunpack.c.l.b16 %v642
      %v664 = vunpack.c.l.b16 %v643
      %v665 = vunpack.c.l.b16 %v644
      %v666 = vunpack.c.l.b16 %v645
      %v667 = vunpack.c.l.b16 %v646
      %v668 = vunpack.c.l.b16 %v647
      %v669 = vunpack.c.l.b16 %v648
      %v670 = vunpack.c.l.b16 %v649
      %v671 = vpack.c.b16 %v664, %v663
      %v672 = vpack.c.b16 %v666, %v665
      %v673 = vpack.c.b16 %v668, %v667
      %v674 = vpack.c.b16 %v670, %v669
      %v679 = vunpack.c.l.b16 %v651
      %v680 = vunpack.c.l.b16 %v652
      %v681 = vunpack.c.l.b16 %v653
      %v682 = vunpack.c.l.b16 %v654
      %v683 = vpack.c.b16 %v680, %v679
      %v684 = vpack.c.b16 %v682, %v681
      %v688 = vsel %vm245, %v671, 0
      %v691 = vsel %vm245, %v672, 0
      %v694 = vsel %vm245, %v673, 0
      %v697 = vsel %vm245, %v674, 0
      %699 = vmatprep.subr.bf16.mxu0 0
      %700 = vmatpush1.bf16.msra.mxu0 %v683
      %701 = vmatprep.subr.bf16.mxu0 0
      %702 = vmatpush1.bf16.msra.mxu0 %v684
      %703 = vmatprep.subr.bf16.mxu0 0
      %704 = vmatpush1.bf16.msra.mxu0 0
      %705 = vmatprep.subr.bf16.mxu0 0
      %706 = vmatpush1.bf16.msra.mxu0 0
      %707 = vmatprep.subr.bf16.mxu0 0
      %708 = vmatpush1.bf16.msra.mxu0 0
      %709 = vmatprep.subr.bf16.mxu0 0
      %710 = vmatpush1.bf16.msra.mxu0 0
      %711 = vmatprep.subr.bf16.mxu0 0
      %712 = vmatpush1.bf16.msra.mxu0 0
      %713 = vmatprep.subr.bf16.mxu0 0
      %714 = vmatpush1.bf16.msra.mxu0 0
      %715 = vmatprep.subr.bf16.mxu0 0
      %716 = vmatpush1.bf16.msra.mxu0 0
      %717 = vmatprep.subr.bf16.mxu0 0
      %718 = vmatpush1.bf16.msra.mxu0 0
      %719 = vmatprep.subr.bf16.mxu0 0
      %720 = vmatpush1.bf16.msra.mxu0 0
      %721 = vmatprep.subr.bf16.mxu0 0
      %722 = vmatpush1.bf16.msra.mxu0 0
      %723 = vmatprep.subr.bf16.mxu0 0
      %724 = vmatpush1.bf16.msra.mxu0 0
      %725 = vmatprep.subr.bf16.mxu0 0
      %726 = vmatpush1.bf16.msra.mxu0 0
      %727 = vmatprep.subr.bf16.mxu0 0
      %728 = vmatpush1.bf16.msra.mxu0 0
      %729 = vmatprep.subr.bf16.mxu0 0
      %730 = vmatpush1.bf16.msra.mxu0 0
      %731 = vmatprep.mubr.bf16.mxu0 0
      %732 = vmatmul.mubr.bf16.gmra.mrb[0].mxu0 %v688
      %v733 = vpop.f32.mrb[0].mxu0
      %v734 = vadd.f32 0.0, %v733
      %v735 = vpop.f32.mrb[0].mxu0
      %v736 = vpop.f32.mrb[0].mxu0
      %v737 = vpop.f32.mrb[0].mxu0
      %738 = vmatprep.mubr.bf16.mxu0 0
      %739 = vmatmul.mubr.bf16.gmra.mrb[0].mxu0 %v691
      %v740 = vpop.f32.mrb[0].mxu0
      %v741 = vadd.f32 0.0, %v740
      %v742 = vpop.f32.mrb[0].mxu0
      %v743 = vpop.f32.mrb[0].mxu0
      %v744 = vpop.f32.mrb[0].mxu0
      %745 = vmatprep.mubr.bf16.mxu0 0
      %746 = vmatmul.mubr.bf16.gmra.mrb[0].mxu0 %v694
      %v747 = vpop.f32.mrb[0].mxu0
      %v748 = vadd.f32 0.0, %v747
      %v749 = vpop.f32.mrb[0].mxu0
      %v750 = vpop.f32.mrb[0].mxu0
      %v751 = vpop.f32.mrb[0].mxu0
      %752 = vmatprep.mubr.bf16.mxu0 0
      %753 = vmatmul.mubr.bf16.gmra.mrb[0].mxu0 %v697
      %v754 = vpop.f32.mrb[0].mxu0
      %v755 = vadd.f32 0.0, %v754
      %v756 = vpop.f32.mrb[0].mxu0
      %v757 = vpop.f32.mrb[0].mxu0
      %v758 = vpop.f32.mrb[0].mxu0
      %759 = vdwg.mxu0
      %v760 = vadd.f32 %v637, %v734
      %v761 = vadd.f32 %v638, %v741
      %v762 = vadd.f32 %v639, %v748
      %v763 = vadd.f32 %v640, %v755
      %s764 = scalar_lea.vmem %s172, 180
      %v765 = vld [vmem:[%s764] sm:$0xf]
      %v766 = vld [vmem:[%s764 + $0x4] sm:$0xf]
      %v767 = vld [vmem:[%s764 + $0xc] sm:$0xf]
      %v768 = vld [vmem:[%s764 + $0x10] sm:$0xf]
      %v769 = vld [vmem:[%s764 + $0x18] sm:$0xf]
      %v770 = vld [vmem:[%s764 + $0x1c] sm:$0xf]
      %v771 = vld [vmem:[%s764 + $0x24] sm:$0xf]
      %v772 = vld [vmem:[%s764 + $0x28] sm:$0xf]
      %s773 = scalar_lea.vmem %s177, 64
      %v774 = vld [vmem:[%s773] sm:$0xf]
      %v775 = vld [vmem:[%s773 + $0x4] sm:$0xf]
      %v776 = vld [vmem:[%s773 + $0x8] sm:$0xf]
      %v777 = vld [vmem:[%s773 + $0xc] sm:$0xf]
      %v786 = vunpack.c.l.b16 %v765
      %v787 = vunpack.c.l.b16 %v766
      %v788 = vunpack.c.l.b16 %v767
      %v789 = vunpack.c.l.b16 %v768
      %v790 = vunpack.c.l.b16 %v769
      %v791 = vunpack.c.l.b16 %v770
      %v792 = vunpack.c.l.b16 %v771
      %v793 = vunpack.c.l.b16 %v772
      %v794 = vpack.c.b16 %v787, %v786
      %v795 = vpack.c.b16 %v789, %v788
      %v796 = vpack.c.b16 %v791, %v790
      %v797 = vpack.c.b16 %v793, %v792
      %v802 = vunpack.c.l.b16 %v774
      %v803 = vunpack.c.l.b16 %v775
      %v804 = vunpack.c.l.b16 %v776
      %v805 = vunpack.c.l.b16 %v777
      %v806 = vpack.c.b16 %v803, %v802
      %v807 = vpack.c.b16 %v805, %v804
      %v811 = vsel %vm245, %v794, 0
      %v814 = vsel %vm245, %v795, 0
      %v817 = vsel %vm245, %v796, 0
      %v820 = vsel %vm245, %v797, 0
      %822 = vmatprep.subr.bf16.mxu0 0
      %823 = vmatpush1.bf16.msra.mxu0 %v806
      %824 = vmatprep.subr.bf16.mxu0 0
      %825 = vmatpush1.bf16.msra.mxu0 %v807
      %826 = vmatprep.subr.bf16.mxu0 0
      %827 = vmatpush1.bf16.msra.mxu0 0
      %828 = vmatprep.subr.bf16.mxu0 0
      %829 = vmatpush1.bf16.msra.mxu0 0
      %830 = vmatprep.subr.bf16.mxu0 0
      %831 = vmatpush1.bf16.msra.mxu0 0
      %832 = vmatprep.subr.bf16.mxu0 0
      %833 = vmatpush1.bf16.msra.mxu0 0
      %834 = vmatprep.subr.bf16.mxu0 0
      %835 = vmatpush1.bf16.msra.mxu0 0
      %836 = vmatprep.subr.bf16.mxu0 0
      %837 = vmatpush1.bf16.msra.mxu0 0
      %838 = vmatprep.subr.bf16.mxu0 0
      %839 = vmatpush1.bf16.msra.mxu0 0
      %840 = vmatprep.subr.bf16.mxu0 0
      %841 = vmatpush1.bf16.msra.mxu0 0
      %842 = vmatprep.subr.bf16.mxu0 0
      %843 = vmatpush1.bf16.msra.mxu0 0
      %844 = vmatprep.subr.bf16.mxu0 0
      %845 = vmatpush1.bf16.msra.mxu0 0
      %846 = vmatprep.subr.bf16.mxu0 0
      %847 = vmatpush1.bf16.msra.mxu0 0
      %848 = vmatprep.subr.bf16.mxu0 0
      %849 = vmatpush1.bf16.msra.mxu0 0
      %850 = vmatprep.subr.bf16.mxu0 0
      %851 = vmatpush1.bf16.msra.mxu0 0
      %852 = vmatprep.subr.bf16.mxu0 0
      %853 = vmatpush1.bf16.msra.mxu0 0
      %854 = vmatprep.mubr.bf16.mxu0 0
      %855 = vmatmul.mubr.bf16.gmra.mrb[0].mxu0 %v811
      %v856 = vpop.f32.mrb[0].mxu0
      %v857 = vadd.f32 0.0, %v856
      %v858 = vpop.f32.mrb[0].mxu0
      %v859 = vpop.f32.mrb[0].mxu0
      %v860 = vpop.f32.mrb[0].mxu0
      %861 = vmatprep.mubr.bf16.mxu0 0
      %862 = vmatmul.mubr.bf16.gmra.mrb[0].mxu0 %v814
      %v863 = vpop.f32.mrb[0].mxu0
      %v864 = vadd.f32 0.0, %v863
      %v865 = vpop.f32.mrb[0].mxu0
      %v866 = vpop.f32.mrb[0].mxu0
      %v867 = vpop.f32.mrb[0].mxu0
      %868 = vmatprep.mubr.bf16.mxu0 0
      %869 = vmatmul.mubr.bf16.gmra.mrb[0].mxu0 %v817
      %v870 = vpop.f32.mrb[0].mxu0
      %v871 = vadd.f32 0.0, %v870
      %v872 = vpop.f32.mrb[0].mxu0
      %v873 = vpop.f32.mrb[0].mxu0
      %v874 = vpop.f32.mrb[0].mxu0
      %875 = vmatprep.mubr.bf16.mxu0 0
      %876 = vmatmul.mubr.bf16.gmra.mrb[0].mxu0 %v820
      %v877 = vpop.f32.mrb[0].mxu0
      %v878 = vadd.f32 0.0, %v877
      %v879 = vpop.f32.mrb[0].mxu0
      %v880 = vpop.f32.mrb[0].mxu0
      %v881 = vpop.f32.mrb[0].mxu0
      %882 = vdwg.mxu0
      %v883 = vadd.f32 %v760, %v857
      %v884 = vadd.f32 %v761, %v864
      %v885 = vadd.f32 %v762, %v871
      %v886 = vadd.f32 %v763, %v878
      %v887 = vld [vmem:[%s641] sm:$0xf]
      %v888 = vld [vmem:[%s641 + $0x4] sm:$0xf]
      %v889 = vld [vmem:[%s641 + $0x8] sm:$0x1]
      %v890 = vld [vmem:[%s641 + $0xc] sm:$0xf]
      %v891 = vld [vmem:[%s641 + $0x10] sm:$0xf]
      %v892 = vld [vmem:[%s641 + $0x14] sm:$0x1]
      %v893 = vld [vmem:[%s641 + $0x18] sm:$0xf]
      %v894 = vld [vmem:[%s641 + $0x1c] sm:$0xf]
      %v895 = vld [vmem:[%s641 + $0x20] sm:$0x1]
      %v896 = vld [vmem:[%s641 + $0x24] sm:$0xf]
      %v897 = vld [vmem:[%s641 + $0x28] sm:$0xf]
      %v898 = vld [vmem:[%s641 + $0x2c] sm:$0x1]
      %v900 = vshrl.u32 %v887, 16
      %v902 = vrot.slane %v900, 4
      %v903 = vshll.u32 %v887, 16
      %v905 = vrot.slane %v903, 5
      %v906 = vor.u32 %v902, %v905
      %v907 = vrot.slane %v906, 4
      %v909 = vshll.u32 %v888, 16
      %v911 = vrot.slane %v909, 5
      %v912 = vsel %vm438, %v907, %v911
      %v913 = vshrl.u32 %v888, 16
      %v915 = vrot.slane %v913, 4
      %v916 = vor.u32 %v915, %v911
      %v917 = vrot.slane %v916, 4
      %v919 = vshll.u32 %v889, 16
      %v921 = vrot.slane %v919, 5
      %v922 = vsel %vm438, %v917, %v921
      %v924 = vshrl.u32 %v890, 16
      %v926 = vrot.slane %v924, 4
      %v927 = vshll.u32 %v890, 16
      %v929 = vrot.slane %v927, 5
      %v930 = vor.u32 %v926, %v929
      %v931 = vrot.slane %v930, 4
      %v933 = vshll.u32 %v891, 16
      %v935 = vrot.slane %v933, 5
      %v936 = vsel %vm438, %v931, %v935
      %v937 = vshrl.u32 %v891, 16
      %v939 = vrot.slane %v937, 4
      %v940 = vor.u32 %v939, %v935
      %v941 = vrot.slane %v940, 4
      %v943 = vshll.u32 %v892, 16
      %v945 = vrot.slane %v943, 5
      %v946 = vsel %vm438, %v941, %v945
      %v948 = vshrl.u32 %v893, 16
      %v950 = vrot.slane %v948, 4
      %v951 = vshll.u32 %v893, 16
      %v953 = vrot.slane %v951, 5
      %v954 = vor.u32 %v950, %v953
      %v955 = vrot.slane %v954, 4
      %v957 = vshll.u32 %v894, 16
      %v959 = vrot.slane %v957, 5
      %v960 = vsel %vm438, %v955, %v959
      %v961 = vshrl.u32 %v894, 16
      %v963 = vrot.slane %v961, 4
      %v964 = vor.u32 %v963, %v959
      %v965 = vrot.slane %v964, 4
      %v967 = vshll.u32 %v895, 16
      %v969 = vrot.slane %v967, 5
      %v970 = vsel %vm438, %v965, %v969
      %v972 = vshrl.u32 %v896, 16
      %v974 = vrot.slane %v972, 4
      %v975 = vshll.u32 %v896, 16
      %v977 = vrot.slane %v975, 5
      %v978 = vor.u32 %v974, %v977
      %v979 = vrot.slane %v978, 4
      %v981 = vshll.u32 %v897, 16
      %v983 = vrot.slane %v981, 5
      %v984 = vsel %vm438, %v979, %v983
      %v985 = vshrl.u32 %v897, 16
      %v987 = vrot.slane %v985, 4
      %v988 = vor.u32 %v987, %v983
      %v989 = vrot.slane %v988, 4
      %v991 = vshll.u32 %v898, 16
      %v993 = vrot.slane %v991, 5
      %v994 = vsel %vm438, %v989, %v993
      %s995 = scalar_lea.vmem %s177, 80
      %v996 = vld [vmem:[%s995] sm:$0xf]
      %v997 = vld [vmem:[%s995 + $0x4] sm:$0xf]
      %v998 = vld [vmem:[%s995 + $0x8] sm:$0xf]
      %v999 = vld [vmem:[%s995 + $0xc] sm:$0xf]
      %v1000 = vunpack.c.l.b16 %v912
      %v1001 = vunpack.c.l.b16 %v922
      %v1002 = vunpack.c.l.b16 %v936
      %v1003 = vunpack.c.l.b16 %v946
      %v1004 = vunpack.c.l.b16 %v960
      %v1005 = vunpack.c.l.b16 %v970
      %v1006 = vunpack.c.l.b16 %v984
      %v1007 = vunpack.c.l.b16 %v994
      %v1008 = vpack.c.b16 %v1001, %v1000
      %v1009 = vpack.c.b16 %v1003, %v1002
      %v1010 = vpack.c.b16 %v1005, %v1004
      %v1011 = vpack.c.b16 %v1007, %v1006
      %v1016 = vunpack.c.l.b16 %v996
      %v1017 = vunpack.c.l.b16 %v997
      %v1018 = vunpack.c.l.b16 %v998
      %v1019 = vunpack.c.l.b16 %v999
      %v1020 = vpack.c.b16 %v1017, %v1016
      %v1021 = vpack.c.b16 %v1019, %v1018
      %v1025 = vsel %vm245, %v1008, 0
      %v1028 = vsel %vm245, %v1009, 0
      %v1031 = vsel %vm245, %v1010, 0
      %v1034 = vsel %vm245, %v1011, 0
      %1036 = vmatprep.subr.bf16.mxu0 0
      %1037 = vmatpush1.bf16.msra.mxu0 %v1020
      %1038 = vmatprep.subr.bf16.mxu0 0
      %1039 = vmatpush1.bf16.msra.mxu0 %v1021
      %1040 = vmatprep.subr.bf16.mxu0 0
      %1041 = vmatpush1.bf16.msra.mxu0 0
      %1042 = vmatprep.subr.bf16.mxu0 0
      %1043 = vmatpush1.bf16.msra.mxu0 0
      %1044 = vmatprep.subr.bf16.mxu0 0
      %1045 = vmatpush1.bf16.msra.mxu0 0
      %1046 = vmatprep.subr.bf16.mxu0 0
      %1047 = vmatpush1.bf16.msra.mxu0 0
      %1048 = vmatprep.subr.bf16.mxu0 0
      %1049 = vmatpush1.bf16.msra.mxu0 0
      %1050 = vmatprep.subr.bf16.mxu0 0
      %1051 = vmatpush1.bf16.msra.mxu0 0
      %1052 = vmatprep.subr.bf16.mxu0 0
      %1053 = vmatpush1.bf16.msra.mxu0 0
      %1054 = vmatprep.subr.bf16.mxu0 0
      %1055 = vmatpush1.bf16.msra.mxu0 0
      %1056 = vmatprep.subr.bf16.mxu0 0
      %1057 = vmatpush1.bf16.msra.mxu0 0
      %1058 = vmatprep.subr.bf16.mxu0 0
      %1059 = vmatpush1.bf16.msra.mxu0 0
      %1060 = vmatprep.subr.bf16.mxu0 0
      %1061 = vmatpush1.bf16.msra.mxu0 0
      %1062 = vmatprep.subr.bf16.mxu0 0
      %1063 = vmatpush1.bf16.msra.mxu0 0
      %1064 = vmatprep.subr.bf16.mxu0 0
      %1065 = vmatpush1.bf16.msra.mxu0 0
      %1066 = vmatprep.subr.bf16.mxu0 0
      %1067 = vmatpush1.bf16.msra.mxu0 0
      %1068 = vmatprep.mubr.bf16.mxu0 0
      %1069 = vmatmul.mubr.bf16.gmra.mrb[0].mxu0 %v1025
      %v1070 = vpop.f32.mrb[0].mxu0
      %v1071 = vadd.f32 0.0, %v1070
      %v1072 = vpop.f32.mrb[0].mxu0
      %v1073 = vpop.f32.mrb[0].mxu0
      %v1074 = vpop.f32.mrb[0].mxu0
      %1075 = vmatprep.mubr.bf16.mxu0 0
      %1076 = vmatmul.mubr.bf16.gmra.mrb[0].mxu0 %v1028
      %v1077 = vpop.f32.mrb[0].mxu0
      %v1078 = vadd.f32 0.0, %v1077
      %v1079 = vpop.f32.mrb[0].mxu0
      %v1080 = vpop.f32.mrb[0].mxu0
      %v1081 = vpop.f32.mrb[0].mxu0
      %1082 = vmatprep.mubr.bf16.mxu0 0
      %1083 = vmatmul.mubr.bf16.gmra.mrb[0].mxu0 %v1031
      %v1084 = vpop.f32.mrb[0].mxu0
      %v1085 = vadd.f32 0.0, %v1084
      %v1086 = vpop.f32.mrb[0].mxu0
      %v1087 = vpop.f32.mrb[0].mxu0
      %v1088 = vpop.f32.mrb[0].mxu0
      %1089 = vmatprep.mubr.bf16.mxu0 0
      %1090 = vmatmul.mubr.bf16.gmra.mrb[0].mxu0 %v1034
      %v1091 = vpop.f32.mrb[0].mxu0
      %v1092 = vadd.f32 0.0, %v1091
      %v1093 = vpop.f32.mrb[0].mxu0
      %v1094 = vpop.f32.mrb[0].mxu0
      %v1095 = vpop.f32.mrb[0].mxu0
      %1096 = vdwg.mxu0
      %v1097 = vadd.f32 %v883, %v1071
      %v1098 = vadd.f32 %v884, %v1078
      %v1099 = vadd.f32 %v885, %v1085
      %v1100 = vadd.f32 %v886, %v1092
      %s1101 = scalar_lea.vmem %s172, 12
      %v1102 = vld [vmem:[%s1101] sm:$0xf]
      %v1103 = vld [vmem:[%s1101 + $0x4] sm:$0xf]
      %v1104 = vld [vmem:[%s1101 + $0xc] sm:$0xf]
      %v1105 = vld [vmem:[%s1101 + $0x10] sm:$0xf]
      %v1106 = vld [vmem:[%s1101 + $0x18] sm:$0xf]
      %v1107 = vld [vmem:[%s1101 + $0x1c] sm:$0xf]
      %v1108 = vld [vmem:[%s1101 + $0x24] sm:$0xf]
      %v1109 = vld [vmem:[%s1101 + $0x28] sm:$0xf]
      %s1110 = scalar_lea.vmem %s177, 96
      %v1111 = vld [vmem:[%s1110] sm:$0xf]
      %v1112 = vld [vmem:[%s1110 + $0x4] sm:$0xf]
      %v1113 = vld [vmem:[%s1110 + $0x8] sm:$0xf]
      %v1114 = vld [vmem:[%s1110 + $0xc] sm:$0xf]
      %v1123 = vunpack.c.l.b16 %v1102
      %v1124 = vunpack.c.l.b16 %v1103
      %v1125 = vunpack.c.l.b16 %v1104
      %v1126 = vunpack.c.l.b16 %v1105
      %v1127 = vunpack.c.l.b16 %v1106
      %v1128 = vunpack.c.l.b16 %v1107
      %v1129 = vunpack.c.l.b16 %v1108
      %v1130 = vunpack.c.l.b16 %v1109
      %v1131 = vpack.c.b16 %v1124, %v1123
      %v1132 = vpack.c.b16 %v1126, %v1125
      %v1133 = vpack.c.b16 %v1128, %v1127
      %v1134 = vpack.c.b16 %v1130, %v1129
      %v1139 = vunpack.c.l.b16 %v1111
      %v1140 = vunpack.c.l.b16 %v1112
      %v1141 = vunpack.c.l.b16 %v1113
      %v1142 = vunpack.c.l.b16 %v1114
      %v1143 = vpack.c.b16 %v1140, %v1139
      %v1144 = vpack.c.b16 %v1142, %v1141
      %v1148 = vsel %vm245, %v1131, 0
      %v1151 = vsel %vm245, %v1132, 0
      %v1154 = vsel %vm245, %v1133, 0
      %v1157 = vsel %vm245, %v1134, 0
      %1159 = vmatprep.subr.bf16.mxu0 0
      %1160 = vmatpush1.bf16.msra.mxu0 %v1143
      %1161 = vmatprep.subr.bf16.mxu0 0
      %1162 = vmatpush1.bf16.msra.mxu0 %v1144
      %1163 = vmatprep.subr.bf16.mxu0 0
      %1164 = vmatpush1.bf16.msra.mxu0 0
      %1165 = vmatprep.subr.bf16.mxu0 0
      %1166 = vmatpush1.bf16.msra.mxu0 0
      %1167 = vmatprep.subr.bf16.mxu0 0
      %1168 = vmatpush1.bf16.msra.mxu0 0
      %1169 = vmatprep.subr.bf16.mxu0 0
      %1170 = vmatpush1.bf16.msra.mxu0 0
      %1171 = vmatprep.subr.bf16.mxu0 0
      %1172 = vmatpush1.bf16.msra.mxu0 0
      %1173 = vmatprep.subr.bf16.mxu0 0
      %1174 = vmatpush1.bf16.msra.mxu0 0
      %1175 = vmatprep.subr.bf16.mxu0 0
      %1176 = vmatpush1.bf16.msra.mxu0 0
      %1177 = vmatprep.subr.bf16.mxu0 0
      %1178 = vmatpush1.bf16.msra.mxu0 0
      %1179 = vmatprep.subr.bf16.mxu0 0
      %1180 = vmatpush1.bf16.msra.mxu0 0
      %1181 = vmatprep.subr.bf16.mxu0 0
      %1182 = vmatpush1.bf16.msra.mxu0 0
      %1183 = vmatprep.subr.bf16.mxu0 0
      %1184 = vmatpush1.bf16.msra.mxu0 0
      %1185 = vmatprep.subr.bf16.mxu0 0
      %1186 = vmatpush1.bf16.msra.mxu0 0
      %1187 = vmatprep.subr.bf16.mxu0 0
      %1188 = vmatpush1.bf16.msra.mxu0 0
      %1189 = vmatprep.subr.bf16.mxu0 0
      %1190 = vmatpush1.bf16.msra.mxu0 0
      %1191 = vmatprep.mubr.bf16.mxu0 0
      %1192 = vmatmul.mubr.bf16.gmra.mrb[0].mxu0 %v1148
      %v1193 = vpop.f32.mrb[0].mxu0
      %v1194 = vadd.f32 0.0, %v1193
      %v1195 = vpop.f32.mrb[0].mxu0
      %v1196 = vpop.f32.mrb[0].mxu0
      %v1197 = vpop.f32.mrb[0].mxu0
      %1198 = vmatprep.mubr.bf16.mxu0 0
      %1199 = vmatmul.mubr.bf16.gmra.mrb[0].mxu0 %v1151
      %v1200 = vpop.f32.mrb[0].mxu0
      %v1201 = vadd.f32 0.0, %v1200
      %v1202 = vpop.f32.mrb[0].mxu0
      %v1203 = vpop.f32.mrb[0].mxu0
      %v1204 = vpop.f32.mrb[0].mxu0
      %1205 = vmatprep.mubr.bf16.mxu0 0
      %1206 = vmatmul.mubr.bf16.gmra.mrb[0].mxu0 %v1154
      %v1207 = vpop.f32.mrb[0].mxu0
      %v1208 = vadd.f32 0.0, %v1207
      %v1209 = vpop.f32.mrb[0].mxu0
      %v1210 = vpop.f32.mrb[0].mxu0
      %v1211 = vpop.f32.mrb[0].mxu0
      %1212 = vmatprep.mubr.bf16.mxu0 0
      %1213 = vmatmul.mubr.bf16.gmra.mrb[0].mxu0 %v1157
      %v1214 = vpop.f32.mrb[0].mxu0
      %v1215 = vadd.f32 0.0, %v1214
      %v1216 = vpop.f32.mrb[0].mxu0
      %v1217 = vpop.f32.mrb[0].mxu0
      %v1218 = vpop.f32.mrb[0].mxu0
      %1219 = vdwg.mxu0
      %v1220 = vadd.f32 %v1097, %v1194
      %v1221 = vadd.f32 %v1098, %v1201
      %v1222 = vadd.f32 %v1099, %v1208
      %v1223 = vadd.f32 %v1100, %v1215
      %s1224 = scalar_lea.vmem %s172, 72
      %v1225 = vld [vmem:[%s1224] sm:$0xf]
      %v1226 = vld [vmem:[%s1224 + $0x4] sm:$0xf]
      %v1227 = vld [vmem:[%s1224 + $0xc] sm:$0xf]
      %v1228 = vld [vmem:[%s1224 + $0x10] sm:$0xf]
      %v1229 = vld [vmem:[%s1224 + $0x18] sm:$0xf]
      %v1230 = vld [vmem:[%s1224 + $0x1c] sm:$0xf]
      %v1231 = vld [vmem:[%s1224 + $0x24] sm:$0xf]
      %v1232 = vld [vmem:[%s1224 + $0x28] sm:$0xf]
      %s1233 = scalar_lea.vmem %s177, 112
      %v1234 = vld [vmem:[%s1233] sm:$0xf]
      %v1235 = vld [vmem:[%s1233 + $0x4] sm:$0xf]
      %v1236 = vld [vmem:[%s1233 + $0x8] sm:$0xf]
      %v1237 = vld [vmem:[%s1233 + $0xc] sm:$0xf]
      %v1246 = vunpack.c.l.b16 %v1225
      %v1247 = vunpack.c.l.b16 %v1226
      %v1248 = vunpack.c.l.b16 %v1227
      %v1249 = vunpack.c.l.b16 %v1228
      %v1250 = vunpack.c.l.b16 %v1229
      %v1251 = vunpack.c.l.b16 %v1230
      %v1252 = vunpack.c.l.b16 %v1231
      %v1253 = vunpack.c.l.b16 %v1232
      %v1254 = vpack.c.b16 %v1247, %v1246
      %v1255 = vpack.c.b16 %v1249, %v1248
      %v1256 = vpack.c.b16 %v1251, %v1250
      %v1257 = vpack.c.b16 %v1253, %v1252
      %v1262 = vunpack.c.l.b16 %v1234
      %v1263 = vunpack.c.l.b16 %v1235
      %v1264 = vunpack.c.l.b16 %v1236
      %v1265 = vunpack.c.l.b16 %v1237
      %v1266 = vpack.c.b16 %v1263, %v1262
      %v1267 = vpack.c.b16 %v1265, %v1264
      %v1271 = vsel %vm245, %v1254, 0
      %v1274 = vsel %vm245, %v1255, 0
      %v1277 = vsel %vm245, %v1256, 0
      %v1280 = vsel %vm245, %v1257, 0
      %1282 = vmatprep.subr.bf16.mxu0 0
      %1283 = vmatpush1.bf16.msra.mxu0 %v1266
      %1284 = vmatprep.subr.bf16.mxu0 0
      %1285 = vmatpush1.bf16.msra.mxu0 %v1267
      %1286 = vmatprep.subr.bf16.mxu0 0
      %1287 = vmatpush1.bf16.msra.mxu0 0
      %1288 = vmatprep.subr.bf16.mxu0 0
      %1289 = vmatpush1.bf16.msra.mxu0 0
      %1290 = vmatprep.subr.bf16.mxu0 0
      %1291 = vmatpush1.bf16.msra.mxu0 0
      %1292 = vmatprep.subr.bf16.mxu0 0
      %1293 = vmatpush1.bf16.msra.mxu0 0
      %1294 = vmatprep.subr.bf16.mxu0 0
      %1295 = vmatpush1.bf16.msra.mxu0 0
      %1296 = vmatprep.subr.bf16.mxu0 0
      %1297 = vmatpush1.bf16.msra.mxu0 0
      %1298 = vmatprep.subr.bf16.mxu0 0
      %1299 = vmatpush1.bf16.msra.mxu0 0
      %1300 = vmatprep.subr.bf16.mxu0 0
      %1301 = vmatpush1.bf16.msra.mxu0 0
      %1302 = vmatprep.subr.bf16.mxu0 0
      %1303 = vmatpush1.bf16.msra.mxu0 0
      %1304 = vmatprep.subr.bf16.mxu0 0
      %1305 = vmatpush1.bf16.msra.mxu0 0
      %1306 = vmatprep.subr.bf16.mxu0 0
      %1307 = vmatpush1.bf16.msra.mxu0 0
      %1308 = vmatprep.subr.bf16.mxu0 0
      %1309 = vmatpush1.bf16.msra.mxu0 0
      %1310 = vmatprep.subr.bf16.mxu0 0
      %1311 = vmatpush1.bf16.msra.mxu0 0
      %1312 = vmatprep.subr.bf16.mxu0 0
      %1313 = vmatpush1.bf16.msra.mxu0 0
      %1314 = vmatprep.mubr.bf16.mxu0 0
      %1315 = vmatmul.mubr.bf16.gmra.mrb[0].mxu0 %v1271
      %v1316 = vpop.f32.mrb[0].mxu0
      %v1317 = vadd.f32 0.0, %v1316
      %v1318 = vpop.f32.mrb[0].mxu0
      %v1319 = vpop.f32.mrb[0].mxu0
      %v1320 = vpop.f32.mrb[0].mxu0
      %1321 = vmatprep.mubr.bf16.mxu0 0
      %1322 = vmatmul.mubr.bf16.gmra.mrb[0].mxu0 %v1274
      %v1323 = vpop.f32.mrb[0].mxu0
      %v1324 = vadd.f32 0.0, %v1323
      %v1325 = vpop.f32.mrb[0].mxu0
      %v1326 = vpop.f32.mrb[0].mxu0
      %v1327 = vpop.f32.mrb[0].mxu0
      %1328 = vmatprep.mubr.bf16.mxu0 0
      %1329 = vmatmul.mubr.bf16.gmra.mrb[0].mxu0 %v1277
      %v1330 = vpop.f32.mrb[0].mxu0
      %v1331 = vadd.f32 0.0, %v1330
      %v1332 = vpop.f32.mrb[0].mxu0
      %v1333 = vpop.f32.mrb[0].mxu0
      %v1334 = vpop.f32.mrb[0].mxu0
      %1335 = vmatprep.mubr.bf16.mxu0 0
      %1336 = vmatmul.mubr.bf16.gmra.mrb[0].mxu0 %v1280
      %v1337 = vpop.f32.mrb[0].mxu0
      %v1338 = vadd.f32 0.0, %v1337
      %v1339 = vpop.f32.mrb[0].mxu0
      %v1340 = vpop.f32.mrb[0].mxu0
      %v1341 = vpop.f32.mrb[0].mxu0
      %1342 = vdwg.mxu0
      %v1343 = vadd.f32 %v1220, %v1317
      %v1344 = vadd.f32 %v1221, %v1324
      %v1345 = vadd.f32 %v1222, %v1331
      %v1346 = vadd.f32 %v1223, %v1338
      %v1347 = vld [vmem:[%s1101] sm:$0xf]
      %v1348 = vld [vmem:[%s1101 + $0x4] sm:$0xf]
      %v1349 = vld [vmem:[%s1101 + $0x8] sm:$0x1]
      %v1350 = vld [vmem:[%s1101 + $0xc] sm:$0xf]
      %v1351 = vld [vmem:[%s1101 + $0x10] sm:$0xf]
      %v1352 = vld [vmem:[%s1101 + $0x14] sm:$0x1]
      %v1353 = vld [vmem:[%s1101 + $0x18] sm:$0xf]
      %v1354 = vld [vmem:[%s1101 + $0x1c] sm:$0xf]
      %v1355 = vld [vmem:[%s1101 + $0x20] sm:$0x1]
      %v1356 = vld [vmem:[%s1101 + $0x24] sm:$0xf]
      %v1357 = vld [vmem:[%s1101 + $0x28] sm:$0xf]
      %v1358 = vld [vmem:[%s1101 + $0x2c] sm:$0x1]
      %v1360 = vshrl.u32 %v1347, 16
      %v1362 = vrot.slane %v1360, 4
      %v1363 = vshll.u32 %v1347, 16
      %v1365 = vrot.slane %v1363, 5
      %v1366 = vor.u32 %v1362, %v1365
      %v1367 = vrot.slane %v1366, 4
      %v1369 = vshll.u32 %v1348, 16
      %v1371 = vrot.slane %v1369, 5
      %v1372 = vsel %vm438, %v1367, %v1371
      %v1373 = vshrl.u32 %v1348, 16
      %v1375 = vrot.slane %v1373, 4
      %v1376 = vor.u32 %v1375, %v1371
      %v1377 = vrot.slane %v1376, 4
      %v1379 = vshll.u32 %v1349, 16
      %v1381 = vrot.slane %v1379, 5
      %v1382 = vsel %vm438, %v1377, %v1381
      %v1384 = vshrl.u32 %v1350, 16
      %v1386 = vrot.slane %v1384, 4
      %v1387 = vshll.u32 %v1350, 16
      %v1389 = vrot.slane %v1387, 5
      %v1390 = vor.u32 %v1386, %v1389
      %v1391 = vrot.slane %v1390, 4
      %v1393 = vshll.u32 %v1351, 16
      %v1395 = vrot.slane %v1393, 5
      %v1396 = vsel %vm438, %v1391, %v1395
      %v1397 = vshrl.u32 %v1351, 16
      %v1399 = vrot.slane %v1397, 4
      %v1400 = vor.u32 %v1399, %v1395
      %v1401 = vrot.slane %v1400, 4
      %v1403 = vshll.u32 %v1352, 16
      %v1405 = vrot.slane %v1403, 5
      %v1406 = vsel %vm438, %v1401, %v1405
      %v1408 = vshrl.u32 %v1353, 16
      %v1410 = vrot.slane %v1408, 4
      %v1411 = vshll.u32 %v1353, 16
      %v1413 = vrot.slane %v1411, 5
      %v1414 = vor.u32 %v1410, %v1413
      %v1415 = vrot.slane %v1414, 4
      %v1417 = vshll.u32 %v1354, 16
      %v1419 = vrot.slane %v1417, 5
      %v1420 = vsel %vm438, %v1415, %v1419
      %v1421 = vshrl.u32 %v1354, 16
      %v1423 = vrot.slane %v1421, 4
      %v1424 = vor.u32 %v1423, %v1419
      %v1425 = vrot.slane %v1424, 4
      %v1427 = vshll.u32 %v1355, 16
      %v1429 = vrot.slane %v1427, 5
      %v1430 = vsel %vm438, %v1425, %v1429
      %v1432 = vshrl.u32 %v1356, 16
      %v1434 = vrot.slane %v1432, 4
      %v1435 = vshll.u32 %v1356, 16
      %v1437 = vrot.slane %v1435, 5
      %v1438 = vor.u32 %v1434, %v1437
      %v1439 = vrot.slane %v1438, 4
      %v1441 = vshll.u32 %v1357, 16
      %v1443 = vrot.slane %v1441, 5
      %v1444 = vsel %vm438, %v1439, %v1443
      %v1445 = vshrl.u32 %v1357, 16
      %v1447 = vrot.slane %v1445, 4
      %v1448 = vor.u32 %v1447, %v1443
      %v1449 = vrot.slane %v1448, 4
      %v1451 = vshll.u32 %v1358, 16
      %v1453 = vrot.slane %v1451, 5
      %v1454 = vsel %vm438, %v1449, %v1453
      %s1455 = scalar_lea.vmem %s177, 128
      %v1456 = vld [vmem:[%s1455] sm:$0xf]
      %v1457 = vld [vmem:[%s1455 + $0x4] sm:$0xf]
      %v1458 = vld [vmem:[%s1455 + $0x8] sm:$0xf]
      %v1459 = vld [vmem:[%s1455 + $0xc] sm:$0xf]
      %v1460 = vunpack.c.l.b16 %v1372
      %v1461 = vunpack.c.l.b16 %v1382
      %v1462 = vunpack.c.l.b16 %v1396
      %v1463 = vunpack.c.l.b16 %v1406
      %v1464 = vunpack.c.l.b16 %v1420
      %v1465 = vunpack.c.l.b16 %v1430
      %v1466 = vunpack.c.l.b16 %v1444
      %v1467 = vunpack.c.l.b16 %v1454
      %v1468 = vpack.c.b16 %v1461, %v1460
      %v1469 = vpack.c.b16 %v1463, %v1462
      %v1470 = vpack.c.b16 %v1465, %v1464
      %v1471 = vpack.c.b16 %v1467, %v1466
      %v1476 = vunpack.c.l.b16 %v1456
      %v1477 = vunpack.c.l.b16 %v1457
      %v1478 = vunpack.c.l.b16 %v1458
      %v1479 = vunpack.c.l.b16 %v1459
      %v1480 = vpack.c.b16 %v1477, %v1476
      %v1481 = vpack.c.b16 %v1479, %v1478
      %v1485 = vsel %vm245, %v1468, 0
      %v1488 = vsel %vm245, %v1469, 0
      %v1491 = vsel %vm245, %v1470, 0
      %v1494 = vsel %vm245, %v1471, 0
      %1496 = vmatprep.subr.bf16.mxu0 0
      %1497 = vmatpush1.bf16.msra.mxu0 %v1480
      %1498 = vmatprep.subr.bf16.mxu0 0
      %1499 = vmatpush1.bf16.msra.mxu0 %v1481
      %1500 = vmatprep.subr.bf16.mxu0 0
      %1501 = vmatpush1.bf16.msra.mxu0 0
      %1502 = vmatprep.subr.bf16.mxu0 0
      %1503 = vmatpush1.bf16.msra.mxu0 0
      %1504 = vmatprep.subr.bf16.mxu0 0
      %1505 = vmatpush1.bf16.msra.mxu0 0
      %1506 = vmatprep.subr.bf16.mxu0 0
      %1507 = vmatpush1.bf16.msra.mxu0 0
      %1508 = vmatprep.subr.bf16.mxu0 0
      %1509 = vmatpush1.bf16.msra.mxu0 0
      %1510 = vmatprep.subr.bf16.mxu0 0
      %1511 = vmatpush1.bf16.msra.mxu0 0
      %1512 = vmatprep.subr.bf16.mxu0 0
      %1513 = vmatpush1.bf16.msra.mxu0 0
      %1514 = vmatprep.subr.bf16.mxu0 0
      %1515 = vmatpush1.bf16.msra.mxu0 0
      %1516 = vmatprep.subr.bf16.mxu0 0
      %1517 = vmatpush1.bf16.msra.mxu0 0
      %1518 = vmatprep.subr.bf16.mxu0 0
      %1519 = vmatpush1.bf16.msra.mxu0 0
      %1520 = vmatprep.subr.bf16.mxu0 0
      %1521 = vmatpush1.bf16.msra.mxu0 0
      %1522 = vmatprep.subr.bf16.mxu0 0
      %1523 = vmatpush1.bf16.msra.mxu0 0
      %1524 = vmatprep.subr.bf16.mxu0 0
      %1525 = vmatpush1.bf16.msra.mxu0 0
      %1526 = vmatprep.subr.bf16.mxu0 0
      %1527 = vmatpush1.bf16.msra.mxu0 0
      %1528 = vmatprep.mubr.bf16.mxu0 0
      %1529 = vmatmul.mubr.bf16.gmra.mrb[0].mxu0 %v1485
      %v1530 = vpop.f32.mrb[0].mxu0
      %v1531 = vadd.f32 0.0, %v1530
      %v1532 = vpop.f32.mrb[0].mxu0
      %v1533 = vpop.f32.mrb[0].mxu0
      %v1534 = vpop.f32.mrb[0].mxu0
      %1535 = vmatprep.mubr.bf16.mxu0 0
      %1536 = vmatmul.mubr.bf16.gmra.mrb[0].mxu0 %v1488
      %v1537 = vpop.f32.mrb[0].mxu0
      %v1538 = vadd.f32 0.0, %v1537
      %v1539 = vpop.f32.mrb[0].mxu0
      %v1540 = vpop.f32.mrb[0].mxu0
      %v1541 = vpop.f32.mrb[0].mxu0
      %1542 = vmatprep.mubr.bf16.mxu0 0
      %1543 = vmatmul.mubr.bf16.gmra.mrb[0].mxu0 %v1491
      %v1544 = vpop.f32.mrb[0].mxu0
      %v1545 = vadd.f32 0.0, %v1544
      %v1546 = vpop.f32.mrb[0].mxu0
      %v1547 = vpop.f32.mrb[0].mxu0
      %v1548 = vpop.f32.mrb[0].mxu0
      %1549 = vmatprep.mubr.bf16.mxu0 0
      %1550 = vmatmul.mubr.bf16.gmra.mrb[0].mxu0 %v1494
      %v1551 = vpop.f32.mrb[0].mxu0
      %v1552 = vadd.f32 0.0, %v1551
      %v1553 = vpop.f32.mrb[0].mxu0
      %v1554 = vpop.f32.mrb[0].mxu0
      %v1555 = vpop.f32.mrb[0].mxu0
      %1556 = vdwg.mxu0
      %v1557 = vadd.f32 %v1343, %v1531
      %v1558 = vadd.f32 %v1344, %v1538
      %v1559 = vadd.f32 %v1345, %v1545
      %v1560 = vadd.f32 %v1346, %v1552
      %v1561 = vpack.c.bf16 %v1557, %v1557
      %v1562 = vpack.c.bf16 %v1558, %v1558
      %v1563 = vpack.c.bf16 %v1559, %v1559
      %v1564 = vpack.c.bf16 %v1560, %v1560
      %vm1565 = vcmask 517120
      %1566 = vst.msk [vmem:[%s185] sm:$0x3] %vm1565, %v1561
      %1567 = vst.msk [vmem:[%s185 + $0x2] sm:$0x3] %vm1565, %v1562
      %1568 = vst.msk [vmem:[%s185 + $0x4] sm:$0x3] %vm1565, %v1563
      %1569 = vst.msk [vmem:[%s185 + $0x6] sm:$0x3] %vm1565, %v1564
      %p1570 = scmp.lt.s32.totalorder %s17, 1
      %s1571 = scalar_select %p1570, %s17, 1
      %p1572 = scmp.lt.s32.totalorder %s18, 0
      %s1573 = scalar_select %p1572, %s18, 0
      %s1574 = smul.addr %s1571, 4
      %s1575 = sadd.s32 %s1573, %s1574
      %s1576 = smul.addr %s1575, 2
      %s1577 = scalar_lea.vmem %s2, %s1576
      // Predicated region
      $region29: #{block_forward.7} parent=27 // pred_check
        %p1578 = pneg %p97
      $region30: #{block_forward.7} parent=27 // pred_check_branch
        %1580 = sbr.rel (%p1578) target = $region32
      $region31: #{block_forward.7} parent=27 // pred_region
        _
      $region32: #{block_forward.7} parent=27 // pred_fallthru
        _
    $region28: #{block_forward.7} parent=5 // pred_fallthru
      _
    %p1581 = scmp.le.s32.totalorder 2, %s8
    // Predicated region
    $region33: #{block_forward.7} parent=5 // pred_check
      %p1582 = pneg %p1581
    $region34: #{block_forward.7} parent=5 // pred_check_branch
      %1584 = sbr.rel (%p1582) target = $region36
    $region35: #{block_forward.7} parent=5 // pred_region
      %s1585 = ssub.s32 %s8, 2
      // Predicated region
      $region37: #{block_forward.7} parent=35 // pred_check
        %p1586 = pneg %p103
      $region38: #{block_forward.7} parent=35 // pred_check_branch
        %1588 = sbr.rel (%p1586) target = $region40
      $region39: #{block_forward.7} parent=35 // pred_region
        %p1589 = scmp.lt.s32.totalorder %s19, 1
        %s1590 = scalar_select %p1589, %s19, 1
        %p1591 = scmp.lt.s32.totalorder %s20, 0
        %s1592 = scalar_select %p1591, %s20, 0
        %s1593 = smul.addr %s1590, 4
        %s1594 = sadd.s32 %s1592, %s1593
        %s1595 = smul.addr %s1594, 2
        %s1596 = scalar_lea.vmem %s2, %s1595
      $region40: #{block_forward.7} parent=35 // pred_fallthru
        _
    $region36: #{block_forward.7} parent=5 // pred_fallthru
      _
  $region6: #{block_forward.7} parent=0 // loop_footer
    %s12 = sadd.s32 1, %s8
  $region7: #{block_forward.7} parent=0 // loop_footer_branch
    %7 = sbr.rel target = $region3
  $region8: #{block_forward.7} parent=0 // loop_exit
    _

// kernel: block_forward.9
$region0: #{block_forward.9}
  #allocation0 [shape = 'u32[]', space=smem, size = 0x4, offset = 0x4, fixed_abs, tag = 'smem constant byte address 0x4 - core index']
  #allocation1 [shape = 'u32[144,128]{1,0:T(1,128)}', space=vmem, size = 0x12000, scoped, tag = 'internal scratch']
  %s0 = inlined_call_operand.vmem [shape: bf16[2,6,18,64], index: 0, kind: input, shape index: {}]
  %s1 = inlined_call_operand.vmem [shape: bf16[9,64,64], index: 1, kind: input, shape index: {}]
  %s2 = inlined_call_operand.vmem [shape: f32[2,4,4,64], index: 2, kind: input, shape index: {}]
  %s3 = inlined_call_operand.hbm [shape: f32[2,4,4,64], index: 3, kind: output, shape index: {}]
  %s4 = sld [smem:[#allocation0]]
  $region45: #{block_forward.9} parent=0
    _
  %s6 = ssub.s32 1, %s4
  %s7 = scalar_select 0, %s6, %s4
  $region1: #{block_forward.9} parent=0
    #allocation2 [shape = 'u8[16384]{0}', space=vmem, size = 0x4000, scoped, tag = 'output window, operand 0']
    #allocation3 [shape = 's32[2]{0}', space=sflag, size = 0x8, scoped, tag = 'scoped memory for block_forward.9']
    %8 = vsyncpa [#allocation3], 0
    %s9 = scalar_lea.sflag [#allocation3], 1
    %10 = vsyncpa %s9, 0
    loop: start=0, step=1, limit=4
    $region2: #{block_forward.9} parent=1 // loop_pre_header
      _
    $region3: #{block_forward.9} parent=1 // loop_header
      %s12 = sphi 0, %s16
      %p13 = scmp.ge.s32.totalorder %s12, 4
      %s19 = sphi 0, %s31
      %s20 = sphi 0, %s27
      %s21 = sphi 0, %s19
      %s22 = sphi 0, %s20
      %s23 = sphi 0, %s21
      %s24 = sphi 0, %s22
      %s34 = sphi 0, %s36
      %s37 = sphi 0, %s34
      %s38 = sphi 0, %s37
      %s54 = sphi 0, %s38
      %s60 = sphi 0, %s62
      %s63 = sphi 0, %s60
      %s64 = sphi 0, %s63
      %s80 = sphi 0, %s64
      %s88 = sphi 0, %s90
      %s91 = sphi 0, %s88
      %s92 = sphi 0, %s91
      %s108 = sphi 0, %s92
      %s116 = sphi 0, %s118
      %s119 = sphi 0, %s116
      %s120 = sphi 0, %s119
      %s136 = sphi 0, %s120
    $region4: #{block_forward.9} parent=1 // loop_header_branch
      %15 = sbr.rel (%p13) target = $region8
    $region5: #{block_forward.9} parent=1 // loop_body
      %s17 = ssub.s32 %s12, 1
      %s18 = ssub.s32 %s12, 2
      %s25 = sadd.s32 1, %s20
      %p26 = scmp.ge.s32.totalorder %s25, 1
      %s27 = scalar_select %p26, 0, %s25
      %s28 = sadd.s32 1, %s19
      %s29 = scalar_select %p26, %s28, %s19
      %p30 = scmp.ge.s32.totalorder %s29, 2
      %s31 = scalar_select %p30, 0, %s29
      %s32 = ssub.s32 %s19, %s31
      %p33 = scmp.eq.s32.totalorder %s32, 0
      %s35 = sadd.s32 %s34, 1
      %s36 = scalar_select %p33, %s34, %s35
      %p39 = pneg %p33
      %p40 = scmp.eq.s32.totalorder %s12, 1
      %p41 = por %p39, %p40
      %p42 = scmp.ne.s32.totalorder %s34, %s37
      %p43 = scmp.eq.s32.totalorder %s12, 0
      %p44 = por %p42, %p43
      %p45 = scmp.ne.s32.totalorder %s34, %s37
      %p46 = scmp.eq.s32.totalorder %s17, 1
      %p47 = por %p45, %p46
      %p48 = scmp.ne.s32.totalorder %s37, %s38
      %p49 = scmp.eq.s32.totalorder %s17, 0
      %p50 = por %p48, %p49
      %p51 = scmp.ne.s32.totalorder %s37, %s38
      %p52 = scmp.eq.s32.totalorder %s18, 1
      %p53 = por %p51, %p52
      %p55 = scmp.ne.s32.totalorder %s38, %s54
      %p56 = scmp.eq.s32.totalorder %s18, 0
      %p57 = por %p55, %p56
      %s58 = ssub.s32 %s20, %s27
      %p59 = scmp.eq.s32.totalorder %s58, 0
      %s61 = sadd.s32 %s60, 1
      %s62 = scalar_select %p59, %s60, %s61
      %p65 = pneg %p59
      %p66 = scmp.eq.s32.totalorder %s12, 1
      %p67 = por %p65, %p66
      %p68 = scmp.ne.s32.totalorder %s60, %s63
      %p69 = scmp.eq.s32.totalorder %s12, 0
      %p70 = por %p68, %p69
      %p71 = scmp.ne.s32.totalorder %s60, %s63
      %p72 = scmp.eq.s32.totalorder %s17, 1
      %p73 = por %p71, %p72
      %p74 = scmp.ne.s32.totalorder %s63, %s64
      %p75 = scmp.eq.s32.totalorder %s17, 0
      %p76 = por %p74, %p75
      %p77 = scmp.ne.s32.totalorder %s63, %s64
      %p78 = scmp.eq.s32.totalorder %s18, 1
      %p79 = por %p77, %p78
      %p81 = scmp.ne.s32.totalorder %s64, %s80
      %p82 = scmp.eq.s32.totalorder %s18, 0
      %p83 = por %p81, %p82
      %s84 = ssub.s32 %s19, %s31
      %s85 = ssub.s32 %s20, %s27
      %s86 = sor.u32 %s84, %s85
      %p87 = scmp.eq.s32.totalorder %s86, 0
      %s89 = sadd.s32 %s88, 1
      %s90 = scalar_select %p87, %s88, %s89
      %p93 = pneg %p87
      %p94 = scmp.eq.s32.totalorder %s12, 1
      %p95 = por %p93, %p94
      %p96 = scmp.ne.s32.totalorder %s88, %s91
      %p97 = scmp.eq.s32.totalorder %s12, 0
      %p98 = por %p96, %p97
      %p99 = scmp.ne.s32.totalorder %s88, %s91
      %p100 = scmp.eq.s32.totalorder %s17, 1
      %p101 = por %p99, %p100
      %p102 = scmp.ne.s32.totalorder %s91, %s92
      %p103 = scmp.eq.s32.totalorder %s17, 0
      %p104 = por %p102, %p103
      %p105 = scmp.ne.s32.totalorder %s91, %s92
      %p106 = scmp.eq.s32.totalorder %s18, 1
      %p107 = por %p105, %p106
      %p109 = scmp.ne.s32.totalorder %s92, %s108
      %p110 = scmp.eq.s32.totalorder %s18, 0
      %p111 = por %p109, %p110
      %s112 = ssub.s32 %s19, %s31
      %s113 = ssub.s32 %s20, %s27
      %s114 = sor.u32 %s112, %s113
      %p115 = scmp.eq.s32.totalorder %s114, 0
      %s117 = sadd.s32 %s116, 1
      %s118 = scalar_select %p115, %s116, %s117
      %p121 = pneg %p115
      %p122 = scmp.eq.s32.totalorder %s12, 1
      %p123 = por %p121, %p122
      %p124 = scmp.ne.s32.totalorder %s116, %s119
      %p125 = scmp.eq.s32.totalorder %s12, 0
      %p126 = por %p124, %p125
      %p127 = scmp.ne.s32.totalorder %s116, %s119
      %p128 = scmp.eq.s32.totalorder %s17, 1
      %p129 = por %p127, %p128
      %p130 = scmp.ne.s32.totalorder %s119, %s120
      %p131 = scmp.eq.s32.totalorder %s17, 0
      %p132 = por %p130, %p131
      %p133 = scmp.ne.s32.totalorder %s119, %s120
      %p134 = scmp.eq.s32.totalorder %s18, 1
      %p135 = por %p133, %p134
      %p137 = scmp.ne.s32.totalorder %s120, %s136
      %p138 = scmp.eq.s32.totalorder %s18, 0
      %p139 = por %p137, %p138
      %p140 = scmp.le.s32.totalorder 1, %s12
      %p141 = scmp.lt.s32.totalorder %s12, 3
      %p142 = pnand %p140, %p141
      %p143 = pneg %p142
      // Predicated region
      $region9: #{block_forward.9} parent=5 // pred_check
        _
      $region10: #{block_forward.9} parent=5 // pred_check_branch
        %145 = sbr.rel (%p142) target = $region12
      $region11: #{block_forward.9} parent=5 // pred_region
        %s146 = ssub.s32 %s12, 1
        // Predicated region
        $region13: #{block_forward.9} parent=11 // pred_check
          %p147 = pneg %p76
        $region14: #{block_forward.9} parent=11 // pred_check_branch
          %149 = sbr.rel (%p147) target = $region16
        $region15: #{block_forward.9} parent=11 // pred_region
          %p150 = scmp.lt.s32.totalorder %s22, 0
          %s151 = scalar_select %p150, %s22, 0
          %s152 = smul.addr %s151, 4
          %s153 = scalar_lea.vmem %s1, %s152
        $region16: #{block_forward.9} parent=11 // pred_fallthru
          _
      $region12: #{block_forward.9} parent=5 // pred_fallthru
        _
      %p154 = scmp.lt.s32.totalorder %s12, 2
      // Predicated region
      $region17: #{block_forward.9} parent=5 // pred_check
        %p155 = pneg %p154
      $region18: #{block_forward.9} parent=5 // pred_check_branch
        %157 = sbr.rel (%p155) target = $region20
      $region19: #{block_forward.9} parent=5 // pred_region
        // Predicated region
        $region21: #{block_forward.9} parent=19 // pred_check
          %p158 = pneg %p44
        $region22: #{block_forward.9} parent=19 // pred_check_branch
          %160 = sbr.rel (%p158) target = $region24
        $region23: #{block_forward.9} parent=19 // pred_region
          %p161 = scmp.lt.s32.totalorder %s19, 1
          %s162 = scalar_select %p161, %s19, 1
          %s163 = smul.addr %s162, 18
          %s164 = smul.addr %s163, 4
          %s165 = scalar_lea.vmem %s0, %s164
        $region24: #{block_forward.9} parent=19 // pred_fallthru
          _
        // Predicated region
        $region25: #{block_forward.9} parent=19 // pred_check
          %p166 = pneg %p98
        $region26: #{block_forward.9} parent=19 // pred_check_branch
          %168 = sbr.rel (%p166) target = $region28
        $region27: #{block_forward.9} parent=19 // pred_region
          %p169 = scmp.lt.s32.totalorder %s19, 1
          %s170 = scalar_select %p169, %s19, 1
          %p171 = scmp.lt.s32.totalorder %s20, 0
          %s172 = scalar_select %p171, %s20, 0
          %s173 = smul.addr %s170, 4
          %s174 = sadd.s32 %s172, %s173
          %s175 = smul.addr %s174, 4
          %s176 = scalar_lea.vmem %s2, %s175
        $region28: #{block_forward.9} parent=19 // pred_fallthru
          _
      $region20: #{block_forward.9} parent=5 // pred_fallthru
        _
      %p177 = scmp.le.s32.totalorder 1, %s12
      %p178 = scmp.lt.s32.totalorder %s12, 3
      %p179 = pnand %p177, %p178
      %p180 = pneg %p179
      // Predicated region
      $region29: #{block_forward.9} parent=5 // pred_check
        _
      $region30: #{block_forward.9} parent=5 // pred_check_branch
        %182 = sbr.rel (%p179) target = $region32
      $region31: #{block_forward.9} parent=5 // pred_region
        %s183 = ssub.s32 %s12, 1
        %p184 = scmp.lt.s32.totalorder %s21, 1
        %s185 = scalar_select %p184, %s21, 1
        %s186 = smul.addr %s185, 18
        %s187 = smul.addr %s186, 4
        %s188 = scalar_lea.vmem %s0, %s187
        %p189 = pneg %p50
        %p190 = pneg %p47
        %p191 = scmp.lt.s32.totalorder %s22, 0
        %s192 = scalar_select %p191, %s22, 0
        %s193 = smul.addr %s192, 4
        %s194 = scalar_lea.vmem %s1, %s193
        %p195 = pneg %p76
        %p196 = pneg %p73
        %p197 = scmp.lt.s32.totalorder %s21, 1
        %s198 = scalar_select %p197, %s21, 1
        %p199 = scmp.lt.s32.totalorder %s22, 0
        %s200 = scalar_select %p199, %s22, 0
        %s201 = smul.addr %s198, 4
        %s202 = sadd.s32 %s200, %s201
        %s203 = smul.addr %s202, 4
        %s204 = scalar_lea.vmem %s2, %s203
        %p205 = pneg %p104
        %p206 = pneg %p101
        %p207 = pneg %p132
        %p208 = pneg %p129
        %s209 = sand.u32 %s119, 1
        %s210 = scalar_lea.sflag [#allocation3], %s209
        %s211 = sand.u32 %s119, 1
        %s212 = smul.addr %s211, 16
        %s213 = scalar_lea.vmem [#allocation2], %s212
        %p214 = scmp.lt.s32.totalorder %s21, 1
        %s215 = scalar_select %p214, %s21, 1
        %s216 = smul.addr %s215, 18
        %s217 = smul.addr %s216, 4
        %s218 = scalar_lea.vmem %s0, %s217
        %p219 = scmp.lt.s32.totalorder %s22, 0
        %s220 = scalar_select %p219, %s22, 0
        %s221 = smul.addr %s220, 4
        %s222 = scalar_lea.vmem %s1, %s221
        %p223 = scmp.lt.s32.totalorder %s21, 1
        %s224 = scalar_select %p223, %s21, 1
        %p225 = scmp.lt.s32.totalorder %s22, 0
        %s226 = scalar_select %p225, %s22, 0
        %s227 = smul.addr %s224, 4
        %s228 = sadd.s32 %s226, %s227
        %s229 = smul.addr %s228, 4
        %s230 = scalar_lea.vmem %s2, %s229
        %v232 = vld [vmem:[%s218] sm:$0xf]
        %v233 = vld [vmem:[%s218 + $0x4] sm:$0xf]
        %v234 = vld [vmem:[%s218 + $0xc] sm:$0xf]
        %v235 = vld [vmem:[%s218 + $0x10] sm:$0xf]
        %v236 = vld [vmem:[%s218 + $0x18] sm:$0xf]
        %v237 = vld [vmem:[%s218 + $0x1c] sm:$0xf]
        %v238 = vld [vmem:[%s218 + $0x24] sm:$0xf]
        %v239 = vld [vmem:[%s218 + $0x28] sm:$0xf]
        %v240 = vld [vmem:[%s222] sm:$0xf]
        %v241 = vld [vmem:[%s222 + $0x4] sm:$0xf]
        %v242 = vld [vmem:[%s222 + $0x8] sm:$0xf]
        %v243 = vld [vmem:[%s222 + $0xc] sm:$0xf]
        %v244 = vld [vmem:[%s222 + $0x10] sm:$0xf]
        %v245 = vld [vmem:[%s222 + $0x14] sm:$0xf]
        %v246 = vld [vmem:[%s222 + $0x18] sm:$0xf]
        %v247 = vld [vmem:[%s222 + $0x1c] sm:$0xf]
        %v248 = vld [vmem:[%s218 + $0x8] sm:$0x1]
        %v249 = vld [vmem:[%s218 + $0x14] sm:$0x1]
        %v250 = vld [vmem:[%s218 + $0x20] sm:$0x1]
        %v251 = vld [vmem:[%s218 + $0x2c] sm:$0x1]
        %vm252 = vsmask.f32 3328
        %vm253 = vsmask.f32 7440
        %vm254 = vmor %vm252, %vm253
        %v256 = vshrl.u32 %v232, 16
        %v258 = vrot.slane %v256, 4
        %v259 = vshll.u32 %v232, 16
        %v261 = vrot.slane %v259, 5
        %v262 = vor.u32 %v258, %v261
        %v263 = vrot.slane %v262, 4
        %v265 = vshll.u32 %v233, 16
        %v267 = vrot.slane %v265, 5
        %v268 = vsel %vm254, %v263, %v267
        %v269 = vshrl.u32 %v233, 16
        %v271 = vrot.slane %v269, 4
        %v272 = vor.u32 %v271, %v267
        %v273 = vrot.slane %v272, 4
        %v275 = vshll.u32 %v248, 16
        %v277 = vrot.slane %v275, 5
        %v278 = vsel %vm254, %v273, %v277
        %v280 = vshrl.u32 %v234, 16
        %v282 = vrot.slane %v280, 4
        %v283 = vshll.u32 %v234, 16
        %v285 = vrot.slane %v283, 5
        %v286 = vor.u32 %v282, %v285
        %v287 = vrot.slane %v286, 4
        %v289 = vshll.u32 %v235, 16
        %v291 = vrot.slane %v289, 5
        %v292 = vsel %vm254, %v287, %v291
        %v293 = vshrl.u32 %v235, 16
        %v295 = vrot.slane %v293, 4
        %v296 = vor.u32 %v295, %v291
        %v297 = vrot.slane %v296, 4
        %v299 = vshll.u32 %v249, 16
        %v301 = vrot.slane %v299, 5
        %v302 = vsel %vm254, %v297, %v301
        %v304 = vshrl.u32 %v236, 16
        %v306 = vrot.slane %v304, 4
        %v307 = vshll.u32 %v236, 16
        %v309 = vrot.slane %v307, 5
        %v310 = vor.u32 %v306, %v309
        %v311 = vrot.slane %v310, 4
        %v313 = vshll.u32 %v237, 16
        %v315 = vrot.slane %v313, 5
        %v316 = vsel %vm254, %v311, %v315
        %v317 = vshrl.u32 %v237, 16
        %v319 = vrot.slane %v317, 4
        %v320 = vor.u32 %v319, %v315
        %v321 = vrot.slane %v320, 4
        %v323 = vshll.u32 %v250, 16
        %v325 = vrot.slane %v323, 5
        %v326 = vsel %vm254, %v321, %v325
        %v328 = vshrl.u32 %v238, 16
        %v330 = vrot.slane %v328, 4
        %v331 = vshll.u32 %v238, 16
        %v333 = vrot.slane %v331, 5
        %v334 = vor.u32 %v330, %v333
        %v335 = vrot.slane %v334, 4
        %v337 = vshll.u32 %v239, 16
        %v339 = vrot.slane %v337, 5
        %v340 = vsel %vm254, %v335, %v339
        %v341 = vshrl.u32 %v239, 16
        %v343 = vrot.slane %v341, 4
        %v344 = vor.u32 %v343, %v339
        %v345 = vrot.slane %v344, 4
        %v347 = vshll.u32 %v251, 16
        %v349 = vrot.slane %v347, 5
        %v350 = vsel %vm254, %v345, %v349
        %s351 = scalar_lea.vmem %s222, 32
        %v352 = vld [vmem:[%s351] sm:$0xf]
        %v353 = vld [vmem:[%s351 + $0x4] sm:$0xf]
        %v354 = vld [vmem:[%s351 + $0x8] sm:$0xf]
        %v355 = vld [vmem:[%s351 + $0xc] sm:$0xf]
        %v356 = vld [vmem:[%s351 + $0x10] sm:$0xf]
        %v357 = vld [vmem:[%s351 + $0x14] sm:$0xf]
        %v358 = vld [vmem:[%s351 + $0x18] sm:$0xf]
        %v359 = vld [vmem:[%s351 + $0x1c] sm:$0xf]
        %v360 = vunpack.c.l.b16 %v268
        %v361 = vunpack.c.l.b16 %v278
        %v362 = vunpack.c.l.b16 %v292
        %v363 = vunpack.c.l.b16 %v302
        %v364 = vunpack.c.l.b16 %v316
        %v365 = vunpack.c.l.b16 %v326
        %v366 = vunpack.c.l.b16 %v340
        %v367 = vunpack.c.l.b16 %v350
        %v368 = vpack.c.b16 %v361, %v360
        %v369 = vpack.c.b16 %v363, %v362
        %v370 = vpack.c.b16 %v365, %v364
        %v371 = vpack.c.b16 %v367, %v366
        %v380 = vunpack.c.l.b16 %v352
        %v381 = vunpack.c.l.b16 %v353
        %v382 = vunpack.c.l.b16 %v354
        %v383 = vunpack.c.l.b16 %v355
        %v384 = vunpack.c.l.b16 %v356
        %v385 = vunpack.c.l.b16 %v357
        %v386 = vunpack.c.l.b16 %v358
        %v387 = vunpack.c.l.b16 %v359
        %v388 = vpack.c.b16 %v381, %v380
        %v389 = vpack.c.b16 %v383, %v382
        %v390 = vpack.c.b16 %v385, %v384
        %v391 = vpack.c.b16 %v387, %v386
        %vm396 = vcmask 523264
        %v398 = vsel %vm396, %v368, 0
        %v401 = vsel %vm396, %v369, 0
        %v404 = vsel %vm396, %v370, 0
        %v407 = vsel %vm396, %v371, 0
        %409 = vmatprep.subr.bf16.mxu0 0
        %410 = vmatpush1.bf16.msra.mxu0 %v388
        %411 = vmatprep.subr.bf16.mxu0 0
        %412 = vmatpush1.bf16.msra.mxu0 %v389
        %413 = vmatprep.subr.bf16.mxu0 0
        %414 = vmatpush1.bf16.msra.mxu0 %v390
        %415 = vmatprep.subr.bf16.mxu0 0
        %416 = vmatpush1.bf16.msra.mxu0 %v391
        %417 = vmatprep.subr.bf16.mxu0 0
        %418 = vmatpush1.bf16.msra.mxu0 0
        %419 = vmatprep.subr.bf16.mxu0 0
        %420 = vmatpush1.bf16.msra.mxu0 0
        %421 = vmatprep.subr.bf16.mxu0 0
        %422 = vmatpush1.bf16.msra.mxu0 0
        %423 = vmatprep.subr.bf16.mxu0 0
        %424 = vmatpush1.bf16.msra.mxu0 0
        %425 = vmatprep.subr.bf16.mxu0 0
        %426 = vmatpush1.bf16.msra.mxu0 0
        %427 = vmatprep.subr.bf16.mxu0 0
        %428 = vmatpush1.bf16.msra.mxu0 0
        %429 = vmatprep.subr.bf16.mxu0 0
        %430 = vmatpush1.bf16.msra.mxu0 0
        %431 = vmatprep.subr.bf16.mxu0 0
        %432 = vmatpush1.bf16.msra.mxu0 0
        %433 = vmatprep.subr.bf16.mxu0 0
        %434 = vmatpush1.bf16.msra.mxu0 0
        %435 = vmatprep.subr.bf16.mxu0 0
        %436 = vmatpush1.bf16.msra.mxu0 0
        %437 = vmatprep.subr.bf16.mxu0 0
        %438 = vmatpush1.bf16.msra.mxu0 0
        %439 = vmatprep.subr.bf16.mxu0 0
        %440 = vmatpush1.bf16.msra.mxu0 0
        %441 = vmatprep.mubr.bf16.mxu0 0
        %442 = vmatmul.mubr.bf16.gmra.mrb[0].mxu0 %v398
        %v443 = vpop.f32.mrb[0].mxu0
        %v444 = vadd.f32 0.0, %v443
        %v445 = vpop.f32.mrb[0].mxu0
        %v446 = vpop.f32.mrb[0].mxu0
        %v447 = vpop.f32.mrb[0].mxu0
        %448 = vmatprep.mubr.bf16.mxu0 0
        %449 = vmatmul.mubr.bf16.gmra.mrb[0].mxu0 %v401
        %v450 = vpop.f32.mrb[0].mxu0
        %v451 = vadd.f32 0.0, %v450
        %v452 = vpop.f32.mrb[0].mxu0
        %v453 = vpop.f32.mrb[0].mxu0
        %v454 = vpop.f32.mrb[0].mxu0
        %455 = vmatprep.mubr.bf16.mxu0 0
        %456 = vmatmul.mubr.bf16.gmra.mrb[0].mxu0 %v404
        %v457 = vpop.f32.mrb[0].mxu0
        %v458 = vadd.f32 0.0, %v457
        %v459 = vpop.f32.mrb[0].mxu0
        %v460 = vpop.f32.mrb[0].mxu0
        %v461 = vpop.f32.mrb[0].mxu0
        %462 = vmatprep.mubr.bf16.mxu0 0
        %463 = vmatmul.mubr.bf16.gmra.mrb[0].mxu0 %v407
        %v464 = vpop.f32.mrb[0].mxu0
        %v465 = vadd.f32 0.0, %v464
        %v466 = vpop.f32.mrb[0].mxu0
        %v467 = vpop.f32.mrb[0].mxu0
        %v468 = vpop.f32.mrb[0].mxu0
        %469 = vdwg.mxu0
        %v478 = vunpack.c.l.b16 %v232
        %v479 = vunpack.c.l.b16 %v233
        %v480 = vunpack.c.l.b16 %v234
        %v481 = vunpack.c.l.b16 %v235
        %v482 = vunpack.c.l.b16 %v236
        %v483 = vunpack.c.l.b16 %v237
        %v484 = vunpack.c.l.b16 %v238
        %v485 = vunpack.c.l.b16 %v239
        %v486 = vpack.c.b16 %v479, %v478
        %v487 = vpack.c.b16 %v481, %v480
        %v488 = vpack.c.b16 %v483, %v482
        %v489 = vpack.c.b16 %v485, %v484
        %v498 = vunpack.c.l.b16 %v240
        %v499 = vunpack.c.l.b16 %v241
        %v500 = vunpack.c.l.b16 %v242
        %v501 = vunpack.c.l.b16 %v243
        %v502 = vunpack.c.l.b16 %v244
        %v503 = vunpack.c.l.b16 %v245
        %v504 = vunpack.c.l.b16 %v246
        %v505 = vunpack.c.l.b16 %v247
        %v506 = vpack.c.b16 %v499, %v498
        %v507 = vpack.c.b16 %v501, %v500
        %v508 = vpack.c.b16 %v503, %v502
        %v509 = vpack.c.b16 %v505, %v504
        %v515 = vsel %vm396, %v486, 0
        %v518 = vsel %vm396, %v487, 0
        %v521 = vsel %vm396, %v488, 0
        %v524 = vsel %vm396, %v489, 0
        %526 = vmatprep.subr.bf16.mxu0 0
        %527 = vmatpush1.bf16.msra.mxu0 %v506
        %528 = vmatprep.subr.bf16.mxu0 0
        %529 = vmatpush1.bf16.msra.mxu0 %v507
        %530 = vmatprep.subr.bf16.mxu0 0
        %531 = vmatpush1.bf16.msra.mxu0 %v508
        %532 = vmatprep.subr.bf16.mxu0 0
        %533 = vmatpush1.bf16.msra.mxu0 %v509
        %534 = vmatprep.subr.bf16.mxu0 0
        %535 = vmatpush1.bf16.msra.mxu0 0
        %536 = vmatprep.subr.bf16.mxu0 0
        %537 = vmatpush1.bf16.msra.mxu0 0
        %538 = vmatprep.subr.bf16.mxu0 0
        %539 = vmatpush1.bf16.msra.mxu0 0
        %540 = vmatprep.subr.bf16.mxu0 0
        %541 = vmatpush1.bf16.msra.mxu0 0
        %542 = vmatprep.subr.bf16.mxu0 0
        %543 = vmatpush1.bf16.msra.mxu0 0
        %544 = vmatprep.subr.bf16.mxu0 0
        %545 = vmatpush1.bf16.msra.mxu0 0
        %546 = vmatprep.subr.bf16.mxu0 0
        %547 = vmatpush1.bf16.msra.mxu0 0
        %548 = vmatprep.subr.bf16.mxu0 0
        %549 = vmatpush1.bf16.msra.mxu0 0
        %550 = vmatprep.subr.bf16.mxu0 0
        %551 = vmatpush1.bf16.msra.mxu0 0
        %552 = vmatprep.subr.bf16.mxu0 0
        %553 = vmatpush1.bf16.msra.mxu0 0
        %554 = vmatprep.subr.bf16.mxu0 0
        %555 = vmatpush1.bf16.msra.mxu0 0
        %556 = vmatprep.subr.bf16.mxu0 0
        %557 = vmatpush1.bf16.msra.mxu0 0
        %558 = vmatprep.mubr.bf16.mxu0 0
        %559 = vmatmul.mubr.bf16.gmra.mrb[0].mxu0 %v515
        %v560 = vpop.f32.mrb[0].mxu0
        %v561 = vadd.f32 %v444, %v560
        %v562 = vpop.f32.mrb[0].mxu0
        %v563 = vpop.f32.mrb[0].mxu0
        %v564 = vpop.f32.mrb[0].mxu0
        %565 = vmatprep.mubr.bf16.mxu0 0
        %566 = vmatmul.mubr.bf16.gmra.mrb[0].mxu0 %v518
        %v567 = vpop.f32.mrb[0].mxu0
        %v568 = vadd.f32 %v451, %v567
        %v569 = vpop.f32.mrb[0].mxu0
        %v570 = vpop.f32.mrb[0].mxu0
        %v571 = vpop.f32.mrb[0].mxu0
        %572 = vmatprep.mubr.bf16.mxu0 0
        %573 = vmatmul.mubr.bf16.gmra.mrb[0].mxu0 %v521
        %v574 = vpop.f32.mrb[0].mxu0
        %v575 = vadd.f32 %v458, %v574
        %v576 = vpop.f32.mrb[0].mxu0
        %v577 = vpop.f32.mrb[0].mxu0
        %v578 = vpop.f32.mrb[0].mxu0
        %579 = vmatprep.mubr.bf16.mxu0 0
        %580 = vmatmul.mubr.bf16.gmra.mrb[0].mxu0 %v524
        %v581 = vpop.f32.mrb[0].mxu0
        %v582 = vadd.f32 %v465, %v581
        %v583 = vpop.f32.mrb[0].mxu0
        %v584 = vpop.f32.mrb[0].mxu0
        %v585 = vpop.f32.mrb[0].mxu0
        %586 = vdwg.mxu0
        %v587 = vld [vmem:[%s218] sm:$0xe]
        %v588 = vld [vmem:[%s218 + $0xc] sm:$0xe]
        %v589 = vld [vmem:[%s218 + $0x18] sm:$0xe]
        %v590 = vld [vmem:[%s218 + $0x24] sm:$0xe]
        %vm599 = vcmask 1042432
        %vm600 = vcmask 1046532
        %vm601 = vmor %vm599, %vm600
        %v602 = vrot.slane %v587, 5
        %v603 = vrot.slane %v602, 4
        %v604 = vrot.slane %v233, 5
        %v605 = vsel %vm601, %v603, %v604
        %v606 = vrot.slane %v604, 4
        %v607 = vrot.slane %v248, 5
        %v608 = vsel %vm601, %v606, %v607
        %v609 = vrot.slane %v588, 5
        %v610 = vrot.slane %v609, 4
        %v611 = vrot.slane %v235, 5
        %v612 = vsel %vm601, %v610, %v611
        %v613 = vrot.slane %v611, 4
        %v614 = vrot.slane %v249, 5
        %v615 = vsel %vm601, %v613, %v614
        %v616 = vrot.slane %v589, 5
        %v617 = vrot.slane %v616, 4
        %v618 = vrot.slane %v237, 5
        %v619 = vsel %vm601, %v617, %v618
        %v620 = vrot.slane %v618, 4
        %v621 = vrot.slane %v250, 5
        %v622 = vsel %vm601, %v620, %v621
        %v623 = vrot.slane %v590, 5
        %v624 = vrot.slane %v623, 4
        %v625 = vrot.slane %v239, 5
        %v626 = vsel %vm601, %v624, %v625
        %v627 = vrot.slane %v625, 4
        %v628 = vrot.slane %v251, 5
        %v629 = vsel %vm601, %v627, %v628
        %s630 = scalar_lea.vmem %s222, 64
        %v631 = vld [vmem:[%s630] sm:$0xf]
        %v632 = vld [vmem:[%s630 + $0x4] sm:$0xf]
        %v633 = vld [vmem:[%s630 + $0x8] sm:$0xf]
        %v634 = vld [vmem:[%s630 + $0xc] sm:$0xf]
        %v635 = vld [vmem:[%s630 + $0x10] sm:$0xf]
        %v636 = vld [vmem:[%s630 + $0x14] sm:$0xf]
        %v637 = vld [vmem:[%s630 + $0x18] sm:$0xf]
        %v638 = vld [vmem:[%s630 + $0x1c] sm:$0xf]
        %v639 = vunpack.c.l.b16 %v605
        %v640 = vunpack.c.l.b16 %v608
        %v641 = vunpack.c.l.b16 %v612
        %v642 = vunpack.c.l.b16 %v615
        %v643 = vunpack.c.l.b16 %v619
        %v644 = vunpack.c.l.b16 %v622
        %v645 = vunpack.c.l.b16 %v626
        %v646 = vunpack.c.l.b16 %v629
        %v647 = vpack.c.b16 %v640, %v639
        %v648 = vpack.c.b16 %v642, %v641
        %v649 = vpack.c.b16 %v644, %v643
        %v650 = vpack.c.b16 %v646, %v645
        %v659 = vunpack.c.l.b16 %v631
        %v660 = vunpack.c.l.b16 %v632
        %v661 = vunpack.c.l.b16 %v633
        %v662 = vunpack.c.l.b16 %v634
        %v663 = vunpack.c.l.b16 %v635
        %v664 = vunpack.c.l.b16 %v636
        %v665 = vunpack.c.l.b16 %v637
        %v666 = vunpack.c.l.b16 %v638
        %v667 = vpack.c.b16 %v660, %v659
        %v668 = vpack.c.b16 %v662, %v661
        %v669 = vpack.c.b16 %v664, %v663
        %v670 = vpack.c.b16 %v666, %v665
        %v676 = vsel %vm396, %v647, 0
        %v679 = vsel %vm396, %v648, 0
        %v682 = vsel %vm396, %v649, 0
        %v685 = vsel %vm396, %v650, 0
        %687 = vmatprep.subr.bf16.mxu0 0
        %688 = vmatpush1.bf16.msra.mxu0 %v667
        %689 = vmatprep.subr.bf16.mxu0 0
        %690 = vmatpush1.bf16.msra.mxu0 %v668
        %691 = vmatprep.subr.bf16.mxu0 0
        %692 = vmatpush1.bf16.msra.mxu0 %v669
        %693 = vmatprep.subr.bf16.mxu0 0
        %694 = vmatpush1.bf16.msra.mxu0 %v670
        %695 = vmatprep.subr.bf16.mxu0 0
        %696 = vmatpush1.bf16.msra.mxu0 0
        %697 = vmatprep.subr.bf16.mxu0 0
        %698 = vmatpush1.bf16.msra.mxu0 0
        %699 = vmatprep.subr.bf16.mxu0 0
        %700 = vmatpush1.bf16.msra.mxu0 0
        %701 = vmatprep.subr.bf16.mxu0 0
        %702 = vmatpush1.bf16.msra.mxu0 0
        %703 = vmatprep.subr.bf16.mxu0 0
        %704 = vmatpush1.bf16.msra.mxu0 0
        %705 = vmatprep.subr.bf16.mxu0 0
        %706 = vmatpush1.bf16.msra.mxu0 0
        %707 = vmatprep.subr.bf16.mxu0 0
        %708 = vmatpush1.bf16.msra.mxu0 0
        %709 = vmatprep.subr.bf16.mxu0 0
        %710 = vmatpush1.bf16.msra.mxu0 0
        %711 = vmatprep.subr.bf16.mxu0 0
        %712 = vmatpush1.bf16.msra.mxu0 0
        %713 = vmatprep.subr.bf16.mxu0 0
        %714 = vmatpush1.bf16.msra.mxu0 0
        %715 = vmatprep.subr.bf16.mxu0 0
        %716 = vmatpush1.bf16.msra.mxu0 0
        %717 = vmatprep.subr.bf16.mxu0 0
        %718 = vmatpush1.bf16.msra.mxu0 0
        %719 = vmatprep.mubr.bf16.mxu0 0
        %720 = vmatmul.mubr.bf16.gmra.mrb[0].mxu0 %v676
        %v721 = vpop.f32.mrb[0].mxu0
        %v722 = vadd.f32 0.0, %v721
        %v723 = vpop.f32.mrb[0].mxu0
        %v724 = vpop.f32.mrb[0].mxu0
        %v725 = vpop.f32.mrb[0].mxu0
        %726 = vmatprep.mubr.bf16.mxu0 0
        %727 = vmatmul.mubr.bf16.gmra.mrb[0].mxu0 %v679
        %v728 = vpop.f32.mrb[0].mxu0
        %v729 = vadd.f32 0.0, %v728
        %v730 = vpop.f32.mrb[0].mxu0
        %v731 = vpop.f32.mrb[0].mxu0
        %v732 = vpop.f32.mrb[0].mxu0
        %733 = vmatprep.mubr.bf16.mxu0 0
        %734 = vmatmul.mubr.bf16.gmra.mrb[0].mxu0 %v682
        %v735 = vpop.f32.mrb[0].mxu0
        %v736 = vadd.f32 0.0, %v735
        %v737 = vpop.f32.mrb[0].mxu0
        %v738 = vpop.f32.mrb[0].mxu0
        %v739 = vpop.f32.mrb[0].mxu0
        %740 = vmatprep.mubr.bf16.mxu0 0
        %741 = vmatmul.mubr.bf16.gmra.mrb[0].mxu0 %v685
        %v742 = vpop.f32.mrb[0].mxu0
        %v743 = vadd.f32 0.0, %v742
        %v744 = vpop.f32.mrb[0].mxu0
        %v745 = vpop.f32.mrb[0].mxu0
        %v746 = vpop.f32.mrb[0].mxu0
        %747 = vdwg.mxu0
        %v748 = vadd.f32 %v561, %v722
        %v749 = vadd.f32 %v568, %v729
        %v750 = vadd.f32 %v575, %v736
        %v751 = vadd.f32 %v582, %v743
        %s752 = scalar_lea.vmem %s218, 12
        %v753 = vld [vmem:[%s752] sm:$0xf]
        %v754 = vld [vmem:[%s752 + $0x4] sm:$0xf]
        %v755 = vld [vmem:[%s752 + $0xc] sm:$0xf]
        %v756 = vld [vmem:[%s752 + $0x10] sm:$0xf]
        %v757 = vld [vmem:[%s752 + $0x18] sm:$0xf]
        %v758 = vld [vmem:[%s752 + $0x1c] sm:$0xf]
        %v759 = vld [vmem:[%s752 + $0x24] sm:$0xf]
        %v760 = vld [vmem:[%s752 + $0x28] sm:$0xf]
        %s761 = scalar_lea.vmem %s222, 96
        %v762 = vld [vmem:[%s761] sm:$0xf]
        %v763 = vld [vmem:[%s761 + $0x4] sm:$0xf]
        %v764 = vld [vmem:[%s761 + $0x8] sm:$0xf]
        %v765 = vld [vmem:[%s761 + $0xc] sm:$0xf]
        %v766 = vld [vmem:[%s761 + $0x10] sm:$0xf]
        %v767 = vld [vmem:[%s761 + $0x14] sm:$0xf]
        %v768 = vld [vmem:[%s761 + $0x18] sm:$0xf]
        %v769 = vld [vmem:[%s761 + $0x1c] sm:$0xf]
        %v778 = vunpack.c.l.b16 %v753
        %v779 = vunpack.c.l.b16 %v754
        %v780 = vunpack.c.l.b16 %v755
        %v781 = vunpack.c.l.b16 %v756
        %v782 = vunpack.c.l.b16 %v757
        %v783 = vunpack.c.l.b16 %v758
        %v784 = vunpack.c.l.b16 %v759
        %v785 = vunpack.c.l.b16 %v760
        %v786 = vpack.c.b16 %v779, %v778
        %v787 = vpack.c.b16 %v781, %v780
        %v788 = vpack.c.b16 %v783, %v782
        %v789 = vpack.c.b16 %v785, %v784
        %v798 = vunpack.c.l.b16 %v762
        %v799 = vunpack.c.l.b16 %v763
        %v800 = vunpack.c.l.b16 %v764
        %v801 = vunpack.c.l.b16 %v765
        %v802 = vunpack.c.l.b16 %v766
        %v803 = vunpack.c.l.b16 %v767
        %v804 = vunpack.c.l.b16 %v768
        %v805 = vunpack.c.l.b16 %v769
        %v806 = vpack.c.b16 %v799, %v798
        %v807 = vpack.c.b16 %v801, %v800
        %v808 = vpack.c.b16 %v803, %v802
        %v809 = vpack.c.b16 %v805, %v804
        %v815 = vsel %vm396, %v786, 0
        %v818 = vsel %vm396, %v787, 0
        %v821 = vsel %vm396, %v788, 0
        %v824 = vsel %vm396, %v789, 0
        %826 = vmatprep.subr.bf16.mxu0 0
        %827 = vmatpush1.bf16.msra.mxu0 %v806
        %828 = vmatprep.subr.bf16.mxu0 0
        %829 = vmatpush1.bf16.msra.mxu0 %v807
        %830 = vmatprep.subr.bf16.mxu0 0
        %831 = vmatpush1.bf16.msra.mxu0 %v808
        %832 = vmatprep.subr.bf16.mxu0 0
        %833 = vmatpush1.bf16.msra.mxu0 %v809
        %834 = vmatprep.subr.bf16.mxu0 0
        %835 = vmatpush1.bf16.msra.mxu0 0
        %836 = vmatprep.subr.bf16.mxu0 0
        %837 = vmatpush1.bf16.msra.mxu0 0
        %838 = vmatprep.subr.bf16.mxu0 0
        %839 = vmatpush1.bf16.msra.mxu0 0
        %840 = vmatprep.subr.bf16.mxu0 0
        %841 = vmatpush1.bf16.msra.mxu0 0
        %842 = vmatprep.subr.bf16.mxu0 0
        %843 = vmatpush1.bf16.msra.mxu0 0
        %844 = vmatprep.subr.bf16.mxu0 0
        %845 = vmatpush1.bf16.msra.mxu0 0
        %846 = vmatprep.subr.bf16.mxu0 0
        %847 = vmatpush1.bf16.msra.mxu0 0
        %848 = vmatprep.subr.bf16.mxu0 0
        %849 = vmatpush1.bf16.msra.mxu0 0
        %850 = vmatprep.subr.bf16.mxu0 0
        %851 = vmatpush1.bf16.msra.mxu0 0
        %852 = vmatprep.subr.bf16.mxu0 0
        %853 = vmatpush1.bf16.msra.mxu0 0
        %854 = vmatprep.subr.bf16.mxu0 0
        %855 = vmatpush1.bf16.msra.mxu0 0
        %856 = vmatprep.subr.bf16.mxu0 0
        %857 = vmatpush1.bf16.msra.mxu0 0
        %858 = vmatprep.mubr.bf16.mxu0 0
        %859 = vmatmul.mubr.bf16.gmra.mrb[0].mxu0 %v815
        %v860 = vpop.f32.mrb[0].mxu0
        %v861 = vadd.f32 0.0, %v860
        %v862 = vpop.f32.mrb[0].mxu0
        %v863 = vpop.f32.mrb[0].mxu0
        %v864 = vpop.f32.mrb[0].mxu0
        %865 = vmatprep.mubr.bf16.mxu0 0
        %866 = vmatmul.mubr.bf16.gmra.mrb[0].mxu0 %v818
        %v867 = vpop.f32.mrb[0].mxu0
        %v868 = vadd.f32 0.0, %v867
        %v869 = vpop.f32.mrb[0].mxu0
        %v870 = vpop.f32.mrb[0].mxu0
        %v871 = vpop.f32.mrb[0].mxu0
        %872 = vmatprep.mubr.bf16.mxu0 0
        %873 = vmatmul.mubr.bf16.gmra.mrb[0].mxu0 %v821
        %v874 = vpop.f32.mrb[0].mxu0
        %v875 = vadd.f32 0.0, %v874
        %v876 = vpop.f32.mrb[0].mxu0
        %v877 = vpop.f32.mrb[0].mxu0
        %v878 = vpop.f32.mrb[0].mxu0
        %879 = vmatprep.mubr.bf16.mxu0 0
        %880 = vmatmul.mubr.bf16.gmra.mrb[0].mxu0 %v824
        %v881 = vpop.f32.mrb[0].mxu0
        %v882 = vadd.f32 0.0, %v881
        %v883 = vpop.f32.mrb[0].mxu0
        %v884 = vpop.f32.mrb[0].mxu0
        %v885 = vpop.f32.mrb[0].mxu0
        %886 = vdwg.mxu0
        %v887 = vadd.f32 %v748, %v861
        %v888 = vadd.f32 %v749, %v868
        %v889 = vadd.f32 %v750, %v875
        %v890 = vadd.f32 %v751, %v882
        %v891 = vld [vmem:[%s752] sm:$0xf]
        %v892 = vld [vmem:[%s752 + $0x4] sm:$0xf]
        %v893 = vld [vmem:[%s752 + $0x8] sm:$0x1]
        %v894 = vld [vmem:[%s752 + $0xc] sm:$0xf]
        %v895 = vld [vmem:[%s752 + $0x10] sm:$0xf]
        %v896 = vld [vmem:[%s752 + $0x14] sm:$0x1]
        %v897 = vld [vmem:[%s752 + $0x18] sm:$0xf]
        %v898 = vld [vmem:[%s752 + $0x1c] sm:$0xf]
        %v899 = vld [vmem:[%s752 + $0x20] sm:$0x1]
        %v900 = vld [vmem:[%s752 + $0x24] sm:$0xf]
        %v901 = vld [vmem:[%s752 + $0x28] sm:$0xf]
        %v902 = vld [vmem:[%s752 + $0x2c] sm:$0x1]
        %v904 = vshrl.u32 %v891, 16
        %v906 = vrot.slane %v904, 4
        %v907 = vshll.u32 %v891, 16
        %v909 = vrot.slane %v907, 5
        %v910 = vor.u32 %v906, %v909
        %v911 = vrot.slane %v910, 4
        %v913 = vshll.u32 %v892, 16
        %v915 = vrot.slane %v913, 5
        %v916 = vsel %vm254, %v911, %v915
        %v917 = vshrl.u32 %v892, 16
        %v919 = vrot.slane %v917, 4
        %v920 = vor.u32 %v919, %v915
        %v921 = vrot.slane %v920, 4
        %v923 = vshll.u32 %v893, 16
        %v925 = vrot.slane %v923, 5
        %v926 = vsel %vm254, %v921, %v925
        %v928 = vshrl.u32 %v894, 16
        %v930 = vrot.slane %v928, 4
        %v931 = vshll.u32 %v894, 16
        %v933 = vrot.slane %v931, 5
        %v934 = vor.u32 %v930, %v933
        %v935 = vrot.slane %v934, 4
        %v937 = vshll.u32 %v895, 16
        %v939 = vrot.slane %v937, 5
        %v940 = vsel %vm254, %v935, %v939
        %v941 = vshrl.u32 %v895, 16
        %v943 = vrot.slane %v941, 4
        %v944 = vor.u32 %v943, %v939
        %v945 = vrot.slane %v944, 4
        %v947 = vshll.u32 %v896, 16
        %v949 = vrot.slane %v947, 5
        %v950 = vsel %vm254, %v945, %v949
        %v952 = vshrl.u32 %v897, 16
        %v954 = vrot.slane %v952, 4
        %v955 = vshll.u32 %v897, 16
        %v957 = vrot.slane %v955, 5
        %v958 = vor.u32 %v954, %v957
        %v959 = vrot.slane %v958, 4
        %v961 = vshll.u32 %v898, 16
        %v963 = vrot.slane %v961, 5
        %v964 = vsel %vm254, %v959, %v963
        %v965 = vshrl.u32 %v898, 16
        %v967 = vrot.slane %v965, 4
        %v968 = vor.u32 %v967, %v963
        %v969 = vrot.slane %v968, 4
        %v971 = vshll.u32 %v899, 16
        %v973 = vrot.slane %v971, 5
        %v974 = vsel %vm254, %v969, %v973
        %v976 = vshrl.u32 %v900, 16
        %v978 = vrot.slane %v976, 4
        %v979 = vshll.u32 %v900, 16
        %v981 = vrot.slane %v979, 5
        %v982 = vor.u32 %v978, %v981
        %v983 = vrot.slane %v982, 4
        %v985 = vshll.u32 %v901, 16
        %v987 = vrot.slane %v985, 5
        %v988 = vsel %vm254, %v983, %v987
        %v989 = vshrl.u32 %v901, 16
        %v991 = vrot.slane %v989, 4
        %v992 = vor.u32 %v991, %v987
        %v993 = vrot.slane %v992, 4
        %v995 = vshll.u32 %v902, 16
        %v997 = vrot.slane %v995, 5
        %v998 = vsel %vm254, %v993, %v997
        %s999 = scalar_lea.vmem %s222, 128
        %v1000 = vld [vmem:[%s999] sm:$0xf]
        %v1001 = vld [vmem:[%s999 + $0x4] sm:$0xf]
        %v1002 = vld [vmem:[%s999 + $0x8] sm:$0xf]
        %v1003 = vld [vmem:[%s999 + $0xc] sm:$0xf]
        %v1004 = vld [vmem:[%s999 + $0x10] sm:$0xf]
        %v1005 = vld [vmem:[%s999 + $0x14] sm:$0xf]
        %v1006 = vld [vmem:[%s999 + $0x18] sm:$0xf]
        %v1007 = vld [vmem:[%s999 + $0x1c] sm:$0xf]
        %v1008 = vunpack.c.l.b16 %v916
        %v1009 = vunpack.c.l.b16 %v926
        %v1010 = vunpack.c.l.b16 %v940
        %v1011 = vunpack.c.l.b16 %v950
        %v1012 = vunpack.c.l.b16 %v964
        %v1013 = vunpack.c.l.b16 %v974
        %v1014 = vunpack.c.l.b16 %v988
        %v1015 = vunpack.c.l.b16 %v998
        %v1016 = vpack.c.b16 %v1009, %v1008
        %v1017 = vpack.c.b16 %v1011, %v1010
        %v1018 = vpack.c.b16 %v1013, %v1012
        %v1019 = vpack.c.b16 %v1015, %v1014
        %v1028 = vunpack.c.l.b16 %v1000
        %v1029 = vunpack.c.l.b16 %v1001
        %v1030 = vunpack.c.l.b16 %v1002
        %v1031 = vunpack.c.l.b16 %v1003
        %v1032 = vunpack.c.l.b16 %v1004
        %v1033 = vunpack.c.l.b16 %v1005
        %v1034 = vunpack.c.l.b16 %v1006
        %v1035 = vunpack.c.l.b16 %v1007
        %v1036 = vpack.c.b16 %v1029, %v1028
        %v1037 = vpack.c.b16 %v1031, %v1030
        %v1038 = vpack.c.b16 %v1033, %v1032
        %v1039 = vpack.c.b16 %v1035, %v1034
        %v1045 = vsel %vm396, %v1016, 0
        %v1048 = vsel %vm396, %v1017, 0
        %v1051 = vsel %vm396, %v1018, 0
        %v1054 = vsel %vm396, %v1019, 0
        %1056 = vmatprep.subr.bf16.mxu0 0
        %1057 = vmatpush1.bf16.msra.mxu0 %v1036
        %1058 = vmatprep.subr.bf16.mxu0 0
        %1059 = vmatpush1.bf16.msra.mxu0 %v1037
        %1060 = vmatprep.subr.bf16.mxu0 0
        %1061 = vmatpush1.bf16.msra.mxu0 %v1038
        %1062 = vmatprep.subr.bf16.mxu0 0
        %1063 = vmatpush1.bf16.msra.mxu0 %v1039
        %1064 = vmatprep.subr.bf16.mxu0 0
        %1065 = vmatpush1.bf16.msra.mxu0 0
        %1066 = vmatprep.subr.bf16.mxu0 0
        %1067 = vmatpush1.bf16.msra.mxu0 0
        %1068 = vmatprep.subr.bf16.mxu0 0
        %1069 = vmatpush1.bf16.msra.mxu0 0
        %1070 = vmatprep.subr.bf16.mxu0 0
        %1071 = vmatpush1.bf16.msra.mxu0 0
        %1072 = vmatprep.subr.bf16.mxu0 0
        %1073 = vmatpush1.bf16.msra.mxu0 0
        %1074 = vmatprep.subr.bf16.mxu0 0
        %1075 = vmatpush1.bf16.msra.mxu0 0
        %1076 = vmatprep.subr.bf16.mxu0 0
        %1077 = vmatpush1.bf16.msra.mxu0 0
        %1078 = vmatprep.subr.bf16.mxu0 0
        %1079 = vmatpush1.bf16.msra.mxu0 0
        %1080 = vmatprep.subr.bf16.mxu0 0
        %1081 = vmatpush1.bf16.msra.mxu0 0
        %1082 = vmatprep.subr.bf16.mxu0 0
        %1083 = vmatpush1.bf16.msra.mxu0 0
        %1084 = vmatprep.subr.bf16.mxu0 0
        %1085 = vmatpush1.bf16.msra.mxu0 0
        %1086 = vmatprep.subr.bf16.mxu0 0
        %1087 = vmatpush1.bf16.msra.mxu0 0
        %1088 = vmatprep.mubr.bf16.mxu0 0
        %1089 = vmatmul.mubr.bf16.gmra.mrb[0].mxu0 %v1045
        %v1090 = vpop.f32.mrb[0].mxu0
        %v1091 = vadd.f32 0.0, %v1090
        %v1092 = vpop.f32.mrb[0].mxu0
        %v1093 = vpop.f32.mrb[0].mxu0
        %v1094 = vpop.f32.mrb[0].mxu0
        %1095 = vmatprep.mubr.bf16.mxu0 0
        %1096 = vmatmul.mubr.bf16.gmra.mrb[0].mxu0 %v1048
        %v1097 = vpop.f32.mrb[0].mxu0
        %v1098 = vadd.f32 0.0, %v1097
        %v1099 = vpop.f32.mrb[0].mxu0
        %v1100 = vpop.f32.mrb[0].mxu0
        %v1101 = vpop.f32.mrb[0].mxu0
        %1102 = vmatprep.mubr.bf16.mxu0 0
        %1103 = vmatmul.mubr.bf16.gmra.mrb[0].mxu0 %v1051
        %v1104 = vpop.f32.mrb[0].mxu0
        %v1105 = vadd.f32 0.0, %v1104
        %v1106 = vpop.f32.mrb[0].mxu0
        %v1107 = vpop.f32.mrb[0].mxu0
        %v1108 = vpop.f32.mrb[0].mxu0
        %1109 = vmatprep.mubr.bf16.mxu0 0
        %1110 = vmatmul.mubr.bf16.gmra.mrb[0].mxu0 %v1054
        %v1111 = vpop.f32.mrb[0].mxu0
        %v1112 = vadd.f32 0.0, %v1111
        %v1113 = vpop.f32.mrb[0].mxu0
        %v1114 = vpop.f32.mrb[0].mxu0
        %v1115 = vpop.f32.mrb[0].mxu0
        %1116 = vdwg.mxu0
        %v1117 = vadd.f32 %v887, %v1091
        %v1118 = vadd.f32 %v888, %v1098
        %v1119 = vadd.f32 %v889, %v1105
        %v1120 = vadd.f32 %v890, %v1112
        %v1121 = vld [vmem:[%s752] sm:$0xe]
        %v1122 = vld [vmem:[%s752 + $0xc] sm:$0xe]
        %v1123 = vld [vmem:[%s752 + $0x18] sm:$0xe]
        %v1124 = vld [vmem:[%s752 + $0x24] sm:$0xe]
        %v1137 = vrot.slane %v1121, 5
        %v1138 = vrot.slane %v1137, 4
        %v1139 = vrot.slane %v892, 5
        %v1140 = vsel %vm601, %v1138, %v1139
        %v1141 = vrot.slane %v1139, 4
        %v1142 = vrot.slane %v893, 5
        %v1143 = vsel %vm601, %v1141, %v1142
        %v1144 = vrot.slane %v1122, 5
        %v1145 = vrot.slane %v1144, 4
        %v1146 = vrot.slane %v895, 5
        %v1147 = vsel %vm601, %v1145, %v1146
        %v1148 = vrot.slane %v1146, 4
        %v1149 = vrot.slane %v896, 5
        %v1150 = vsel %vm601, %v1148, %v1149
        %v1151 = vrot.slane %v1123, 5
        %v1152 = vrot.slane %v1151, 4
        %v1153 = vrot.slane %v898, 5
        %v1154 = vsel %vm601, %v1152, %v1153
        %v1155 = vrot.slane %v1153, 4
        %v1156 = vrot.slane %v899, 5
        %v1157 = vsel %vm601, %v1155, %v1156
        %v1158 = vrot.slane %v1124, 5
        %v1159 = vrot.slane %v1158, 4
        %v1160 = vrot.slane %v901, 5
        %v1161 = vsel %vm601, %v1159, %v1160
        %v1162 = vrot.slane %v1160, 4
        %v1163 = vrot.slane %v902, 5
        %v1164 = vsel %vm601, %v1162, %v1163
        %s1165 = scalar_lea.vmem %s222, 160
        %v1166 = vld [vmem:[%s1165] sm:$0xf]
        %v1167 = vld [vmem:[%s1165 + $0x4] sm:$0xf]
        %v1168 = vld [vmem:[%s1165 + $0x8] sm:$0xf]
        %v1169 = vld [vmem:[%s1165 + $0xc] sm:$0xf]
        %v1170 = vld [vmem:[%s1165 + $0x10] sm:$0xf]
        %v1171 = vld [vmem:[%s1165 + $0x14] sm:$0xf]
        %v1172 = vld [vmem:[%s1165 + $0x18] sm:$0xf]
        %v1173 = vld [vmem:[%s1165 + $0x1c] sm:$0xf]
        %v1174 = vunpack.c.l.b16 %v1140
        %v1175 = vunpack.c.l.b16 %v1143
        %v1176 = vunpack.c.l.b16 %v1147
        %v1177 = vunpack.c.l.b16 %v1150
        %v1178 = vunpack.c.l.b16 %v1154
        %v1179 = vunpack.c.l.b16 %v1157
        %v1180 = vunpack.c.l.b16 %v1161
        %v1181 = vunpack.c.l.b16 %v1164
        %v1182 = vpack.c.b16 %v1175, %v1174
        %v1183 = vpack.c.b16 %v1177, %v1176
        %v1184 = vpack.c.b16 %v1179, %v1178
        %v1185 = vpack.c.b16 %v1181, %v1180
        %v1194 = vunpack.c.l.b16 %v1166
        %v1195 = vunpack.c.l.b16 %v1167
        %v1196 = vunpack.c.l.b16 %v1168
        %v1197 = vunpack.c.l.b16 %v1169
        %v1198 = vunpack.c.l.b16 %v1170
        %v1199 = vunpack.c.l.b16 %v1171
        %v1200 = vunpack.c.l.b16 %v1172
        %v1201 = vunpack.c.l.b16 %v1173
        %v1202 = vpack.c.b16 %v1195, %v1194
        %v1203 = vpack.c.b16 %v1197, %v1196
        %v1204 = vpack.c.b16 %v1199, %v1198
        %v1205 = vpack.c.b16 %v1201, %v1200
        %v1211 = vsel %vm396, %v1182, 0
        %v1214 = vsel %vm396, %v1183, 0
        %v1217 = vsel %vm396, %v1184, 0
        %v1220 = vsel %vm396, %v1185, 0
        %1222 = vmatprep.subr.bf16.mxu0 0
        %1223 = vmatpush1.bf16.msra.mxu0 %v1202
        %1224 = vmatprep.subr.bf16.mxu0 0
        %1225 = vmatpush1.bf16.msra.mxu0 %v1203
        %1226 = vmatprep.subr.bf16.mxu0 0
        %1227 = vmatpush1.bf16.msra.mxu0 %v1204
        %1228 = vmatprep.subr.bf16.mxu0 0
        %1229 = vmatpush1.bf16.msra.mxu0 %v1205
        %1230 = vmatprep.subr.bf16.mxu0 0
        %1231 = vmatpush1.bf16.msra.mxu0 0
        %1232 = vmatprep.subr.bf16.mxu0 0
        %1233 = vmatpush1.bf16.msra.mxu0 0
        %1234 = vmatprep.subr.bf16.mxu0 0
        %1235 = vmatpush1.bf16.msra.mxu0 0
        %1236 = vmatprep.subr.bf16.mxu0 0
        %1237 = vmatpush1.bf16.msra.mxu0 0
        %1238 = vmatprep.subr.bf16.mxu0 0
        %1239 = vmatpush1.bf16.msra.mxu0 0
        %1240 = vmatprep.subr.bf16.mxu0 0
        %1241 = vmatpush1.bf16.msra.mxu0 0
        %1242 = vmatprep.subr.bf16.mxu0 0
        %1243 = vmatpush1.bf16.msra.mxu0 0
        %1244 = vmatprep.subr.bf16.mxu0 0
        %1245 = vmatpush1.bf16.msra.mxu0 0
        %1246 = vmatprep.subr.bf16.mxu0 0
        %1247 = vmatpush1.bf16.msra.mxu0 0
        %1248 = vmatprep.subr.bf16.mxu0 0
        %1249 = vmatpush1.bf16.msra.mxu0 0
        %1250 = vmatprep.subr.bf16.mxu0 0
        %1251 = vmatpush1.bf16.msra.mxu0 0
        %1252 = vmatprep.subr.bf16.mxu0 0
        %1253 = vmatpush1.bf16.msra.mxu0 0
        %1254 = vmatprep.mubr.bf16.mxu0 0
        %1255 = vmatmul.mubr.bf16.gmra.mrb[0].mxu0 %v1211
        %v1256 = vpop.f32.mrb[0].mxu0
        %v1257 = vadd.f32 0.0, %v1256
        %v1258 = vpop.f32.mrb[0].mxu0
        %v1259 = vpop.f32.mrb[0].mxu0
        %v1260 = vpop.f32.mrb[0].mxu0
        %1261 = vmatprep.mubr.bf16.mxu0 0
        %1262 = vmatmul.mubr.bf16.gmra.mrb[0].mxu0 %v1214
        %v1263 = vpop.f32.mrb[0].mxu0
        %v1264 = vadd.f32 0.0, %v1263
        %v1265 = vpop.f32.mrb[0].mxu0
        %v1266 = vpop.f32.mrb[0].mxu0
        %v1267 = vpop.f32.mrb[0].mxu0
        %1268 = vmatprep.mubr.bf16.mxu0 0
        %1269 = vmatmul.mubr.bf16.gmra.mrb[0].mxu0 %v1217
        %v1270 = vpop.f32.mrb[0].mxu0
        %v1271 = vadd.f32 0.0, %v1270
        %v1272 = vpop.f32.mrb[0].mxu0
        %v1273 = vpop.f32.mrb[0].mxu0
        %v1274 = vpop.f32.mrb[0].mxu0
        %1275 = vmatprep.mubr.bf16.mxu0 0
        %1276 = vmatmul.mubr.bf16.gmra.mrb[0].mxu0 %v1220
        %v1277 = vpop.f32.mrb[0].mxu0
        %v1278 = vadd.f32 0.0, %v1277
        %v1279 = vpop.f32.mrb[0].mxu0
        %v1280 = vpop.f32.mrb[0].mxu0
        %v1281 = vpop.f32.mrb[0].mxu0
        %1282 = vdwg.mxu0
        %v1283 = vadd.f32 %v1117, %v1257
        %v1284 = vadd.f32 %v1118, %v1264
        %v1285 = vadd.f32 %v1119, %v1271
        %v1286 = vadd.f32 %v1120, %v1278
        %s1287 = scalar_lea.vmem %s218, 24
        %v1288 = vld [vmem:[%s1287] sm:$0xf]
        %v1289 = vld [vmem:[%s1287 + $0x4] sm:$0xf]
        %v1290 = vld [vmem:[%s1287 + $0xc] sm:$0xf]
        %v1291 = vld [vmem:[%s1287 + $0x10] sm:$0xf]
        %v1292 = vld [vmem:[%s1287 + $0x18] sm:$0xf]
        %v1293 = vld [vmem:[%s1287 + $0x1c] sm:$0xf]
        %v1294 = vld [vmem:[%s1287 + $0x24] sm:$0xf]
        %v1295 = vld [vmem:[%s1287 + $0x28] sm:$0xf]
        %s1296 = scalar_lea.vmem %s222, 192
        %v1297 = vld [vmem:[%s1296] sm:$0xf]
        %v1298 = vld [vmem:[%s1296 + $0x4] sm:$0xf]
        %v1299 = vld [vmem:[%s1296 + $0x8] sm:$0xf]
        %v1300 = vld [vmem:[%s1296 + $0xc] sm:$0xf]
        %v1301 = vld [vmem:[%s1296 + $0x10] sm:$0xf]
        %v1302 = vld [vmem:[%s1296 + $0x14] sm:$0xf]
        %v1303 = vld [vmem:[%s1296 + $0x18] sm:$0xf]
        %v1304 = vld [vmem:[%s1296 + $0x1c] sm:$0xf]
        %v1313 = vunpack.c.l.b16 %v1288
        %v1314 = vunpack.c.l.b16 %v1289
        %v1315 = vunpack.c.l.b16 %v1290
        %v1316 = vunpack.c.l.b16 %v1291
        %v1317 = vunpack.c.l.b16 %v1292
        %v1318 = vunpack.c.l.b16 %v1293
        %v1319 = vunpack.c.l.b16 %v1294
        %v1320 = vunpack.c.l.b16 %v1295
        %v1321 = vpack.c.b16 %v1314, %v1313
        %v1322 = vpack.c.b16 %v1316, %v1315
        %v1323 = vpack.c.b16 %v1318, %v1317
        %v1324 = vpack.c.b16 %v1320, %v1319
        %v1333 = vunpack.c.l.b16 %v1297
        %v1334 = vunpack.c.l.b16 %v1298
        %v1335 = vunpack.c.l.b16 %v1299
        %v1336 = vunpack.c.l.b16 %v1300
        %v1337 = vunpack.c.l.b16 %v1301
        %v1338 = vunpack.c.l.b16 %v1302
        %v1339 = vunpack.c.l.b16 %v1303
        %v1340 = vunpack.c.l.b16 %v1304
        %v1341 = vpack.c.b16 %v1334, %v1333
        %v1342 = vpack.c.b16 %v1336, %v1335
        %v1343 = vpack.c.b16 %v1338, %v1337
        %v1344 = vpack.c.b16 %v1340, %v1339
        %v1350 = vsel %vm396, %v1321, 0
        %v1353 = vsel %vm396, %v1322, 0
        %v1356 = vsel %vm396, %v1323, 0
        %v1359 = vsel %vm396, %v1324, 0
        %1361 = vmatprep.subr.bf16.mxu0 0
        %1362 = vmatpush1.bf16.msra.mxu0 %v1341
        %1363 = vmatprep.subr.bf16.mxu0 0
        %1364 = vmatpush1.bf16.msra.mxu0 %v1342
        %1365 = vmatprep.subr.bf16.mxu0 0
        %1366 = vmatpush1.bf16.msra.mxu0 %v1343
        %1367 = vmatprep.subr.bf16.mxu0 0
        %1368 = vmatpush1.bf16.msra.mxu0 %v1344
        %1369 = vmatprep.subr.bf16.mxu0 0
        %1370 = vmatpush1.bf16.msra.mxu0 0
        %1371 = vmatprep.subr.bf16.mxu0 0
        %1372 = vmatpush1.bf16.msra.mxu0 0
        %1373 = vmatprep.subr.bf16.mxu0 0
        %1374 = vmatpush1.bf16.msra.mxu0 0
        %1375 = vmatprep.subr.bf16.mxu0 0
        %1376 = vmatpush1.bf16.msra.mxu0 0
        %1377 = vmatprep.subr.bf16.mxu0 0
        %1378 = vmatpush1.bf16.msra.mxu0 0
        %1379 = vmatprep.subr.bf16.mxu0 0
        %1380 = vmatpush1.bf16.msra.mxu0 0
        %1381 = vmatprep.subr.bf16.mxu0 0
        %1382 = vmatpush1.bf16.msra.mxu0 0
        %1383 = vmatprep.subr.bf16.mxu0 0
        %1384 = vmatpush1.bf16.msra.mxu0 0
        %1385 = vmatprep.subr.bf16.mxu0 0
        %1386 = vmatpush1.bf16.msra.mxu0 0
        %1387 = vmatprep.subr.bf16.mxu0 0
        %1388 = vmatpush1.bf16.msra.mxu0 0
        %1389 = vmatprep.subr.bf16.mxu0 0
        %1390 = vmatpush1.bf16.msra.mxu0 0
        %1391 = vmatprep.subr.bf16.mxu0 0
        %1392 = vmatpush1.bf16.msra.mxu0 0
        %1393 = vmatprep.mubr.bf16.mxu0 0
        %1394 = vmatmul.mubr.bf16.gmra.mrb[0].mxu0 %v1350
        %v1395 = vpop.f32.mrb[0].mxu0
        %v1396 = vadd.f32 0.0, %v1395
        %v1397 = vpop.f32.mrb[0].mxu0
        %v1398 = vpop.f32.mrb[0].mxu0
        %v1399 = vpop.f32.mrb[0].mxu0
        %1400 = vmatprep.mubr.bf16.mxu0 0
        %1401 = vmatmul.mubr.bf16.gmra.mrb[0].mxu0 %v1353
        %v1402 = vpop.f32.mrb[0].mxu0
        %v1403 = vadd.f32 0.0, %v1402
        %v1404 = vpop.f32.mrb[0].mxu0
        %v1405 = vpop.f32.mrb[0].mxu0
        %v1406 = vpop.f32.mrb[0].mxu0
        %1407 = vmatprep.mubr.bf16.mxu0 0
        %1408 = vmatmul.mubr.bf16.gmra.mrb[0].mxu0 %v1356
        %v1409 = vpop.f32.mrb[0].mxu0
        %v1410 = vadd.f32 0.0, %v1409
        %v1411 = vpop.f32.mrb[0].mxu0
        %v1412 = vpop.f32.mrb[0].mxu0
        %v1413 = vpop.f32.mrb[0].mxu0
        %1414 = vmatprep.mubr.bf16.mxu0 0
        %1415 = vmatmul.mubr.bf16.gmra.mrb[0].mxu0 %v1359
        %v1416 = vpop.f32.mrb[0].mxu0
        %v1417 = vadd.f32 0.0, %v1416
        %v1418 = vpop.f32.mrb[0].mxu0
        %v1419 = vpop.f32.mrb[0].mxu0
        %v1420 = vpop.f32.mrb[0].mxu0
        %1421 = vdwg.mxu0
        %v1422 = vadd.f32 %v1283, %v1396
        %v1423 = vadd.f32 %v1284, %v1403
        %v1424 = vadd.f32 %v1285, %v1410
        %v1425 = vadd.f32 %v1286, %v1417
        %v1426 = vld [vmem:[%s1287] sm:$0xf]
        %v1427 = vld [vmem:[%s1287 + $0x4] sm:$0xf]
        %v1428 = vld [vmem:[%s1287 + $0x8] sm:$0x1]
        %v1429 = vld [vmem:[%s1287 + $0xc] sm:$0xf]
        %v1430 = vld [vmem:[%s1287 + $0x10] sm:$0xf]
        %v1431 = vld [vmem:[%s1287 + $0x14] sm:$0x1]
        %v1432 = vld [vmem:[%s1287 + $0x18] sm:$0xf]
        %v1433 = vld [vmem:[%s1287 + $0x1c] sm:$0xf]
        %v1434 = vld [vmem:[%s1287 + $0x20] sm:$0x1]
        %v1435 = vld [vmem:[%s1287 + $0x24] sm:$0xf]
        %v1436 = vld [vmem:[%s1287 + $0x28] sm:$0xf]
        %v1437 = vld [vmem:[%s1287 + $0x2c] sm:$0x1]
        %v1439 = vshrl.u32 %v1426, 16
        %v1441 = vrot.slane %v1439, 4
        %v1442 = vshll.u32 %v1426, 16
        %v1444 = vrot.slane %v1442, 5
        %v1445 = vor.u32 %v1441, %v1444
        %v1446 = vrot.slane %v1445, 4
        %v1448 = vshll.u32 %v1427, 16
        %v1450 = vrot.slane %v1448, 5
        %v1451 = vsel %vm254, %v1446, %v1450
        %v1452 = vshrl.u32 %v1427, 16
        %v1454 = vrot.slane %v1452, 4
        %v1455 = vor.u32 %v1454, %v1450
        %v1456 = vrot.slane %v1455, 4
        %v1458 = vshll.u32 %v1428, 16
        %v1460 = vrot.slane %v1458, 5
        %v1461 = vsel %vm254, %v1456, %v1460
        %v1463 = vshrl.u32 %v1429, 16
        %v1465 = vrot.slane %v1463, 4
        %v1466 = vshll.u32 %v1429, 16
        %v1468 = vrot.slane %v1466, 5
        %v1469 = vor.u32 %v1465, %v1468
        %v1470 = vrot.slane %v1469, 4
        %v1472 = vshll.u32 %v1430, 16
        %v1474 = vrot.slane %v1472, 5
        %v1475 = vsel %vm254, %v1470, %v1474
        %v1476 = vshrl.u32 %v1430, 16
        %v1478 = vrot.slane %v1476, 4
        %v1479 = vor.u32 %v1478, %v1474
        %v1480 = vrot.slane %v1479, 4
        %v1482 = vshll.u32 %v1431, 16
        %v1484 = vrot.slane %v1482, 5
        %v1485 = vsel %vm254, %v1480, %v1484
        %v1487 = vshrl.u32 %v1432, 16
        %v1489 = vrot.slane %v1487, 4
        %v1490 = vshll.u32 %v1432, 16
        %v1492 = vrot.slane %v1490, 5
        %v1493 = vor.u32 %v1489, %v1492
        %v1494 = vrot.slane %v1493, 4
        %v1496 = vshll.u32 %v1433, 16
        %v1498 = vrot.slane %v1496, 5
        %v1499 = vsel %vm254, %v1494, %v1498
        %v1500 = vshrl.u32 %v1433, 16
        %v1502 = vrot.slane %v1500, 4
        %v1503 = vor.u32 %v1502, %v1498
        %v1504 = vrot.slane %v1503, 4
        %v1506 = vshll.u32 %v1434, 16
        %v1508 = vrot.slane %v1506, 5
        %v1509 = vsel %vm254, %v1504, %v1508
        %v1511 = vshrl.u32 %v1435, 16
        %v1513 = vrot.slane %v1511, 4
        %v1514 = vshll.u32 %v1435, 16
        %v1516 = vrot.slane %v1514, 5
        %v1517 = vor.u32 %v1513, %v1516
        %v1518 = vrot.slane %v1517, 4
        %v1520 = vshll.u32 %v1436, 16
        %v1522 = vrot.slane %v1520, 5
        %v1523 = vsel %vm254, %v1518, %v1522
        %v1524 = vshrl.u32 %v1436, 16
        %v1526 = vrot.slane %v1524, 4
        %v1527 = vor.u32 %v1526, %v1522
        %v1528 = vrot.slane %v1527, 4
        %v1530 = vshll.u32 %v1437, 16
        %v1532 = vrot.slane %v1530, 5
        %v1533 = vsel %vm254, %v1528, %v1532
        %s1534 = scalar_lea.vmem %s222, 224
        %v1535 = vld [vmem:[%s1534] sm:$0xf]
        %v1536 = vld [vmem:[%s1534 + $0x4] sm:$0xf]
        %v1537 = vld [vmem:[%s1534 + $0x8] sm:$0xf]
        %v1538 = vld [vmem:[%s1534 + $0xc] sm:$0xf]
        %v1539 = vld [vmem:[%s1534 + $0x10] sm:$0xf]
        %v1540 = vld [vmem:[%s1534 + $0x14] sm:$0xf]
        %v1541 = vld [vmem:[%s1534 + $0x18] sm:$0xf]
        %v1542 = vld [vmem:[%s1534 + $0x1c] sm:$0xf]
        %v1543 = vunpack.c.l.b16 %v1451
        %v1544 = vunpack.c.l.b16 %v1461
        %v1545 = vunpack.c.l.b16 %v1475
        %v1546 = vunpack.c.l.b16 %v1485
        %v1547 = vunpack.c.l.b16 %v1499
        %v1548 = vunpack.c.l.b16 %v1509
        %v1549 = vunpack.c.l.b16 %v1523
        %v1550 = vunpack.c.l.b16 %v1533
        %v1551 = vpack.c.b16 %v1544, %v1543
        %v1552 = vpack.c.b16 %v1546, %v1545
        %v1553 = vpack.c.b16 %v1548, %v1547
        %v1554 = vpack.c.b16 %v1550, %v1549
        %v1563 = vunpack.c.l.b16 %v1535
        %v1564 = vunpack.c.l.b16 %v1536
        %v1565 = vunpack.c.l.b16 %v1537
        %v1566 = vunpack.c.l.b16 %v1538
        %v1567 = vunpack.c.l.b16 %v1539
        %v1568 = vunpack.c.l.b16 %v1540
        %v1569 = vunpack.c.l.b16 %v1541
        %v1570 = vunpack.c.l.b16 %v1542
        %v1571 = vpack.c.b16 %v1564, %v1563
        %v1572 = vpack.c.b16 %v1566, %v1565
        %v1573 = vpack.c.b16 %v1568, %v1567
        %v1574 = vpack.c.b16 %v1570, %v1569
        %v1580 = vsel %vm396, %v1551, 0
        %v1583 = vsel %vm396, %v1552, 0
        %v1586 = vsel %vm396, %v1553, 0
        %v1589 = vsel %vm396, %v1554, 0
        %1591 = vmatprep.subr.bf16.mxu0 0
        %1592 = vmatpush1.bf16.msra.mxu0 %v1571
        %1593 = vmatprep.subr.bf16.mxu0 0
        %1594 = vmatpush1.bf16.msra.mxu0 %v1572
        %1595 = vmatprep.subr.bf16.mxu0 0
        %1596 = vmatpush1.bf16.msra.mxu0 %v1573
        %1597 = vmatprep.subr.bf16.mxu0 0
        %1598 = vmatpush1.bf16.msra.mxu0 %v1574
        %1599 = vmatprep.subr.bf16.mxu0 0
        %1600 = vmatpush1.bf16.msra.mxu0 0
        %1601 = vmatprep.subr.bf16.mxu0 0
        %1602 = vmatpush1.bf16.msra.mxu0 0
        %1603 = vmatprep.subr.bf16.mxu0 0
        %1604 = vmatpush1.bf16.msra.mxu0 0
        %1605 = vmatprep.subr.bf16.mxu0 0
        %1606 = vmatpush1.bf16.msra.mxu0 0
        %1607 = vmatprep.subr.bf16.mxu0 0
        %1608 = vmatpush1.bf16.msra.mxu0 0
        %1609 = vmatprep.subr.bf16.mxu0 0
        %1610 = vmatpush1.bf16.msra.mxu0 0
        %1611 = vmatprep.subr.bf16.mxu0 0
        %1612 = vmatpush1.bf16.msra.mxu0 0
        %1613 = vmatprep.subr.bf16.mxu0 0
        %1614 = vmatpush1.bf16.msra.mxu0 0
        %1615 = vmatprep.subr.bf16.mxu0 0
        %1616 = vmatpush1.bf16.msra.mxu0 0
        %1617 = vmatprep.subr.bf16.mxu0 0
        %1618 = vmatpush1.bf16.msra.mxu0 0
        %1619 = vmatprep.subr.bf16.mxu0 0
        %1620 = vmatpush1.bf16.msra.mxu0 0
        %1621 = vmatprep.subr.bf16.mxu0 0
        %1622 = vmatpush1.bf16.msra.mxu0 0
        %1623 = vmatprep.mubr.bf16.mxu0 0
        %1624 = vmatmul.mubr.bf16.gmra.mrb[0].mxu0 %v1580
        %v1625 = vpop.f32.mrb[0].mxu0
        %v1626 = vadd.f32 0.0, %v1625
        %v1627 = vpop.f32.mrb[0].mxu0
        %v1628 = vpop.f32.mrb[0].mxu0
        %v1629 = vpop.f32.mrb[0].mxu0
        %1630 = vmatprep.mubr.bf16.mxu0 0
        %1631 = vmatmul.mubr.bf16.gmra.mrb[0].mxu0 %v1583
        %v1632 = vpop.f32.mrb[0].mxu0
        %v1633 = vadd.f32 0.0, %v1632
        %v1634 = vpop.f32.mrb[0].mxu0
        %v1635 = vpop.f32.mrb[0].mxu0
        %v1636 = vpop.f32.mrb[0].mxu0
        %1637 = vmatprep.mubr.bf16.mxu0 0
        %1638 = vmatmul.mubr.bf16.gmra.mrb[0].mxu0 %v1586
        %v1639 = vpop.f32.mrb[0].mxu0
        %v1640 = vadd.f32 0.0, %v1639
        %v1641 = vpop.f32.mrb[0].mxu0
        %v1642 = vpop.f32.mrb[0].mxu0
        %v1643 = vpop.f32.mrb[0].mxu0
        %1644 = vmatprep.mubr.bf16.mxu0 0
        %1645 = vmatmul.mubr.bf16.gmra.mrb[0].mxu0 %v1589
        %v1646 = vpop.f32.mrb[0].mxu0
        %v1647 = vadd.f32 0.0, %v1646
        %v1648 = vpop.f32.mrb[0].mxu0
        %v1649 = vpop.f32.mrb[0].mxu0
        %v1650 = vpop.f32.mrb[0].mxu0
        %1651 = vdwg.mxu0
        %v1652 = vadd.f32 %v1422, %v1626
        %v1653 = vadd.f32 %v1423, %v1633
        %v1654 = vadd.f32 %v1424, %v1640
        %v1655 = vadd.f32 %v1425, %v1647
        %v1656 = vld [vmem:[%s1287] sm:$0xe]
        %v1657 = vld [vmem:[%s1287 + $0xc] sm:$0xe]
        %v1658 = vld [vmem:[%s1287 + $0x18] sm:$0xe]
        %v1659 = vld [vmem:[%s1287 + $0x24] sm:$0xe]
        %v1672 = vrot.slane %v1656, 5
        %v1673 = vrot.slane %v1672, 4
        %v1674 = vrot.slane %v1427, 5
        %v1675 = vsel %vm601, %v1673, %v1674
        %v1676 = vrot.slane %v1674, 4
        %v1677 = vrot.slane %v1428, 5
        %v1678 = vsel %vm601, %v1676, %v1677
        %v1679 = vrot.slane %v1657, 5
        %v1680 = vrot.slane %v1679, 4
        %v1681 = vrot.slane %v1430, 5
        %v1682 = vsel %vm601, %v1680, %v1681
        %v1683 = vrot.slane %v1681, 4
        %v1684 = vrot.slane %v1431, 5
        %v1685 = vsel %vm601, %v1683, %v1684
        %v1686 = vrot.slane %v1658, 5
        %v1687 = vrot.slane %v1686, 4
        %v1688 = vrot.slane %v1433, 5
        %v1689 = vsel %vm601, %v1687, %v1688
        %v1690 = vrot.slane %v1688, 4
        %v1691 = vrot.slane %v1434, 5
        %v1692 = vsel %vm601, %v1690, %v1691
        %v1693 = vrot.slane %v1659, 5
        %v1694 = vrot.slane %v1693, 4
        %v1695 = vrot.slane %v1436, 5
        %v1696 = vsel %vm601, %v1694, %v1695
        %v1697 = vrot.slane %v1695, 4
        %v1698 = vrot.slane %v1437, 5
        %v1699 = vsel %vm601, %v1697, %v1698
        %s1700 = scalar_lea.vmem %s222, 256
        %v1701 = vld [vmem:[%s1700] sm:$0xf]
        %v1702 = vld [vmem:[%s1700 + $0x4] sm:$0xf]
        %v1703 = vld [vmem:[%s1700 + $0x8] sm:$0xf]
        %v1704 = vld [vmem:[%s1700 + $0xc] sm:$0xf]
        %v1705 = vld [vmem:[%s1700 + $0x10] sm:$0xf]
        %v1706 = vld [vmem:[%s1700 + $0x14] sm:$0xf]
        %v1707 = vld [vmem:[%s1700 + $0x18] sm:$0xf]
        %v1708 = vld [vmem:[%s1700 + $0x1c] sm:$0xf]
        %v1709 = vunpack.c.l.b16 %v1675
        %v1710 = vunpack.c.l.b16 %v1678
        %v1711 = vunpack.c.l.b16 %v1682
        %v1712 = vunpack.c.l.b16 %v1685
        %v1713 = vunpack.c.l.b16 %v1689
        %v1714 = vunpack.c.l.b16 %v1692
        %v1715 = vunpack.c.l.b16 %v1696
        %v1716 = vunpack.c.l.b16 %v1699
        %v1717 = vpack.c.b16 %v1710, %v1709
        %v1718 = vpack.c.b16 %v1712, %v1711
        %v1719 = vpack.c.b16 %v1714, %v1713
        %v1720 = vpack.c.b16 %v1716, %v1715
        %v1729 = vunpack.c.l.b16 %v1701
        %v1730 = vunpack.c.l.b16 %v1702
        %v1731 = vunpack.c.l.b16 %v1703
        %v1732 = vunpack.c.l.b16 %v1704
        %v1733 = vunpack.c.l.b16 %v1705
        %v1734 = vunpack.c.l.b16 %v1706
        %v1735 = vunpack.c.l.b16 %v1707
        %v1736 = vunpack.c.l.b16 %v1708
        %v1737 = vpack.c.b16 %v1730, %v1729
        %v1738 = vpack.c.b16 %v1732, %v1731
        %v1739 = vpack.c.b16 %v1734, %v1733
        %v1740 = vpack.c.b16 %v1736, %v1735
        %v1746 = vsel %vm396, %v1717, 0
        %v1749 = vsel %vm396, %v1718, 0
        %v1752 = vsel %vm396, %v1719, 0
        %v1755 = vsel %vm396, %v1720, 0
        %1757 = vmatprep.subr.bf16.mxu0 0
        %1758 = vmatpush1.bf16.msra.mxu0 %v1737
        %1759 = vmatprep.subr.bf16.mxu0 0
        %1760 = vmatpush1.bf16.msra.mxu0 %v1738
        %1761 = vmatprep.subr.bf16.mxu0 0
        %1762 = vmatpush1.bf16.msra.mxu0 %v1739
        %1763 = vmatprep.subr.bf16.mxu0 0
        %1764 = vmatpush1.bf16.msra.mxu0 %v1740
        %1765 = vmatprep.subr.bf16.mxu0 0
        %1766 = vmatpush1.bf16.msra.mxu0 0
        %1767 = vmatprep.subr.bf16.mxu0 0
        %1768 = vmatpush1.bf16.msra.mxu0 0
        %1769 = vmatprep.subr.bf16.mxu0 0
        %1770 = vmatpush1.bf16.msra.mxu0 0
        %1771 = vmatprep.subr.bf16.mxu0 0
        %1772 = vmatpush1.bf16.msra.mxu0 0
        %1773 = vmatprep.subr.bf16.mxu0 0
        %1774 = vmatpush1.bf16.msra.mxu0 0
        %1775 = vmatprep.subr.bf16.mxu0 0
        %1776 = vmatpush1.bf16.msra.mxu0 0
        %1777 = vmatprep.subr.bf16.mxu0 0
        %1778 = vmatpush1.bf16.msra.mxu0 0
        %1779 = vmatprep.subr.bf16.mxu0 0
        %1780 = vmatpush1.bf16.msra.mxu0 0
        %1781 = vmatprep.subr.bf16.mxu0 0
        %1782 = vmatpush1.bf16.msra.mxu0 0
        %1783 = vmatprep.subr.bf16.mxu0 0
        %1784 = vmatpush1.bf16.msra.mxu0 0
        %1785 = vmatprep.subr.bf16.mxu0 0
        %1786 = vmatpush1.bf16.msra.mxu0 0
        %1787 = vmatprep.subr.bf16.mxu0 0
        %1788 = vmatpush1.bf16.msra.mxu0 0
        %1789 = vmatprep.mubr.bf16.mxu0 0
        %1790 = vmatmul.mubr.bf16.gmra.mrb[0].mxu0 %v1746
        %v1791 = vpop.f32.mrb[0].mxu0
        %v1792 = vadd.f32 0.0, %v1791
        %v1793 = vpop.f32.mrb[0].mxu0
        %v1794 = vpop.f32.mrb[0].mxu0
        %v1795 = vpop.f32.mrb[0].mxu0
        %1796 = vmatprep.mubr.bf16.mxu0 0
        %1797 = vmatmul.mubr.bf16.gmra.mrb[0].mxu0 %v1749
        %v1798 = vpop.f32.mrb[0].mxu0
        %v1799 = vadd.f32 0.0, %v1798
        %v1800 = vpop.f32.mrb[0].mxu0
        %v1801 = vpop.f32.mrb[0].mxu0
        %v1802 = vpop.f32.mrb[0].mxu0
        %1803 = vmatprep.mubr.bf16.mxu0 0
        %1804 = vmatmul.mubr.bf16.gmra.mrb[0].mxu0 %v1752
        %v1805 = vpop.f32.mrb[0].mxu0
        %v1806 = vadd.f32 0.0, %v1805
        %v1807 = vpop.f32.mrb[0].mxu0
        %v1808 = vpop.f32.mrb[0].mxu0
        %v1809 = vpop.f32.mrb[0].mxu0
        %1810 = vmatprep.mubr.bf16.mxu0 0
        %1811 = vmatmul.mubr.bf16.gmra.mrb[0].mxu0 %v1755
        %v1812 = vpop.f32.mrb[0].mxu0
        %v1813 = vadd.f32 0.0, %v1812
        %v1814 = vpop.f32.mrb[0].mxu0
        %v1815 = vpop.f32.mrb[0].mxu0
        %v1816 = vpop.f32.mrb[0].mxu0
        %1817 = vdwg.mxu0
        %v1818 = vadd.f32 %v1652, %v1792
        %v1819 = vadd.f32 %v1653, %v1799
        %v1820 = vadd.f32 %v1654, %v1806
        %v1821 = vadd.f32 %v1655, %v1813
        %v1822 = vld [vmem:[%s230] sm:$0xf]
        %v1823 = vld [vmem:[%s230 + $0x4] sm:$0xf]
        %v1824 = vld [vmem:[%s230 + $0x8] sm:$0xf]
        %v1825 = vld [vmem:[%s230 + $0xc] sm:$0xf]
        %v1826 = vadd.f32 %v1818, %v1822
        %v1827 = vadd.f32 %v1819, %v1823
        %v1828 = vadd.f32 %v1820, %v1824
        %v1829 = vadd.f32 %v1821, %v1825
        %vm1830 = vcmask 519168
        %1831 = vst.msk [vmem:[%s213] sm:$0xf] %vm1830, %v1826
        %1832 = vst.msk [vmem:[%s213 + $0x4] sm:$0xf] %vm1830, %v1827
        %1833 = vst.msk [vmem:[%s213 + $0x8] sm:$0xf] %vm1830, %v1828
        %1834 = vst.msk [vmem:[%s213 + $0xc] sm:$0xf] %vm1830, %v1829
        %s1835 = sand.u32 %s119, 1
        %s1836 = scalar_lea.sflag [#allocation3], %s1835
        %s1837 = sand.u32 %s119, 1
        %s1838 = smul.addr %s1837, 16
        %s1839 = scalar_lea.vmem [#allocation2], %s1838
        // Predicated region
        $region33: #{block_forward.9} parent=31 // pred_check
          %p1840 = pneg %p129
        $region34: #{block_forward.9} parent=31 // pred_check_branch
          %1842 = sbr.rel (%p1840) target = $region36
        $region35: #{block_forward.9} parent=31 // pred_region
          %s1844 = ssub.s32 256, 256
          %1845 = vsyncadd %s1836, %s1844
          %s1846 = smul.addr %s21, 4
          %s1847 = sadd.s32 %s22, %s1846
          %s1848 = smul.addr %s1847, 64
          %s1849 = scalar_lea.hbm %s3, %s1848
          %s1850 = sshll.u32 %s1839, 4
          %s1851 = int_to_ptr.vmem [resolvable:$true] %s1850
          %1856 = dma.vmem_to_hbm [thread:$0]  %s1851, 256, %s1849, %s1836, 64, 64, 4
        $region36: #{block_forward.9} parent=31 // pred_fallthru
          _
      $region32: #{block_forward.9} parent=5 // pred_fallthru
        _
      %p1857 = scmp.le.s32.totalorder 2, %s12
      // Predicated region
      $region37: #{block_forward.9} parent=5 // pred_check
        %p1858 = pneg %p1857
      $region38: #{block_forward.9} parent=5 // pred_check_branch
        %1860 = sbr.rel (%p1858) target = $region40
      $region39: #{block_forward.9} parent=5 // pred_region
        %s1861 = ssub.s32 %s12, 2
        // Predicated region
        $region41: #{block_forward.9} parent=39 // pred_check
          %p1862 = pneg %p135
        $region42: #{block_forward.9} parent=39 // pred_check_branch
          %1864 = sbr.rel (%p1862) target = $region44
        $region43: #{block_forward.9} parent=39 // pred_region
          %s1865 = sand.u32 %s120, 1
          %s1866 = scalar_lea.sflag [#allocation3], %s1865
          %s1867 = sand.u32 %s120, 1
          %s1868 = smul.addr %s1867, 16
          %s1869 = scalar_lea.vmem [#allocation2], %s1868
          %1870 = dma.done %s1866, 256
        $region44: #{block_forward.9} parent=39 // pred_fallthru
          _
      $region40: #{block_forward.9} parent=5 // pred_fallthru
        _
    $region6: #{block_forward.9} parent=1 // loop_footer
      %s16 = sadd.s32 1, %s12
    $region7: #{block_forward.9} parent=1 // loop_footer_branch
      %11 = sbr.rel target = $region3
    $region8: #{block_forward.9} parent=1 // loop_exit
      _
    %1871 = vsyncpa [#allocation3], 1
    %s1872 = scalar_lea.sflag [#allocation3], 1
    %1873 = vsyncpa %s1872, 1

</llo_original>
